<compile_context>
chip_gen: v7x
topology: tpu7x:2x2x1
jax: 0.10.0
libtpu: 0.0.40
codegen_flags: <defaults>
</compile_context>

<pallas_src>
import functools

import jax
import jax.numpy as jnp
from jax.experimental import pallas as pl
from jax.experimental.pallas import tpu as pltpu


LEAKY_SLOPE = 0.01                  # F.leaky_relu default negative_slope
GUMBEL_TAU = 0.2                    # tau used by the module
INV_GUMBEL_TAU = 1.0 / GUMBEL_TAU   # fold the divide into a multiply


def _segment_softmax(xi):
    m = jnp.max(xi, axis=-1, keepdims=True)
    e = jnp.exp(xi - m)
    # exact reciprocal keeps the 1e-5 allclose tolerance
    return e * pl.reciprocal(jnp.sum(e, axis=-1, keepdims=True), approx=False)


def mixed_act_kernel(x_ref, *rest, output_sizes, activations, has_gumbel):
    if has_gumbel:
        g_ref, o_ref = rest
        g = g_ref[...].astype(jnp.float32)
    else:
        (o_ref,) = rest
        g = None

    x = x_ref[...].astype(jnp.float32)

    segs = []
    start = 0       # offset into the (tile, F) x block
    gstart = 0      # offset into the (tile, G) sliced-noise block
    for size, act in zip(output_sizes, activations):
        xi = x[:, start:start + size]
        if act == 'tanh':
            yi = jnp.tanh(xi)
        elif act == 'sigmoid':
            yi = jax.nn.sigmoid(xi)
        elif act == 'relu':
            yi = jnp.maximum(xi, 0.0)
        elif act == 'leaky_relu':
            yi = jnp.where(xi >= 0, xi, LEAKY_SLOPE * xi)
        elif act == 'softmax':
            yi = _segment_softmax(xi)
        elif act == 'gumbel_softmax':
            gi = g[:, gstart:gstart + size]
            yi = _segment_softmax((xi + gi) * INV_GUMBEL_TAU)
            gstart += size
        elif act == 'none' or act is None:
            yi = xi
        else:
            raise ValueError(f'Unsupported activation: {act}')
        segs.append(yi)
        start += size

    # Single full-width store (one vst group per tile instead of 7 masked ones).
    o_ref[...] = jnp.concatenate(segs, axis=-1).astype(o_ref.dtype)


def mixed_output_activations(x, gumbel_noise, output_sizes, activations,
                             *, batch_tile=512):
    """x: (B, F), F == sum(output_sizes).  gumbel_noise: (B, F) (only the
    columns belonging to gumbel_softmax segments are ever read; they are
    sliced out here so the kernel never DMAs the unused ones).  Returns (B, F).
    """
    B, F = x.shape
    assert F == sum(output_sizes)
    assert len(output_sizes) == len(activations)

    # Gather only the gumbel columns (small (B, G) slab instead of (B, F)).
    gumbel_cols = []
    start = 0
    for size, act in zip(output_sizes, activations):
        if act == 'gumbel_softmax':
            gumbel_cols.append(gumbel_noise[:, start:start + size])
        start += size
    has_gumbel = len(gumbel_cols) > 0
    if has_gumbel:
        g = (gumbel_cols[0] if len(gumbel_cols) == 1
             else jnp.concatenate(gumbel_cols, axis=-1))
        G = g.shape[1]

    # Batch tile: as large as requested, multiple of 8 (sublane rule), clamped
    # to the (rounded-up) batch.  Last dim stays the full F / G so the
    # (8, 128) rule is satisfied via "equals the full array dim".
    tile = min(batch_tile, pl.cdiv(B, 8) * 8)
    tile = max(8, (tile // 8) * 8)
    grid = pl.cdiv(B, tile)
    B_pad = grid * tile
    if B_pad != B:
        x = jnp.pad(x, ((0, B_pad - B), (0, 0)))
        if has_gumbel:
            g = jnp.pad(g, ((0, B_pad - B), (0, 0)))

    kernel = functools.partial(
        mixed_act_kernel,
        output_sizes=tuple(output_sizes),
        activations=tuple(activations),
        has_gumbel=has_gumbel,
    )

    in_specs = [pl.BlockSpec((tile, F), lambda i: (i, 0))]
    inputs = [x]
    if has_gumbel:
        in_specs.append(pl.BlockSpec((tile, G), lambda i: (i, 0)))
        inputs.append(g)

    out = pl.pallas_call(
        kernel,
        out_shape=jax.ShapeDtypeStruct((B_pad, F), x.dtype),
        grid_spec=pltpu.PrefetchScalarGridSpec(
            num_scalar_prefetch=0,
            grid=(grid,),
            in_specs=in_specs,
            out_specs=pl.BlockSpec((tile, F), lambda i: (i, 0)),
        ),
        compiler_params=pltpu.CompilerParams(
            dimension_semantics=("parallel",)),
    )(*inputs)

    return out[:B] if B_pad != B else out


def reference_jax(x, gumbel_noise, output_sizes, activations):
    """Pure-JAX reference mirroring the PyTorch forward."""
    outs = []
    start = 0
    for size, act in zip(output_sizes, activations):
        xi = x[:, start:start + size]
        if act == 'tanh':
            outs.append(jnp.tanh(xi))
        elif act == 'sigmoid':
            outs.append(jax.nn.sigmoid(xi))
        elif act == 'relu':
            outs.append(jnp.maximum(xi, 0.0))
        elif act == 'leaky_relu':
            outs.append(jnp.where(xi >= 0, xi, LEAKY_SLOPE * xi))
        elif act == 'softmax':
            outs.append(jax.nn.softmax(xi, axis=-1))
        elif act == 'gumbel_softmax':
            gi = gumbel_noise[:, start:start + size]
            outs.append(jax.nn.softmax((xi + gi) / GUMBEL_TAU, axis=-1))
        elif act == 'none' or act is None:
            outs.append(xi)
        start += size
    return jnp.concatenate(outs, axis=-1)


if __name__ == "__main__":
    # Module config (synthetic, deterministic).
    output_sizes = [4, 4, 4, 4, 8, 8, 4]
    activations = ['tanh', 'sigmoid', 'relu', 'leaky_relu',
                   'softmax', 'gumbel_softmax', 'none']
    F = sum(output_sizes)        # 36 features

    key = jax.random.PRNGKey(0)
    kx, kg = jax.random.split(key)

    # Two shapes: one that exercises a multi-step grid (2 parallel steps, so
    # both TensorCores on megacore parts get work) and one odd batch that
    # exercises the pad-and-clamp tiling path.
    for B in (1024, 100):
        kx_b = jax.random.fold_in(kx, B)
        kg_b = jax.random.fold_in(kg, B)
        x = jax.random.normal(kx_b, (B, F), dtype=jnp.float32)
        # Deterministic Gumbel noise for the gumbel_softmax segment (the
        # PyTorch op samples internally; fixed here so the kernel is testable).
        gumbel_noise = jax.random.gumbel(kg_b, (B, F), dtype=jnp.float32)

        out = mixed_output_activations(x, gumbel_noise,
                                       output_sizes, activations)
        out = jax.block_until_ready(out)

        ref = reference_jax(x, gumbel_noise, output_sizes, activations)
        assert out.shape == (B, F)
        assert jnp.allclose(out, ref, atol=1e-5, rtol=1e-5), \
            f"mismatch vs reference at B={B}"

    print("KERNEL_OK")
</pallas_src>

<mosaic_0001>
module attributes {stable_mosaic.version = 11 : i64} {
  func.func @mixed_act_kernel(%arg0: i32, %arg1: memref<512x36xf32, #tpu.memory_space<vmem>>, %arg2: memref<512x8xf32, #tpu.memory_space<vmem>>, %arg3: memref<512x36xf32, #tpu.memory_space<vmem>>) attributes {dimension_semantics = [#tpu.dimension_semantics<parallel>], iteration_bounds = array<i64: 2>, scalar_prefetch = 0 : i64, scratch_operands = 0 : i64, tpu.core_type = #tpu.core_type<tc>, window_params = [{transform_indices = @transform_0, window_bounds = array<i64: 512, 36>}, {transform_indices = @transform_1, window_bounds = array<i64: 512, 8>}, {transform_indices = @transform_2, window_bounds = array<i64: 512, 36>}]} {
    %c0 = arith.constant 0 : index
    %c0_0 = arith.constant 0 : index
    %0 = vector.load %arg2[%c0, %c0_0] : memref<512x8xf32, #tpu.memory_space<vmem>>, vector<512x8xf32>
    %c0_1 = arith.constant 0 : index
    %c0_2 = arith.constant 0 : index
    %1 = vector.load %arg1[%c0_1, %c0_2] : memref<512x36xf32, #tpu.memory_space<vmem>>, vector<512x36xf32>
    %2 = vector.extract_strided_slice %1 {offsets = [0, 0], sizes = [512, 4], strides = [1, 1]} : vector<512x36xf32> to vector<512x4xf32>
    %3 = math.tanh %2 : vector<512x4xf32>
    %4 = vector.extract_strided_slice %1 {offsets = [0, 4], sizes = [512, 4], strides = [1, 1]} : vector<512x36xf32> to vector<512x4xf32>
    %5 = arith.negf %4 : vector<512x4xf32>
    %6 = math.exp %5 : vector<512x4xf32>
    %cst = arith.constant 1.000000e+00 : f32
    %7 = vector.broadcast %cst : f32 to vector<512x4xf32>
    %8 = arith.addf %7, %6 : vector<512x4xf32>
    %9 = arith.divf %7, %8 : vector<512x4xf32>
    %10 = vector.extract_strided_slice %1 {offsets = [0, 8], sizes = [512, 4], strides = [1, 1]} : vector<512x36xf32> to vector<512x4xf32>
    %cst_3 = arith.constant 0.000000e+00 : f32
    %11 = vector.broadcast %cst_3 : f32 to vector<512x4xf32>
    %12 = arith.maximumf %10, %11 : vector<512x4xf32>
    %13 = vector.extract_strided_slice %1 {offsets = [0, 12], sizes = [512, 4], strides = [1, 1]} : vector<512x36xf32> to vector<512x4xf32>
    %cst_4 = arith.constant 0.000000e+00 : f32
    %14 = vector.broadcast %cst_4 : f32 to vector<512x4xf32>
    %15 = arith.cmpf oge, %13, %14 : vector<512x4xf32>
    %cst_5 = arith.constant 0.00999999977 : f32
    %16 = vector.broadcast %cst_5 : f32 to vector<512x4xf32>
    %17 = arith.mulf %16, %13 : vector<512x4xf32>
    %18 = arith.select %15, %13, %17 : vector<512x4xi1>, vector<512x4xf32>
    %19 = vector.extract_strided_slice %1 {offsets = [0, 16], sizes = [512, 8], strides = [1, 1]} : vector<512x36xf32> to vector<512x8xf32>
    %cst_6 = arith.constant dense<0xFF800000> : vector<512xf32>
    %20 = vector.multi_reduction <maximumf>, %19, %cst_6 [1] : vector<512x8xf32> to vector<512xf32>
    %21 = vector.shape_cast %20 : vector<512xf32> to vector<512x1xf32>
    %22 = vector.broadcast %21 : vector<512x1xf32> to vector<512x8xf32>
    %23 = arith.subf %19, %22 : vector<512x8xf32>
    %24 = math.exp %23 : vector<512x8xf32>
    %cst_7 = arith.constant dense<0.000000e+00> : vector<512xf32>
    %25 = vector.multi_reduction <add>, %24, %cst_7 [1] : vector<512x8xf32> to vector<512xf32>
    %26 = vector.shape_cast %25 : vector<512xf32> to vector<512x1xf32>
    %27 = tpu.reciprocal %26 : vector<512x1xf32> -> vector<512x1xf32>
    %28 = vector.broadcast %27 : vector<512x1xf32> to vector<512x8xf32>
    %29 = arith.mulf %24, %28 : vector<512x8xf32>
    %30 = vector.extract_strided_slice %1 {offsets = [0, 24], sizes = [512, 8], strides = [1, 1]} : vector<512x36xf32> to vector<512x8xf32>
    %31 = arith.addf %30, %0 : vector<512x8xf32>
    %cst_8 = arith.constant 5.000000e+00 : f32
    %32 = vector.broadcast %cst_8 : f32 to vector<512x8xf32>
    %33 = arith.mulf %31, %32 : vector<512x8xf32>
    %cst_9 = arith.constant dense<0xFF800000> : vector<512xf32>
    %34 = vector.multi_reduction <maximumf>, %33, %cst_9 [1] : vector<512x8xf32> to vector<512xf32>
    %35 = vector.shape_cast %34 : vector<512xf32> to vector<512x1xf32>
    %36 = vector.broadcast %35 : vector<512x1xf32> to vector<512x8xf32>
    %37 = arith.subf %33, %36 : vector<512x8xf32>
    %38 = math.exp %37 : vector<512x8xf32>
    %cst_10 = arith.constant dense<0.000000e+00> : vector<512xf32>
    %39 = vector.multi_reduction <add>, %38, %cst_10 [1] : vector<512x8xf32> to vector<512xf32>
    %40 = vector.shape_cast %39 : vector<512xf32> to vector<512x1xf32>
    %41 = tpu.reciprocal %40 : vector<512x1xf32> -> vector<512x1xf32>
    %42 = vector.broadcast %41 : vector<512x1xf32> to vector<512x8xf32>
    %43 = arith.mulf %38, %42 : vector<512x8xf32>
    %44 = vector.extract_strided_slice %1 {offsets = [0, 32], sizes = [512, 4], strides = [1, 1]} : vector<512x36xf32> to vector<512x4xf32>
    %45 = tpu.concatenate %3, %9, %12, %18, %29, %43, %44 in 1 : vector<512x4xf32>, vector<512x4xf32>, vector<512x4xf32>, vector<512x4xf32>, vector<512x8xf32>, vector<512x8xf32>, vector<512x4xf32> -> vector<512x36xf32>
    %c0_11 = arith.constant 0 : index
    %c0_12 = arith.constant 0 : index
    %46 = vector.load %arg3[%c0_11, %c0_12] : memref<512x36xf32, #tpu.memory_space<vmem>>, vector<512x36xf32>
    tpu.vector_store %arg3[%c0_11, %c0_12], %45 {strides = array<i32>} : memref<512x36xf32, #tpu.memory_space<vmem>>, vector<512x36xf32>,
    return
  }
  func.func @transform_0(%arg0: i32) -> (i32, i32) {
    %c0_i32 = arith.constant 0 : i32
    %c0_i32_0 = arith.constant 0 : i32
    return %arg0, %c0_i32 : i32, i32
  }
  func.func @transform_1(%arg0: i32) -> (i32, i32) {
    %c0_i32 = arith.constant 0 : i32
    %c0_i32_0 = arith.constant 0 : i32
    return %arg0, %c0_i32 : i32, i32
  }
  func.func @transform_2(%arg0: i32) -> (i32, i32) {
    %c0_i32 = arith.constant 0 : i32
    %c0_i32_0 = arith.constant 0 : i32
    return %arg0, %c0_i32 : i32, i32
  }
}

</mosaic_0001>

<llo_original>
// kernel: tpu_custom_call.1
$region0: #{tpu_custom_call.1}
  #allocation0 [shape = 'u32[]', space=smem, size = 0x4, offset = 0x4, fixed_abs, tag = 'smem constant byte address 0x4 - core index']
  #allocation1 [shape = 'u32[144,128]{1,0:T(1,128)}', space=vmem, size = 0x12000, scoped, tag = 'internal scratch']
  %s0 = inlined_call_operand.vmem [shape: f32[1024,36], index: 0, kind: input, shape index: {}]
  %s1 = inlined_call_operand.vmem [shape: f32[1024,8], index: 1, kind: input, shape index: {}]
  %s2 = inlined_call_operand.vmem [shape: f32[1024,36], index: 2, kind: output, shape index: {}]
  %s3 = sld [smem:[#allocation0]]
  $region41: #{tpu_custom_call.1} parent=0
    _
  %s5 = ssub.s32 1, %s3
  %s6 = scalar_select 0, %s5, %s3
  loop: start=0, step=1, limit=4
  $region2: #{tpu_custom_call.1} parent=0 // loop_pre_header
    _
  $region3: #{tpu_custom_call.1} parent=0 // loop_header
    %s8 = sphi 0, %s12
    %p9 = scmp.ge.s32.totalorder %s8, 4
    %s18 = sphi 0, %s20
    %s21 = sphi 0, %s18
    %s22 = sphi 0, %s21
    %s38 = sphi 0, %s22
    %s44 = sphi 0, %s46
    %s47 = sphi 0, %s44
    %s48 = sphi 0, %s47
    %s64 = sphi 0, %s48
    %s70 = sphi 0, %s72
    %s73 = sphi 0, %s70
    %s74 = sphi 0, %s73
    %s90 = sphi 0, %s74
  $region4: #{tpu_custom_call.1} parent=0 // loop_header_branch
    %11 = sbr.rel (%p9) target = $region8
  $region5: #{tpu_custom_call.1} parent=0 // loop_body
    %s13 = ssub.s32 %s8, 1
    %s14 = ssub.s32 %s8, 2
    %s15 = sadd.s32 %s8, 1
    %s16 = ssub.s32 %s8, %s15
    %p17 = scmp.eq.s32.totalorder %s16, 0
    %s19 = sadd.s32 %s18, 1
    %s20 = scalar_select %p17, %s18, %s19
    %p23 = pneg %p17
    %p24 = scmp.eq.s32.totalorder %s8, 1
    %p25 = por %p23, %p24
    %p26 = scmp.ne.s32.totalorder %s18, %s21
    %p27 = scmp.eq.s32.totalorder %s8, 0
    %p28 = por %p26, %p27
    %p29 = scmp.ne.s32.totalorder %s18, %s21
    %p30 = scmp.eq.s32.totalorder %s13, 1
    %p31 = por %p29, %p30
    %p32 = scmp.ne.s32.totalorder %s21, %s22
    %p33 = scmp.eq.s32.totalorder %s13, 0
    %p34 = por %p32, %p33
    %p35 = scmp.ne.s32.totalorder %s21, %s22
    %p36 = scmp.eq.s32.totalorder %s14, 1
    %p37 = por %p35, %p36
    %p39 = scmp.ne.s32.totalorder %s22, %s38
    %p40 = scmp.eq.s32.totalorder %s14, 0
    %p41 = por %p39, %p40
    %s42 = ssub.s32 %s8, %s15
    %p43 = scmp.eq.s32.totalorder %s42, 0
    %s45 = sadd.s32 %s44, 1
    %s46 = scalar_select %p43, %s44, %s45
    %p49 = pneg %p43
    %p50 = scmp.eq.s32.totalorder %s8, 1
    %p51 = por %p49, %p50
    %p52 = scmp.ne.s32.totalorder %s44, %s47
    %p53 = scmp.eq.s32.totalorder %s8, 0
    %p54 = por %p52, %p53
    %p55 = scmp.ne.s32.totalorder %s44, %s47
    %p56 = scmp.eq.s32.totalorder %s13, 1
    %p57 = por %p55, %p56
    %p58 = scmp.ne.s32.totalorder %s47, %s48
    %p59 = scmp.eq.s32.totalorder %s13, 0
    %p60 = por %p58, %p59
    %p61 = scmp.ne.s32.totalorder %s47, %s48
    %p62 = scmp.eq.s32.totalorder %s14, 1
    %p63 = por %p61, %p62
    %p65 = scmp.ne.s32.totalorder %s48, %s64
    %p66 = scmp.eq.s32.totalorder %s14, 0
    %p67 = por %p65, %p66
    %s68 = ssub.s32 %s8, %s15
    %p69 = scmp.eq.s32.totalorder %s68, 0
    %s71 = sadd.s32 %s70, 1
    %s72 = scalar_select %p69, %s70, %s71
    %p75 = pneg %p69
    %p76 = scmp.eq.s32.totalorder %s8, 1
    %p77 = por %p75, %p76
    %p78 = scmp.ne.s32.totalorder %s70, %s73
    %p79 = scmp.eq.s32.totalorder %s8, 0
    %p80 = por %p78, %p79
    %p81 = scmp.ne.s32.totalorder %s70, %s73
    %p82 = scmp.eq.s32.totalorder %s13, 1
    %p83 = por %p81, %p82
    %p84 = scmp.ne.s32.totalorder %s73, %s74
    %p85 = scmp.eq.s32.totalorder %s13, 0
    %p86 = por %p84, %p85
    %p87 = scmp.ne.s32.totalorder %s73, %s74
    %p88 = scmp.eq.s32.totalorder %s14, 1
    %p89 = por %p87, %p88
    %p91 = scmp.ne.s32.totalorder %s74, %s90
    %p92 = scmp.eq.s32.totalorder %s14, 0
    %p93 = por %p91, %p92
    %p94 = scmp.le.s32.totalorder 1, %s8
    %p95 = scmp.lt.s32.totalorder %s8, 3
    %p96 = pnand %p94, %p95
    %p97 = pneg %p96
    // Predicated region
    $region9: #{tpu_custom_call.1} parent=5 // pred_check
      _
    $region10: #{tpu_custom_call.1} parent=5 // pred_check_branch
      %99 = sbr.rel (%p96) target = $region12
    $region11: #{tpu_custom_call.1} parent=5 // pred_region
      %s100 = ssub.s32 %s8, 1
    $region12: #{tpu_custom_call.1} parent=5 // pred_fallthru
      _
    %p101 = scmp.lt.s32.totalorder %s8, 2
    // Predicated region
    $region13: #{tpu_custom_call.1} parent=5 // pred_check
      %p102 = pneg %p101
    $region14: #{tpu_custom_call.1} parent=5 // pred_check_branch
      %104 = sbr.rel (%p102) target = $region16
    $region15: #{tpu_custom_call.1} parent=5 // pred_region
      // Predicated region
      $region17: #{tpu_custom_call.1} parent=15 // pred_check
        %p105 = pneg %p28
      $region18: #{tpu_custom_call.1} parent=15 // pred_check_branch
        %107 = sbr.rel (%p105) target = $region20
      $region19: #{tpu_custom_call.1} parent=15 // pred_region
        %s108 = smul.u32 64, %s8
        %p109 = scmp.lt.s32.totalorder %s108, 127
        %s110 = scalar_select %p109, %s108, 127
        %s111 = smul.addr %s110, 8
        %s112 = scalar_lea.vmem %s0, %s111
        %s113 = smul.u32 64, %s8
      $region20: #{tpu_custom_call.1} parent=15 // pred_fallthru
        _
      // Predicated region
      $region21: #{tpu_custom_call.1} parent=15 // pred_check
        %p114 = pneg %p54
      $region22: #{tpu_custom_call.1} parent=15 // pred_check_branch
        %116 = sbr.rel (%p114) target = $region24
      $region23: #{tpu_custom_call.1} parent=15 // pred_region
        %s117 = smul.u32 64, %s8
        %p118 = scmp.lt.s32.totalorder %s117, 127
        %s119 = scalar_select %p118, %s117, 127
        %s120 = smul.addr %s119, 8
        %s121 = scalar_lea.vmem %s1, %s120
        %s122 = smul.u32 64, %s8
      $region24: #{tpu_custom_call.1} parent=15 // pred_fallthru
        _
    $region16: #{tpu_custom_call.1} parent=5 // pred_fallthru
      _
    %p123 = scmp.le.s32.totalorder 1, %s8
    %p124 = scmp.lt.s32.totalorder %s8, 3
    %p125 = pnand %p123, %p124
    %p126 = pneg %p125
    // Predicated region
    $region25: #{tpu_custom_call.1} parent=5 // pred_check
      _
    $region26: #{tpu_custom_call.1} parent=5 // pred_check_branch
      %128 = sbr.rel (%p125) target = $region28
    $region27: #{tpu_custom_call.1} parent=5 // pred_region
      %s129 = ssub.s32 %s8, 1
      %s130 = smul.u32 64, %s13
      %p131 = scmp.lt.s32.totalorder %s130, 127
      %s132 = scalar_select %p131, %s130, 127
      %s133 = smul.addr %s132, 8
      %s134 = scalar_lea.vmem %s0, %s133
      %p135 = pneg %p34
      %p136 = pneg %p31
      %s137 = smul.u32 64, %s13
      %p138 = scmp.lt.s32.totalorder %s137, 127
      %s139 = scalar_select %p138, %s137, 127
      %s140 = smul.addr %s139, 8
      %s141 = scalar_lea.vmem %s1, %s140
      %p142 = pneg %p60
      %p143 = pneg %p57
      %p144 = pneg %p86
      %p145 = pneg %p83
      %s146 = smul.u32 64, %s13
      %p147 = scmp.lt.s32.totalorder %s146, 127
      %s148 = scalar_select %p147, %s146, 127
      %s149 = smul.addr %s148, 8
      %s150 = scalar_lea.vmem %s2, %s149
      %s151 = smul.u32 64, %s13
      %p152 = scmp.lt.s32.totalorder %s151, 127
      %s153 = scalar_select %p152, %s151, 127
      %s154 = smul.addr %s153, 8
      %s155 = scalar_lea.vmem %s0, %s154
      %s156 = smul.u32 64, %s13
      %s157 = smul.u32 64, %s13
      %p158 = scmp.lt.s32.totalorder %s157, 127
      %s159 = scalar_select %p158, %s157, 127
      %s160 = smul.addr %s159, 8
      %s161 = scalar_lea.vmem %s1, %s160
      %s162 = smul.u32 64, %s13
      %s163 = smul.u32 64, %s13
      %p164 = scmp.lt.s32.totalorder %s163, 127
      %s165 = scalar_select %p164, %s163, 127
      %s166 = smul.addr %s165, 8
      %s167 = scalar_lea.vmem %s2, %s166
      %s168 = smul.u32 64, %s13
      %v169 = vld [vmem:[%s161] sm:$0xff]
      %v170 = vld [vmem:[%s161 + $0x8] sm:$0xff]
      %v171 = vld [vmem:[%s161 + $0x10] sm:$0xff]
      %v172 = vld [vmem:[%s161 + $0x18] sm:$0xff]
      %v173 = vld [vmem:[%s161 + $0x20] sm:$0xff]
      %v174 = vld [vmem:[%s161 + $0x28] sm:$0xff]
      %v175 = vld [vmem:[%s161 + $0x30] sm:$0xff]
      %v176 = vld [vmem:[%s161 + $0x38] sm:$0xff]
      %v177 = vld [vmem:[%s161 + $0x40] sm:$0xff]
      %v178 = vld [vmem:[%s161 + $0x48] sm:$0xff]
      %v179 = vld [vmem:[%s161 + $0x50] sm:$0xff]
      %v180 = vld [vmem:[%s161 + $0x58] sm:$0xff]
      %v181 = vld [vmem:[%s161 + $0x60] sm:$0xff]
      %v182 = vld [vmem:[%s161 + $0x68] sm:$0xff]
      %v183 = vld [vmem:[%s161 + $0x70] sm:$0xff]
      %v184 = vld [vmem:[%s161 + $0x78] sm:$0xff]
      %v185 = vld [vmem:[%s161 + $0x80] sm:$0xff]
      %v186 = vld [vmem:[%s161 + $0x88] sm:$0xff]
      %v187 = vld [vmem:[%s161 + $0x90] sm:$0xff]
      %v188 = vld [vmem:[%s161 + $0x98] sm:$0xff]
      %v189 = vld [vmem:[%s161 + $0xa0] sm:$0xff]
      %v190 = vld [vmem:[%s161 + $0xa8] sm:$0xff]
      %v191 = vld [vmem:[%s161 + $0xb0] sm:$0xff]
      %v192 = vld [vmem:[%s161 + $0xb8] sm:$0xff]
      %v193 = vld [vmem:[%s161 + $0xc0] sm:$0xff]
      %v194 = vld [vmem:[%s161 + $0xc8] sm:$0xff]
      %v195 = vld [vmem:[%s161 + $0xd0] sm:$0xff]
      %v196 = vld [vmem:[%s161 + $0xd8] sm:$0xff]
      %v197 = vld [vmem:[%s161 + $0xe0] sm:$0xff]
      %v198 = vld [vmem:[%s161 + $0xe8] sm:$0xff]
      %v199 = vld [vmem:[%s161 + $0xf0] sm:$0xff]
      %v200 = vld [vmem:[%s161 + $0xf8] sm:$0xff]
      %v201 = vld [vmem:[%s161 + $0x100] sm:$0xff]
      %v202 = vld [vmem:[%s161 + $0x108] sm:$0xff]
      %v203 = vld [vmem:[%s161 + $0x110] sm:$0xff]
      %v204 = vld [vmem:[%s161 + $0x118] sm:$0xff]
      %v205 = vld [vmem:[%s161 + $0x120] sm:$0xff]
      %v206 = vld [vmem:[%s161 + $0x128] sm:$0xff]
      %v207 = vld [vmem:[%s161 + $0x130] sm:$0xff]
      %v208 = vld [vmem:[%s161 + $0x138] sm:$0xff]
      %v209 = vld [vmem:[%s161 + $0x140] sm:$0xff]
      %v210 = vld [vmem:[%s161 + $0x148] sm:$0xff]
      %v211 = vld [vmem:[%s161 + $0x150] sm:$0xff]
      %v212 = vld [vmem:[%s161 + $0x158] sm:$0xff]
      %v213 = vld [vmem:[%s161 + $0x160] sm:$0xff]
      %v214 = vld [vmem:[%s161 + $0x168] sm:$0xff]
      %v215 = vld [vmem:[%s161 + $0x170] sm:$0xff]
      %v216 = vld [vmem:[%s161 + $0x178] sm:$0xff]
      %v217 = vld [vmem:[%s161 + $0x180] sm:$0xff]
      %v218 = vld [vmem:[%s161 + $0x188] sm:$0xff]
      %v219 = vld [vmem:[%s161 + $0x190] sm:$0xff]
      %v220 = vld [vmem:[%s161 + $0x198] sm:$0xff]
      %v221 = vld [vmem:[%s161 + $0x1a0] sm:$0xff]
      %v222 = vld [vmem:[%s161 + $0x1a8] sm:$0xff]
      %v223 = vld [vmem:[%s161 + $0x1b0] sm:$0xff]
      %v224 = vld [vmem:[%s161 + $0x1b8] sm:$0xff]
      %v225 = vld [vmem:[%s161 + $0x1c0] sm:$0xff]
      %v226 = vld [vmem:[%s161 + $0x1c8] sm:$0xff]
      %v227 = vld [vmem:[%s161 + $0x1d0] sm:$0xff]
      %v228 = vld [vmem:[%s161 + $0x1d8] sm:$0xff]
      %v229 = vld [vmem:[%s161 + $0x1e0] sm:$0xff]
      %v230 = vld [vmem:[%s161 + $0x1e8] sm:$0xff]
      %v231 = vld [vmem:[%s161 + $0x1f0] sm:$0xff]
      %v232 = vld [vmem:[%s161 + $0x1f8] sm:$0xff]
      %v233 = vld [vmem:[%s155] sm:$0xff]
      %v234 = vld [vmem:[%s155 + $0x8] sm:$0xff]
      %v235 = vld [vmem:[%s155 + $0x10] sm:$0xff]
      %v236 = vld [vmem:[%s155 + $0x18] sm:$0xff]
      %v237 = vld [vmem:[%s155 + $0x20] sm:$0xff]
      %v238 = vld [vmem:[%s155 + $0x28] sm:$0xff]
      %v239 = vld [vmem:[%s155 + $0x30] sm:$0xff]
      %v240 = vld [vmem:[%s155 + $0x38] sm:$0xff]
      %v241 = vld [vmem:[%s155 + $0x40] sm:$0xff]
      %v242 = vld [vmem:[%s155 + $0x48] sm:$0xff]
      %v243 = vld [vmem:[%s155 + $0x50] sm:$0xff]
      %v244 = vld [vmem:[%s155 + $0x58] sm:$0xff]
      %v245 = vld [vmem:[%s155 + $0x60] sm:$0xff]
      %v246 = vld [vmem:[%s155 + $0x68] sm:$0xff]
      %v247 = vld [vmem:[%s155 + $0x70] sm:$0xff]
      %v248 = vld [vmem:[%s155 + $0x78] sm:$0xff]
      %v249 = vld [vmem:[%s155 + $0x80] sm:$0xff]
      %v250 = vld [vmem:[%s155 + $0x88] sm:$0xff]
      %v251 = vld [vmem:[%s155 + $0x90] sm:$0xff]
      %v252 = vld [vmem:[%s155 + $0x98] sm:$0xff]
      %v253 = vld [vmem:[%s155 + $0xa0] sm:$0xff]
      %v254 = vld [vmem:[%s155 + $0xa8] sm:$0xff]
      %v255 = vld [vmem:[%s155 + $0xb0] sm:$0xff]
      %v256 = vld [vmem:[%s155 + $0xb8] sm:$0xff]
      %v257 = vld [vmem:[%s155 + $0xc0] sm:$0xff]
      %v258 = vld [vmem:[%s155 + $0xc8] sm:$0xff]
      %v259 = vld [vmem:[%s155 + $0xd0] sm:$0xff]
      %v260 = vld [vmem:[%s155 + $0xd8] sm:$0xff]
      %v261 = vld [vmem:[%s155 + $0xe0] sm:$0xff]
      %v262 = vld [vmem:[%s155 + $0xe8] sm:$0xff]
      %v263 = vld [vmem:[%s155 + $0xf0] sm:$0xff]
      %v264 = vld [vmem:[%s155 + $0xf8] sm:$0xff]
      %v265 = vld [vmem:[%s155 + $0x100] sm:$0xff]
      %v266 = vld [vmem:[%s155 + $0x108] sm:$0xff]
      %v267 = vld [vmem:[%s155 + $0x110] sm:$0xff]
      %v268 = vld [vmem:[%s155 + $0x118] sm:$0xff]
      %v269 = vld [vmem:[%s155 + $0x120] sm:$0xff]
      %v270 = vld [vmem:[%s155 + $0x128] sm:$0xff]
      %v271 = vld [vmem:[%s155 + $0x130] sm:$0xff]
      %v272 = vld [vmem:[%s155 + $0x138] sm:$0xff]
      %v273 = vld [vmem:[%s155 + $0x140] sm:$0xff]
      %v274 = vld [vmem:[%s155 + $0x148] sm:$0xff]
      %v275 = vld [vmem:[%s155 + $0x150] sm:$0xff]
      %v276 = vld [vmem:[%s155 + $0x158] sm:$0xff]
      %v277 = vld [vmem:[%s155 + $0x160] sm:$0xff]
      %v278 = vld [vmem:[%s155 + $0x168] sm:$0xff]
      %v279 = vld [vmem:[%s155 + $0x170] sm:$0xff]
      %v280 = vld [vmem:[%s155 + $0x178] sm:$0xff]
      %v281 = vld [vmem:[%s155 + $0x180] sm:$0xff]
      %v282 = vld [vmem:[%s155 + $0x188] sm:$0xff]
      %v283 = vld [vmem:[%s155 + $0x190] sm:$0xff]
      %v284 = vld [vmem:[%s155 + $0x198] sm:$0xff]
      %v285 = vld [vmem:[%s155 + $0x1a0] sm:$0xff]
      %v286 = vld [vmem:[%s155 + $0x1a8] sm:$0xff]
      %v287 = vld [vmem:[%s155 + $0x1b0] sm:$0xff]
      %v288 = vld [vmem:[%s155 + $0x1b8] sm:$0xff]
      %v289 = vld [vmem:[%s155 + $0x1c0] sm:$0xff]
      %v290 = vld [vmem:[%s155 + $0x1c8] sm:$0xff]
      %v291 = vld [vmem:[%s155 + $0x1d0] sm:$0xff]
      %v292 = vld [vmem:[%s155 + $0x1d8] sm:$0xff]
      %v293 = vld [vmem:[%s155 + $0x1e0] sm:$0xff]
      %v294 = vld [vmem:[%s155 + $0x1e8] sm:$0xff]
      %v295 = vld [vmem:[%s155 + $0x1f0] sm:$0xff]
      %v296 = vld [vmem:[%s155 + $0x1f8] sm:$0xff]
      %v297 = vtanh.pop %v233
      %v298 = vtanh.pop %v234
      %v299 = vtanh.pop %v235
      %v300 = vtanh.pop %v236
      %v301 = vtanh.pop %v237
      %v302 = vtanh.pop %v238
      %v303 = vtanh.pop %v239
      %v304 = vtanh.pop %v240
      %v305 = vtanh.pop %v241
      %v306 = vtanh.pop %v242
      %v307 = vtanh.pop %v243
      %v308 = vtanh.pop %v244
      %v309 = vtanh.pop %v245
      %v310 = vtanh.pop %v246
      %v311 = vtanh.pop %v247
      %v312 = vtanh.pop %v248
      %v313 = vtanh.pop %v249
      %v314 = vtanh.pop %v250
      %v315 = vtanh.pop %v251
      %v316 = vtanh.pop %v252
      %v317 = vtanh.pop %v253
      %v318 = vtanh.pop %v254
      %v319 = vtanh.pop %v255
      %v320 = vtanh.pop %v256
      %v321 = vtanh.pop %v257
      %v322 = vtanh.pop %v258
      %v323 = vtanh.pop %v259
      %v324 = vtanh.pop %v260
      %v325 = vtanh.pop %v261
      %v326 = vtanh.pop %v262
      %v327 = vtanh.pop %v263
      %v328 = vtanh.pop %v264
      %v329 = vtanh.pop %v265
      %v330 = vtanh.pop %v266
      %v331 = vtanh.pop %v267
      %v332 = vtanh.pop %v268
      %v333 = vtanh.pop %v269
      %v334 = vtanh.pop %v270
      %v335 = vtanh.pop %v271
      %v336 = vtanh.pop %v272
      %v337 = vtanh.pop %v273
      %v338 = vtanh.pop %v274
      %v339 = vtanh.pop %v275
      %v340 = vtanh.pop %v276
      %v341 = vtanh.pop %v277
      %v342 = vtanh.pop %v278
      %v343 = vtanh.pop %v279
      %v344 = vtanh.pop %v280
      %v345 = vtanh.pop %v281
      %v346 = vtanh.pop %v282
      %v347 = vtanh.pop %v283
      %v348 = vtanh.pop %v284
      %v349 = vtanh.pop %v285
      %v350 = vtanh.pop %v286
      %v351 = vtanh.pop %v287
      %v352 = vtanh.pop %v288
      %v353 = vtanh.pop %v289
      %v354 = vtanh.pop %v290
      %v355 = vtanh.pop %v291
      %v356 = vtanh.pop %v292
      %v357 = vtanh.pop %v293
      %v358 = vtanh.pop %v294
      %v359 = vtanh.pop %v295
      %v360 = vtanh.pop %v296
      %v361 = vxor.u32 %v233, 2147483648
      %v362 = vxor.u32 %v234, 2147483648
      %v363 = vxor.u32 %v235, 2147483648
      %v364 = vxor.u32 %v236, 2147483648
      %v365 = vxor.u32 %v237, 2147483648
      %v366 = vxor.u32 %v238, 2147483648
      %v367 = vxor.u32 %v239, 2147483648
      %v368 = vxor.u32 %v240, 2147483648
      %v369 = vxor.u32 %v241, 2147483648
      %v370 = vxor.u32 %v242, 2147483648
      %v371 = vxor.u32 %v243, 2147483648
      %v372 = vxor.u32 %v244, 2147483648
      %v373 = vxor.u32 %v245, 2147483648
      %v374 = vxor.u32 %v246, 2147483648
      %v375 = vxor.u32 %v247, 2147483648
      %v376 = vxor.u32 %v248, 2147483648
      %v377 = vxor.u32 %v249, 2147483648
      %v378 = vxor.u32 %v250, 2147483648
      %v379 = vxor.u32 %v251, 2147483648
      %v380 = vxor.u32 %v252, 2147483648
      %v381 = vxor.u32 %v253, 2147483648
      %v382 = vxor.u32 %v254, 2147483648
      %v383 = vxor.u32 %v255, 2147483648
      %v384 = vxor.u32 %v256, 2147483648
      %v385 = vxor.u32 %v257, 2147483648
      %v386 = vxor.u32 %v258, 2147483648
      %v387 = vxor.u32 %v259, 2147483648
      %v388 = vxor.u32 %v260, 2147483648
      %v389 = vxor.u32 %v261, 2147483648
      %v390 = vxor.u32 %v262, 2147483648
      %v391 = vxor.u32 %v263, 2147483648
      %v392 = vxor.u32 %v264, 2147483648
      %v393 = vxor.u32 %v265, 2147483648
      %v394 = vxor.u32 %v266, 2147483648
      %v395 = vxor.u32 %v267, 2147483648
      %v396 = vxor.u32 %v268, 2147483648
      %v397 = vxor.u32 %v269, 2147483648
      %v398 = vxor.u32 %v270, 2147483648
      %v399 = vxor.u32 %v271, 2147483648
      %v400 = vxor.u32 %v272, 2147483648
      %v401 = vxor.u32 %v273, 2147483648
      %v402 = vxor.u32 %v274, 2147483648
      %v403 = vxor.u32 %v275, 2147483648
      %v404 = vxor.u32 %v276, 2147483648
      %v405 = vxor.u32 %v277, 2147483648
      %v406 = vxor.u32 %v278, 2147483648
      %v407 = vxor.u32 %v279, 2147483648
      %v408 = vxor.u32 %v280, 2147483648
      %v409 = vxor.u32 %v281, 2147483648
      %v410 = vxor.u32 %v282, 2147483648
      %v411 = vxor.u32 %v283, 2147483648
      %v412 = vxor.u32 %v284, 2147483648
      %v413 = vxor.u32 %v285, 2147483648
      %v414 = vxor.u32 %v286, 2147483648
      %v415 = vxor.u32 %v287, 2147483648
      %v416 = vxor.u32 %v288, 2147483648
      %v417 = vxor.u32 %v289, 2147483648
      %v418 = vxor.u32 %v290, 2147483648
      %v419 = vxor.u32 %v291, 2147483648
      %v420 = vxor.u32 %v292, 2147483648
      %v421 = vxor.u32 %v293, 2147483648
      %v422 = vxor.u32 %v294, 2147483648
      %v423 = vxor.u32 %v295, 2147483648
      %v424 = vxor.u32 %v296, 2147483648
      %v425 = vmul.f32 %v361, 1.442695
      %v426 = vpow.pop %v425
      %v427 = vmul.f32 %v362, 1.442695
      %v428 = vpow.pop %v427
      %v429 = vmul.f32 %v363, 1.442695
      %v430 = vpow.pop %v429
      %v431 = vmul.f32 %v364, 1.442695
      %v432 = vpow.pop %v431
      %v433 = vmul.f32 %v365, 1.442695
      %v434 = vpow.pop %v433
      %v435 = vmul.f32 %v366, 1.442695
      %v436 = vpow.pop %v435
      %v437 = vmul.f32 %v367, 1.442695
      %v438 = vpow.pop %v437
      %v439 = vmul.f32 %v368, 1.442695
      %v440 = vpow.pop %v439
      %v441 = vmul.f32 %v369, 1.442695
      %v442 = vpow.pop %v441
      %v443 = vmul.f32 %v370, 1.442695
      %v444 = vpow.pop %v443
      %v445 = vmul.f32 %v371, 1.442695
      %v446 = vpow.pop %v445
      %v447 = vmul.f32 %v372, 1.442695
      %v448 = vpow.pop %v447
      %v449 = vmul.f32 %v373, 1.442695
      %v450 = vpow.pop %v449
      %v451 = vmul.f32 %v374, 1.442695
      %v452 = vpow.pop %v451
      %v453 = vmul.f32 %v375, 1.442695
      %v454 = vpow.pop %v453
      %v455 = vmul.f32 %v376, 1.442695
      %v456 = vpow.pop %v455
      %v457 = vmul.f32 %v377, 1.442695
      %v458 = vpow.pop %v457
      %v459 = vmul.f32 %v378, 1.442695
      %v460 = vpow.pop %v459
      %v461 = vmul.f32 %v379, 1.442695
      %v462 = vpow.pop %v461
      %v463 = vmul.f32 %v380, 1.442695
      %v464 = vpow.pop %v463
      %v465 = vmul.f32 %v381, 1.442695
      %v466 = vpow.pop %v465
      %v467 = vmul.f32 %v382, 1.442695
      %v468 = vpow.pop %v467
      %v469 = vmul.f32 %v383, 1.442695
      %v470 = vpow.pop %v469
      %v471 = vmul.f32 %v384, 1.442695
      %v472 = vpow.pop %v471
      %v473 = vmul.f32 %v385, 1.442695
      %v474 = vpow.pop %v473
      %v475 = vmul.f32 %v386, 1.442695
      %v476 = vpow.pop %v475
      %v477 = vmul.f32 %v387, 1.442695
      %v478 = vpow.pop %v477
      %v479 = vmul.f32 %v388, 1.442695
      %v480 = vpow.pop %v479
      %v481 = vmul.f32 %v389, 1.442695
      %v482 = vpow.pop %v481
      %v483 = vmul.f32 %v390, 1.442695
      %v484 = vpow.pop %v483
      %v485 = vmul.f32 %v391, 1.442695
      %v486 = vpow.pop %v485
      %v487 = vmul.f32 %v392, 1.442695
      %v488 = vpow.pop %v487
      %v489 = vmul.f32 %v393, 1.442695
      %v490 = vpow.pop %v489
      %v491 = vmul.f32 %v394, 1.442695
      %v492 = vpow.pop %v491
      %v493 = vmul.f32 %v395, 1.442695
      %v494 = vpow.pop %v493
      %v495 = vmul.f32 %v396, 1.442695
      %v496 = vpow.pop %v495
      %v497 = vmul.f32 %v397, 1.442695
      %v498 = vpow.pop %v497
      %v499 = vmul.f32 %v398, 1.442695
      %v500 = vpow.pop %v499
      %v501 = vmul.f32 %v399, 1.442695
      %v502 = vpow.pop %v501
      %v503 = vmul.f32 %v400, 1.442695
      %v504 = vpow.pop %v503
      %v505 = vmul.f32 %v401, 1.442695
      %v506 = vpow.pop %v505
      %v507 = vmul.f32 %v402, 1.442695
      %v508 = vpow.pop %v507
      %v509 = vmul.f32 %v403, 1.442695
      %v510 = vpow.pop %v509
      %v511 = vmul.f32 %v404, 1.442695
      %v512 = vpow.pop %v511
      %v513 = vmul.f32 %v405, 1.442695
      %v514 = vpow.pop %v513
      %v515 = vmul.f32 %v406, 1.442695
      %v516 = vpow.pop %v515
      %v517 = vmul.f32 %v407, 1.442695
      %v518 = vpow.pop %v517
      %v519 = vmul.f32 %v408, 1.442695
      %v520 = vpow.pop %v519
      %v521 = vmul.f32 %v409, 1.442695
      %v522 = vpow.pop %v521
      %v523 = vmul.f32 %v410, 1.442695
      %v524 = vpow.pop %v523
      %v525 = vmul.f32 %v411, 1.442695
      %v526 = vpow.pop %v525
      %v527 = vmul.f32 %v412, 1.442695
      %v528 = vpow.pop %v527
      %v529 = vmul.f32 %v413, 1.442695
      %v530 = vpow.pop %v529
      %v531 = vmul.f32 %v414, 1.442695
      %v532 = vpow.pop %v531
      %v533 = vmul.f32 %v415, 1.442695
      %v534 = vpow.pop %v533
      %v535 = vmul.f32 %v416, 1.442695
      %v536 = vpow.pop %v535
      %v537 = vmul.f32 %v417, 1.442695
      %v538 = vpow.pop %v537
      %v539 = vmul.f32 %v418, 1.442695
      %v540 = vpow.pop %v539
      %v541 = vmul.f32 %v419, 1.442695
      %v542 = vpow.pop %v541
      %v543 = vmul.f32 %v420, 1.442695
      %v544 = vpow.pop %v543
      %v545 = vmul.f32 %v421, 1.442695
      %v546 = vpow.pop %v545
      %v547 = vmul.f32 %v422, 1.442695
      %v548 = vpow.pop %v547
      %v549 = vmul.f32 %v423, 1.442695
      %v550 = vpow.pop %v549
      %v551 = vmul.f32 %v424, 1.442695
      %v552 = vpow.pop %v551
      %v553 = vadd.f32 %v426, 1.0
      %v554 = vadd.f32 %v428, 1.0
      %v555 = vadd.f32 %v430, 1.0
      %v556 = vadd.f32 %v432, 1.0
      %v557 = vadd.f32 %v434, 1.0
      %v558 = vadd.f32 %v436, 1.0
      %v559 = vadd.f32 %v438, 1.0
      %v560 = vadd.f32 %v440, 1.0
      %v561 = vadd.f32 %v442, 1.0
      %v562 = vadd.f32 %v444, 1.0
      %v563 = vadd.f32 %v446, 1.0
      %v564 = vadd.f32 %v448, 1.0
      %v565 = vadd.f32 %v450, 1.0
      %v566 = vadd.f32 %v452, 1.0
      %v567 = vadd.f32 %v454, 1.0
      %v568 = vadd.f32 %v456, 1.0
      %v569 = vadd.f32 %v458, 1.0
      %v570 = vadd.f32 %v460, 1.0
      %v571 = vadd.f32 %v462, 1.0
      %v572 = vadd.f32 %v464, 1.0
      %v573 = vadd.f32 %v466, 1.0
      %v574 = vadd.f32 %v468, 1.0
      %v575 = vadd.f32 %v470, 1.0
      %v576 = vadd.f32 %v472, 1.0
      %v577 = vadd.f32 %v474, 1.0
      %v578 = vadd.f32 %v476, 1.0
      %v579 = vadd.f32 %v478, 1.0
      %v580 = vadd.f32 %v480, 1.0
      %v581 = vadd.f32 %v482, 1.0
      %v582 = vadd.f32 %v484, 1.0
      %v583 = vadd.f32 %v486, 1.0
      %v584 = vadd.f32 %v488, 1.0
      %v585 = vadd.f32 %v490, 1.0
      %v586 = vadd.f32 %v492, 1.0
      %v587 = vadd.f32 %v494, 1.0
      %v588 = vadd.f32 %v496, 1.0
      %v589 = vadd.f32 %v498, 1.0
      %v590 = vadd.f32 %v500, 1.0
      %v591 = vadd.f32 %v502, 1.0
      %v592 = vadd.f32 %v504, 1.0
      %v593 = vadd.f32 %v506, 1.0
      %v594 = vadd.f32 %v508, 1.0
      %v595 = vadd.f32 %v510, 1.0
      %v596 = vadd.f32 %v512, 1.0
      %v597 = vadd.f32 %v514, 1.0
      %v598 = vadd.f32 %v516, 1.0
      %v599 = vadd.f32 %v518, 1.0
      %v600 = vadd.f32 %v520, 1.0
      %v601 = vadd.f32 %v522, 1.0
      %v602 = vadd.f32 %v524, 1.0
      %v603 = vadd.f32 %v526, 1.0
      %v604 = vadd.f32 %v528, 1.0
      %v605 = vadd.f32 %v530, 1.0
      %v606 = vadd.f32 %v532, 1.0
      %v607 = vadd.f32 %v534, 1.0
      %v608 = vadd.f32 %v536, 1.0
      %v609 = vadd.f32 %v538, 1.0
      %v610 = vadd.f32 %v540, 1.0
      %v611 = vadd.f32 %v542, 1.0
      %v612 = vadd.f32 %v544, 1.0
      %v613 = vadd.f32 %v546, 1.0
      %v614 = vadd.f32 %v548, 1.0
      %v615 = vadd.f32 %v550, 1.0
      %v616 = vadd.f32 %v552, 1.0
      %v617 = vrcp.pop %v553
      %v618 = vmul.f32 1.0, %v617
      %v619 = vrcp.pop %v554
      %v620 = vmul.f32 1.0, %v619
      %v621 = vrcp.pop %v555
      %v622 = vmul.f32 1.0, %v621
      %v623 = vrcp.pop %v556
      %v624 = vmul.f32 1.0, %v623
      %v625 = vrcp.pop %v557
      %v626 = vmul.f32 1.0, %v625
      %v627 = vrcp.pop %v558
      %v628 = vmul.f32 1.0, %v627
      %v629 = vrcp.pop %v559
      %v630 = vmul.f32 1.0, %v629
      %v631 = vrcp.pop %v560
      %v632 = vmul.f32 1.0, %v631
      %v633 = vrcp.pop %v561
      %v634 = vmul.f32 1.0, %v633
      %v635 = vrcp.pop %v562
      %v636 = vmul.f32 1.0, %v635
      %v637 = vrcp.pop %v563
      %v638 = vmul.f32 1.0, %v637
      %v639 = vrcp.pop %v564
      %v640 = vmul.f32 1.0, %v639
      %v641 = vrcp.pop %v565
      %v642 = vmul.f32 1.0, %v641
      %v643 = vrcp.pop %v566
      %v644 = vmul.f32 1.0, %v643
      %v645 = vrcp.pop %v567
      %v646 = vmul.f32 1.0, %v645
      %v647 = vrcp.pop %v568
      %v648 = vmul.f32 1.0, %v647
      %v649 = vrcp.pop %v569
      %v650 = vmul.f32 1.0, %v649
      %v651 = vrcp.pop %v570
      %v652 = vmul.f32 1.0, %v651
      %v653 = vrcp.pop %v571
      %v654 = vmul.f32 1.0, %v653
      %v655 = vrcp.pop %v572
      %v656 = vmul.f32 1.0, %v655
      %v657 = vrcp.pop %v573
      %v658 = vmul.f32 1.0, %v657
      %v659 = vrcp.pop %v574
      %v660 = vmul.f32 1.0, %v659
      %v661 = vrcp.pop %v575
      %v662 = vmul.f32 1.0, %v661
      %v663 = vrcp.pop %v576
      %v664 = vmul.f32 1.0, %v663
      %v665 = vrcp.pop %v577
      %v666 = vmul.f32 1.0, %v665
      %v667 = vrcp.pop %v578
      %v668 = vmul.f32 1.0, %v667
      %v669 = vrcp.pop %v579
      %v670 = vmul.f32 1.0, %v669
      %v671 = vrcp.pop %v580
      %v672 = vmul.f32 1.0, %v671
      %v673 = vrcp.pop %v581
      %v674 = vmul.f32 1.0, %v673
      %v675 = vrcp.pop %v582
      %v676 = vmul.f32 1.0, %v675
      %v677 = vrcp.pop %v583
      %v678 = vmul.f32 1.0, %v677
      %v679 = vrcp.pop %v584
      %v680 = vmul.f32 1.0, %v679
      %v681 = vrcp.pop %v585
      %v682 = vmul.f32 1.0, %v681
      %v683 = vrcp.pop %v586
      %v684 = vmul.f32 1.0, %v683
      %v685 = vrcp.pop %v587
      %v686 = vmul.f32 1.0, %v685
      %v687 = vrcp.pop %v588
      %v688 = vmul.f32 1.0, %v687
      %v689 = vrcp.pop %v589
      %v690 = vmul.f32 1.0, %v689
      %v691 = vrcp.pop %v590
      %v692 = vmul.f32 1.0, %v691
      %v693 = vrcp.pop %v591
      %v694 = vmul.f32 1.0, %v693
      %v695 = vrcp.pop %v592
      %v696 = vmul.f32 1.0, %v695
      %v697 = vrcp.pop %v593
      %v698 = vmul.f32 1.0, %v697
      %v699 = vrcp.pop %v594
      %v700 = vmul.f32 1.0, %v699
      %v701 = vrcp.pop %v595
      %v702 = vmul.f32 1.0, %v701
      %v703 = vrcp.pop %v596
      %v704 = vmul.f32 1.0, %v703
      %v705 = vrcp.pop %v597
      %v706 = vmul.f32 1.0, %v705
      %v707 = vrcp.pop %v598
      %v708 = vmul.f32 1.0, %v707
      %v709 = vrcp.pop %v599
      %v710 = vmul.f32 1.0, %v709
      %v711 = vrcp.pop %v600
      %v712 = vmul.f32 1.0, %v711
      %v713 = vrcp.pop %v601
      %v714 = vmul.f32 1.0, %v713
      %v715 = vrcp.pop %v602
      %v716 = vmul.f32 1.0, %v715
      %v717 = vrcp.pop %v603
      %v718 = vmul.f32 1.0, %v717
      %v719 = vrcp.pop %v604
      %v720 = vmul.f32 1.0, %v719
      %v721 = vrcp.pop %v605
      %v722 = vmul.f32 1.0, %v721
      %v723 = vrcp.pop %v606
      %v724 = vmul.f32 1.0, %v723
      %v725 = vrcp.pop %v607
      %v726 = vmul.f32 1.0, %v725
      %v727 = vrcp.pop %v608
      %v728 = vmul.f32 1.0, %v727
      %v729 = vrcp.pop %v609
      %v730 = vmul.f32 1.0, %v729
      %v731 = vrcp.pop %v610
      %v732 = vmul.f32 1.0, %v731
      %v733 = vrcp.pop %v611
      %v734 = vmul.f32 1.0, %v733
      %v735 = vrcp.pop %v612
      %v736 = vmul.f32 1.0, %v735
      %v737 = vrcp.pop %v613
      %v738 = vmul.f32 1.0, %v737
      %v739 = vrcp.pop %v614
      %v740 = vmul.f32 1.0, %v739
      %v741 = vrcp.pop %v615
      %v742 = vmul.f32 1.0, %v741
      %v743 = vrcp.pop %v616
      %v744 = vmul.f32 1.0, %v743
      %v745 = vmax.f32 %v233, 0.0
      %v746 = vmax.f32 %v234, 0.0
      %v747 = vmax.f32 %v235, 0.0
      %v748 = vmax.f32 %v236, 0.0
      %v749 = vmax.f32 %v237, 0.0
      %v750 = vmax.f32 %v238, 0.0
      %v751 = vmax.f32 %v239, 0.0
      %v752 = vmax.f32 %v240, 0.0
      %v753 = vmax.f32 %v241, 0.0
      %v754 = vmax.f32 %v242, 0.0
      %v755 = vmax.f32 %v243, 0.0
      %v756 = vmax.f32 %v244, 0.0
      %v757 = vmax.f32 %v245, 0.0
      %v758 = vmax.f32 %v246, 0.0
      %v759 = vmax.f32 %v247, 0.0
      %v760 = vmax.f32 %v248, 0.0
      %v761 = vmax.f32 %v249, 0.0
      %v762 = vmax.f32 %v250, 0.0
      %v763 = vmax.f32 %v251, 0.0
      %v764 = vmax.f32 %v252, 0.0
      %v765 = vmax.f32 %v253, 0.0
      %v766 = vmax.f32 %v254, 0.0
      %v767 = vmax.f32 %v255, 0.0
      %v768 = vmax.f32 %v256, 0.0
      %v769 = vmax.f32 %v257, 0.0
      %v770 = vmax.f32 %v258, 0.0
      %v771 = vmax.f32 %v259, 0.0
      %v772 = vmax.f32 %v260, 0.0
      %v773 = vmax.f32 %v261, 0.0
      %v774 = vmax.f32 %v262, 0.0
      %v775 = vmax.f32 %v263, 0.0
      %v776 = vmax.f32 %v264, 0.0
      %v777 = vmax.f32 %v265, 0.0
      %v778 = vmax.f32 %v266, 0.0
      %v779 = vmax.f32 %v267, 0.0
      %v780 = vmax.f32 %v268, 0.0
      %v781 = vmax.f32 %v269, 0.0
      %v782 = vmax.f32 %v270, 0.0
      %v783 = vmax.f32 %v271, 0.0
      %v784 = vmax.f32 %v272, 0.0
      %v785 = vmax.f32 %v273, 0.0
      %v786 = vmax.f32 %v274, 0.0
      %v787 = vmax.f32 %v275, 0.0
      %v788 = vmax.f32 %v276, 0.0
      %v789 = vmax.f32 %v277, 0.0
      %v790 = vmax.f32 %v278, 0.0
      %v791 = vmax.f32 %v279, 0.0
      %v792 = vmax.f32 %v280, 0.0
      %v793 = vmax.f32 %v281, 0.0
      %v794 = vmax.f32 %v282, 0.0
      %v795 = vmax.f32 %v283, 0.0
      %v796 = vmax.f32 %v284, 0.0
      %v797 = vmax.f32 %v285, 0.0
      %v798 = vmax.f32 %v286, 0.0
      %v799 = vmax.f32 %v287, 0.0
      %v800 = vmax.f32 %v288, 0.0
      %v801 = vmax.f32 %v289, 0.0
      %v802 = vmax.f32 %v290, 0.0
      %v803 = vmax.f32 %v291, 0.0
      %v804 = vmax.f32 %v292, 0.0
      %v805 = vmax.f32 %v293, 0.0
      %v806 = vmax.f32 %v294, 0.0
      %v807 = vmax.f32 %v295, 0.0
      %v808 = vmax.f32 %v296, 0.0
      %vm809 = vcmp.ge.f32.partialorder %v233, 0.0
      %vm810 = vcmp.ge.f32.partialorder %v234, 0.0
      %vm811 = vcmp.ge.f32.partialorder %v235, 0.0
      %vm812 = vcmp.ge.f32.partialorder %v236, 0.0
      %vm813 = vcmp.ge.f32.partialorder %v237, 0.0
      %vm814 = vcmp.ge.f32.partialorder %v238, 0.0
      %vm815 = vcmp.ge.f32.partialorder %v239, 0.0
      %vm816 = vcmp.ge.f32.partialorder %v240, 0.0
      %vm817 = vcmp.ge.f32.partialorder %v241, 0.0
      %vm818 = vcmp.ge.f32.partialorder %v242, 0.0
      %vm819 = vcmp.ge.f32.partialorder %v243, 0.0
      %vm820 = vcmp.ge.f32.partialorder %v244, 0.0
      %vm821 = vcmp.ge.f32.partialorder %v245, 0.0
      %vm822 = vcmp.ge.f32.partialorder %v246, 0.0
      %vm823 = vcmp.ge.f32.partialorder %v247, 0.0
      %vm824 = vcmp.ge.f32.partialorder %v248, 0.0
      %vm825 = vcmp.ge.f32.partialorder %v249, 0.0
      %vm826 = vcmp.ge.f32.partialorder %v250, 0.0
      %vm827 = vcmp.ge.f32.partialorder %v251, 0.0
      %vm828 = vcmp.ge.f32.partialorder %v252, 0.0
      %vm829 = vcmp.ge.f32.partialorder %v253, 0.0
      %vm830 = vcmp.ge.f32.partialorder %v254, 0.0
      %vm831 = vcmp.ge.f32.partialorder %v255, 0.0
      %vm832 = vcmp.ge.f32.partialorder %v256, 0.0
      %vm833 = vcmp.ge.f32.partialorder %v257, 0.0
      %vm834 = vcmp.ge.f32.partialorder %v258, 0.0
      %vm835 = vcmp.ge.f32.partialorder %v259, 0.0
      %vm836 = vcmp.ge.f32.partialorder %v260, 0.0
      %vm837 = vcmp.ge.f32.partialorder %v261, 0.0
      %vm838 = vcmp.ge.f32.partialorder %v262, 0.0
      %vm839 = vcmp.ge.f32.partialorder %v263, 0.0
      %vm840 = vcmp.ge.f32.partialorder %v264, 0.0
      %vm841 = vcmp.ge.f32.partialorder %v265, 0.0
      %vm842 = vcmp.ge.f32.partialorder %v266, 0.0
      %vm843 = vcmp.ge.f32.partialorder %v267, 0.0
      %vm844 = vcmp.ge.f32.partialorder %v268, 0.0
      %vm845 = vcmp.ge.f32.partialorder %v269, 0.0
      %vm846 = vcmp.ge.f32.partialorder %v270, 0.0
      %vm847 = vcmp.ge.f32.partialorder %v271, 0.0
      %vm848 = vcmp.ge.f32.partialorder %v272, 0.0
      %vm849 = vcmp.ge.f32.partialorder %v273, 0.0
      %vm850 = vcmp.ge.f32.partialorder %v274, 0.0
      %vm851 = vcmp.ge.f32.partialorder %v275, 0.0
      %vm852 = vcmp.ge.f32.partialorder %v276, 0.0
      %vm853 = vcmp.ge.f32.partialorder %v277, 0.0
      %vm854 = vcmp.ge.f32.partialorder %v278, 0.0
      %vm855 = vcmp.ge.f32.partialorder %v279, 0.0
      %vm856 = vcmp.ge.f32.partialorder %v280, 0.0
      %vm857 = vcmp.ge.f32.partialorder %v281, 0.0
      %vm858 = vcmp.ge.f32.partialorder %v282, 0.0
      %vm859 = vcmp.ge.f32.partialorder %v283, 0.0
      %vm860 = vcmp.ge.f32.partialorder %v284, 0.0
      %vm861 = vcmp.ge.f32.partialorder %v285, 0.0
      %vm862 = vcmp.ge.f32.partialorder %v286, 0.0
      %vm863 = vcmp.ge.f32.partialorder %v287, 0.0
      %vm864 = vcmp.ge.f32.partialorder %v288, 0.0
      %vm865 = vcmp.ge.f32.partialorder %v289, 0.0
      %vm866 = vcmp.ge.f32.partialorder %v290, 0.0
      %vm867 = vcmp.ge.f32.partialorder %v291, 0.0
      %vm868 = vcmp.ge.f32.partialorder %v292, 0.0
      %vm869 = vcmp.ge.f32.partialorder %v293, 0.0
      %vm870 = vcmp.ge.f32.partialorder %v294, 0.0
      %vm871 = vcmp.ge.f32.partialorder %v295, 0.0
      %vm872 = vcmp.ge.f32.partialorder %v296, 0.0
      %v873 = vmul.f32 %v233, 0.01
      %v874 = vmul.f32 %v234, 0.01
      %v875 = vmul.f32 %v235, 0.01
      %v876 = vmul.f32 %v236, 0.01
      %v877 = vmul.f32 %v237, 0.01
      %v878 = vmul.f32 %v238, 0.01
      %v879 = vmul.f32 %v239, 0.01
      %v880 = vmul.f32 %v240, 0.01
      %v881 = vmul.f32 %v241, 0.01
      %v882 = vmul.f32 %v242, 0.01
      %v883 = vmul.f32 %v243, 0.01
      %v884 = vmul.f32 %v244, 0.01
      %v885 = vmul.f32 %v245, 0.01
      %v886 = vmul.f32 %v246, 0.01
      %v887 = vmul.f32 %v247, 0.01
      %v888 = vmul.f32 %v248, 0.01
      %v889 = vmul.f32 %v249, 0.01
      %v890 = vmul.f32 %v250, 0.01
      %v891 = vmul.f32 %v251, 0.01
      %v892 = vmul.f32 %v252, 0.01
      %v893 = vmul.f32 %v253, 0.01
      %v894 = vmul.f32 %v254, 0.01
      %v895 = vmul.f32 %v255, 0.01
      %v896 = vmul.f32 %v256, 0.01
      %v897 = vmul.f32 %v257, 0.01
      %v898 = vmul.f32 %v258, 0.01
      %v899 = vmul.f32 %v259, 0.01
      %v900 = vmul.f32 %v260, 0.01
      %v901 = vmul.f32 %v261, 0.01
      %v902 = vmul.f32 %v262, 0.01
      %v903 = vmul.f32 %v263, 0.01
      %v904 = vmul.f32 %v264, 0.01
      %v905 = vmul.f32 %v265, 0.01
      %v906 = vmul.f32 %v266, 0.01
      %v907 = vmul.f32 %v267, 0.01
      %v908 = vmul.f32 %v268, 0.01
      %v909 = vmul.f32 %v269, 0.01
      %v910 = vmul.f32 %v270, 0.01
      %v911 = vmul.f32 %v271, 0.01
      %v912 = vmul.f32 %v272, 0.01
      %v913 = vmul.f32 %v273, 0.01
      %v914 = vmul.f32 %v274, 0.01
      %v915 = vmul.f32 %v275, 0.01
      %v916 = vmul.f32 %v276, 0.01
      %v917 = vmul.f32 %v277, 0.01
      %v918 = vmul.f32 %v278, 0.01
      %v919 = vmul.f32 %v279, 0.01
      %v920 = vmul.f32 %v280, 0.01
      %v921 = vmul.f32 %v281, 0.01
      %v922 = vmul.f32 %v282, 0.01
      %v923 = vmul.f32 %v283, 0.01
      %v924 = vmul.f32 %v284, 0.01
      %v925 = vmul.f32 %v285, 0.01
      %v926 = vmul.f32 %v286, 0.01
      %v927 = vmul.f32 %v287, 0.01
      %v928 = vmul.f32 %v288, 0.01
      %v929 = vmul.f32 %v289, 0.01
      %v930 = vmul.f32 %v290, 0.01
      %v931 = vmul.f32 %v291, 0.01
      %v932 = vmul.f32 %v292, 0.01
      %v933 = vmul.f32 %v293, 0.01
      %v934 = vmul.f32 %v294, 0.01
      %v935 = vmul.f32 %v295, 0.01
      %v936 = vmul.f32 %v296, 0.01
      %v937 = vsel %vm809, %v233, %v873
      %v938 = vsel %vm810, %v234, %v874
      %v939 = vsel %vm811, %v235, %v875
      %v940 = vsel %vm812, %v236, %v876
      %v941 = vsel %vm813, %v237, %v877
      %v942 = vsel %vm814, %v238, %v878
      %v943 = vsel %vm815, %v239, %v879
      %v944 = vsel %vm816, %v240, %v880
      %v945 = vsel %vm817, %v241, %v881
      %v946 = vsel %vm818, %v242, %v882
      %v947 = vsel %vm819, %v243, %v883
      %v948 = vsel %vm820, %v244, %v884
      %v949 = vsel %vm821, %v245, %v885
      %v950 = vsel %vm822, %v246, %v886
      %v951 = vsel %vm823, %v247, %v887
      %v952 = vsel %vm824, %v248, %v888
      %v953 = vsel %vm825, %v249, %v889
      %v954 = vsel %vm826, %v250, %v890
      %v955 = vsel %vm827, %v251, %v891
      %v956 = vsel %vm828, %v252, %v892
      %v957 = vsel %vm829, %v253, %v893
      %v958 = vsel %vm830, %v254, %v894
      %v959 = vsel %vm831, %v255, %v895
      %v960 = vsel %vm832, %v256, %v896
      %v961 = vsel %vm833, %v257, %v897
      %v962 = vsel %vm834, %v258, %v898
      %v963 = vsel %vm835, %v259, %v899
      %v964 = vsel %vm836, %v260, %v900
      %v965 = vsel %vm837, %v261, %v901
      %v966 = vsel %vm838, %v262, %v902
      %v967 = vsel %vm839, %v263, %v903
      %v968 = vsel %vm840, %v264, %v904
      %v969 = vsel %vm841, %v265, %v905
      %v970 = vsel %vm842, %v266, %v906
      %v971 = vsel %vm843, %v267, %v907
      %v972 = vsel %vm844, %v268, %v908
      %v973 = vsel %vm845, %v269, %v909
      %v974 = vsel %vm846, %v270, %v910
      %v975 = vsel %vm847, %v271, %v911
      %v976 = vsel %vm848, %v272, %v912
      %v977 = vsel %vm849, %v273, %v913
      %v978 = vsel %vm850, %v274, %v914
      %v979 = vsel %vm851, %v275, %v915
      %v980 = vsel %vm852, %v276, %v916
      %v981 = vsel %vm853, %v277, %v917
      %v982 = vsel %vm854, %v278, %v918
      %v983 = vsel %vm855, %v279, %v919
      %v984 = vsel %vm856, %v280, %v920
      %v985 = vsel %vm857, %v281, %v921
      %v986 = vsel %vm858, %v282, %v922
      %v987 = vsel %vm859, %v283, %v923
      %v988 = vsel %vm860, %v284, %v924
      %v989 = vsel %vm861, %v285, %v925
      %v990 = vsel %vm862, %v286, %v926
      %v991 = vsel %vm863, %v287, %v927
      %v992 = vsel %vm864, %v288, %v928
      %v993 = vsel %vm865, %v289, %v929
      %v994 = vsel %vm866, %v290, %v930
      %v995 = vsel %vm867, %v291, %v931
      %v996 = vsel %vm868, %v292, %v932
      %v997 = vsel %vm869, %v293, %v933
      %v998 = vsel %vm870, %v294, %v934
      %v999 = vsel %vm871, %v295, %v935
      %v1000 = vsel %vm872, %v296, %v936
      %vm1001 = vcmask 195712
      %v1002 = vsel %vm1001, %v233, -inf
      %1003 = vmax.xlane.f32.xlu0 %v1002
      %v1004 = vpop.xlane.xlu0 %1003
      %v1005 = vsel %vm1001, %v234, -inf
      %1006 = vmax.xlane.f32.xlu0 %v1005
      %v1007 = vpop.xlane.xlu0 %1006
      %v1008 = vsel %vm1001, %v235, -inf
      %1009 = vmax.xlane.f32.xlu0 %v1008
      %v1010 = vpop.xlane.xlu0 %1009
      %v1011 = vsel %vm1001, %v236, -inf
      %1012 = vmax.xlane.f32.xlu0 %v1011
      %v1013 = vpop.xlane.xlu0 %1012
      %v1014 = vsel %vm1001, %v237, -inf
      %1015 = vmax.xlane.f32.xlu0 %v1014
      %v1016 = vpop.xlane.xlu0 %1015
      %v1017 = vsel %vm1001, %v238, -inf
      %1018 = vmax.xlane.f32.xlu0 %v1017
      %v1019 = vpop.xlane.xlu0 %1018
      %v1020 = vsel %vm1001, %v239, -inf
      %1021 = vmax.xlane.f32.xlu0 %v1020
      %v1022 = vpop.xlane.xlu0 %1021
      %v1023 = vsel %vm1001, %v240, -inf
      %1024 = vmax.xlane.f32.xlu0 %v1023
      %v1025 = vpop.xlane.xlu0 %1024
      %v1026 = vsel %vm1001, %v241, -inf
      %1027 = vmax.xlane.f32.xlu0 %v1026
      %v1028 = vpop.xlane.xlu0 %1027
      %v1029 = vsel %vm1001, %v242, -inf
      %1030 = vmax.xlane.f32.xlu0 %v1029
      %v1031 = vpop.xlane.xlu0 %1030
      %v1032 = vsel %vm1001, %v243, -inf
      %1033 = vmax.xlane.f32.xlu0 %v1032
      %v1034 = vpop.xlane.xlu0 %1033
      %v1035 = vsel %vm1001, %v244, -inf
      %1036 = vmax.xlane.f32.xlu0 %v1035
      %v1037 = vpop.xlane.xlu0 %1036
      %v1038 = vsel %vm1001, %v245, -inf
      %1039 = vmax.xlane.f32.xlu0 %v1038
      %v1040 = vpop.xlane.xlu0 %1039
      %v1041 = vsel %vm1001, %v246, -inf
      %1042 = vmax.xlane.f32.xlu0 %v1041
      %v1043 = vpop.xlane.xlu0 %1042
      %v1044 = vsel %vm1001, %v247, -inf
      %1045 = vmax.xlane.f32.xlu0 %v1044
      %v1046 = vpop.xlane.xlu0 %1045
      %v1047 = vsel %vm1001, %v248, -inf
      %1048 = vmax.xlane.f32.xlu0 %v1047
      %v1049 = vpop.xlane.xlu0 %1048
      %v1050 = vsel %vm1001, %v249, -inf
      %1051 = vmax.xlane.f32.xlu0 %v1050
      %v1052 = vpop.xlane.xlu0 %1051
      %v1053 = vsel %vm1001, %v250, -inf
      %1054 = vmax.xlane.f32.xlu0 %v1053
      %v1055 = vpop.xlane.xlu0 %1054
      %v1056 = vsel %vm1001, %v251, -inf
      %1057 = vmax.xlane.f32.xlu0 %v1056
      %v1058 = vpop.xlane.xlu0 %1057
      %v1059 = vsel %vm1001, %v252, -inf
      %1060 = vmax.xlane.f32.xlu0 %v1059
      %v1061 = vpop.xlane.xlu0 %1060
      %v1062 = vsel %vm1001, %v253, -inf
      %1063 = vmax.xlane.f32.xlu0 %v1062
      %v1064 = vpop.xlane.xlu0 %1063
      %v1065 = vsel %vm1001, %v254, -inf
      %1066 = vmax.xlane.f32.xlu0 %v1065
      %v1067 = vpop.xlane.xlu0 %1066
      %v1068 = vsel %vm1001, %v255, -inf
      %1069 = vmax.xlane.f32.xlu0 %v1068
      %v1070 = vpop.xlane.xlu0 %1069
      %v1071 = vsel %vm1001, %v256, -inf
      %1072 = vmax.xlane.f32.xlu0 %v1071
      %v1073 = vpop.xlane.xlu0 %1072
      %v1074 = vsel %vm1001, %v257, -inf
      %1075 = vmax.xlane.f32.xlu0 %v1074
      %v1076 = vpop.xlane.xlu0 %1075
      %v1077 = vsel %vm1001, %v258, -inf
      %1078 = vmax.xlane.f32.xlu0 %v1077
      %v1079 = vpop.xlane.xlu0 %1078
      %v1080 = vsel %vm1001, %v259, -inf
      %1081 = vmax.xlane.f32.xlu0 %v1080
      %v1082 = vpop.xlane.xlu0 %1081
      %v1083 = vsel %vm1001, %v260, -inf
      %1084 = vmax.xlane.f32.xlu0 %v1083
      %v1085 = vpop.xlane.xlu0 %1084
      %v1086 = vsel %vm1001, %v261, -inf
      %1087 = vmax.xlane.f32.xlu0 %v1086
      %v1088 = vpop.xlane.xlu0 %1087
      %v1089 = vsel %vm1001, %v262, -inf
      %1090 = vmax.xlane.f32.xlu0 %v1089
      %v1091 = vpop.xlane.xlu0 %1090
      %v1092 = vsel %vm1001, %v263, -inf
      %1093 = vmax.xlane.f32.xlu0 %v1092
      %v1094 = vpop.xlane.xlu0 %1093
      %v1095 = vsel %vm1001, %v264, -inf
      %1096 = vmax.xlane.f32.xlu0 %v1095
      %v1097 = vpop.xlane.xlu0 %1096
      %v1098 = vsel %vm1001, %v265, -inf
      %1099 = vmax.xlane.f32.xlu0 %v1098
      %v1100 = vpop.xlane.xlu0 %1099
      %v1101 = vsel %vm1001, %v266, -inf
      %1102 = vmax.xlane.f32.xlu0 %v1101
      %v1103 = vpop.xlane.xlu0 %1102
      %v1104 = vsel %vm1001, %v267, -inf
      %1105 = vmax.xlane.f32.xlu0 %v1104
      %v1106 = vpop.xlane.xlu0 %1105
      %v1107 = vsel %vm1001, %v268, -inf
      %1108 = vmax.xlane.f32.xlu0 %v1107
      %v1109 = vpop.xlane.xlu0 %1108
      %v1110 = vsel %vm1001, %v269, -inf
      %1111 = vmax.xlane.f32.xlu0 %v1110
      %v1112 = vpop.xlane.xlu0 %1111
      %v1113 = vsel %vm1001, %v270, -inf
      %1114 = vmax.xlane.f32.xlu0 %v1113
      %v1115 = vpop.xlane.xlu0 %1114
      %v1116 = vsel %vm1001, %v271, -inf
      %1117 = vmax.xlane.f32.xlu0 %v1116
      %v1118 = vpop.xlane.xlu0 %1117
      %v1119 = vsel %vm1001, %v272, -inf
      %1120 = vmax.xlane.f32.xlu0 %v1119
      %v1121 = vpop.xlane.xlu0 %1120
      %v1122 = vsel %vm1001, %v273, -inf
      %1123 = vmax.xlane.f32.xlu0 %v1122
      %v1124 = vpop.xlane.xlu0 %1123
      %v1125 = vsel %vm1001, %v274, -inf
      %1126 = vmax.xlane.f32.xlu0 %v1125
      %v1127 = vpop.xlane.xlu0 %1126
      %v1128 = vsel %vm1001, %v275, -inf
      %1129 = vmax.xlane.f32.xlu0 %v1128
      %v1130 = vpop.xlane.xlu0 %1129
      %v1131 = vsel %vm1001, %v276, -inf
      %1132 = vmax.xlane.f32.xlu0 %v1131
      %v1133 = vpop.xlane.xlu0 %1132
      %v1134 = vsel %vm1001, %v277, -inf
      %1135 = vmax.xlane.f32.xlu0 %v1134
      %v1136 = vpop.xlane.xlu0 %1135
      %v1137 = vsel %vm1001, %v278, -inf
      %1138 = vmax.xlane.f32.xlu0 %v1137
      %v1139 = vpop.xlane.xlu0 %1138
      %v1140 = vsel %vm1001, %v279, -inf
      %1141 = vmax.xlane.f32.xlu0 %v1140
      %v1142 = vpop.xlane.xlu0 %1141
      %v1143 = vsel %vm1001, %v280, -inf
      %1144 = vmax.xlane.f32.xlu0 %v1143
      %v1145 = vpop.xlane.xlu0 %1144
      %v1146 = vsel %vm1001, %v281, -inf
      %1147 = vmax.xlane.f32.xlu0 %v1146
      %v1148 = vpop.xlane.xlu0 %1147
      %v1149 = vsel %vm1001, %v282, -inf
      %1150 = vmax.xlane.f32.xlu0 %v1149
      %v1151 = vpop.xlane.xlu0 %1150
      %v1152 = vsel %vm1001, %v283, -inf
      %1153 = vmax.xlane.f32.xlu0 %v1152
      %v1154 = vpop.xlane.xlu0 %1153
      %v1155 = vsel %vm1001, %v284, -inf
      %1156 = vmax.xlane.f32.xlu0 %v1155
      %v1157 = vpop.xlane.xlu0 %1156
      %v1158 = vsel %vm1001, %v285, -inf
      %1159 = vmax.xlane.f32.xlu0 %v1158
      %v1160 = vpop.xlane.xlu0 %1159
      %v1161 = vsel %vm1001, %v286, -inf
      %1162 = vmax.xlane.f32.xlu0 %v1161
      %v1163 = vpop.xlane.xlu0 %1162
      %v1164 = vsel %vm1001, %v287, -inf
      %1165 = vmax.xlane.f32.xlu0 %v1164
      %v1166 = vpop.xlane.xlu0 %1165
      %v1167 = vsel %vm1001, %v288, -inf
      %1168 = vmax.xlane.f32.xlu0 %v1167
      %v1169 = vpop.xlane.xlu0 %1168
      %v1170 = vsel %vm1001, %v289, -inf
      %1171 = vmax.xlane.f32.xlu0 %v1170
      %v1172 = vpop.xlane.xlu0 %1171
      %v1173 = vsel %vm1001, %v290, -inf
      %1174 = vmax.xlane.f32.xlu0 %v1173
      %v1175 = vpop.xlane.xlu0 %1174
      %v1176 = vsel %vm1001, %v291, -inf
      %1177 = vmax.xlane.f32.xlu0 %v1176
      %v1178 = vpop.xlane.xlu0 %1177
      %v1179 = vsel %vm1001, %v292, -inf
      %1180 = vmax.xlane.f32.xlu0 %v1179
      %v1181 = vpop.xlane.xlu0 %1180
      %v1182 = vsel %vm1001, %v293, -inf
      %1183 = vmax.xlane.f32.xlu0 %v1182
      %v1184 = vpop.xlane.xlu0 %1183
      %v1185 = vsel %vm1001, %v294, -inf
      %1186 = vmax.xlane.f32.xlu0 %v1185
      %v1187 = vpop.xlane.xlu0 %1186
      %v1188 = vsel %vm1001, %v295, -inf
      %1189 = vmax.xlane.f32.xlu0 %v1188
      %v1190 = vpop.xlane.xlu0 %1189
      %v1191 = vsel %vm1001, %v296, -inf
      %1192 = vmax.xlane.f32.xlu0 %v1191
      %v1193 = vpop.xlane.xlu0 %1192
      %v1194 = vsub.f32 %v233, %v1004
      %v1195 = vsub.f32 %v234, %v1007
      %v1196 = vsub.f32 %v235, %v1010
      %v1197 = vsub.f32 %v236, %v1013
      %v1198 = vsub.f32 %v237, %v1016
      %v1199 = vsub.f32 %v238, %v1019
      %v1200 = vsub.f32 %v239, %v1022
      %v1201 = vsub.f32 %v240, %v1025
      %v1202 = vsub.f32 %v241, %v1028
      %v1203 = vsub.f32 %v242, %v1031
      %v1204 = vsub.f32 %v243, %v1034
      %v1205 = vsub.f32 %v244, %v1037
      %v1206 = vsub.f32 %v245, %v1040
      %v1207 = vsub.f32 %v246, %v1043
      %v1208 = vsub.f32 %v247, %v1046
      %v1209 = vsub.f32 %v248, %v1049
      %v1210 = vsub.f32 %v249, %v1052
      %v1211 = vsub.f32 %v250, %v1055
      %v1212 = vsub.f32 %v251, %v1058
      %v1213 = vsub.f32 %v252, %v1061
      %v1214 = vsub.f32 %v253, %v1064
      %v1215 = vsub.f32 %v254, %v1067
      %v1216 = vsub.f32 %v255, %v1070
      %v1217 = vsub.f32 %v256, %v1073
      %v1218 = vsub.f32 %v257, %v1076
      %v1219 = vsub.f32 %v258, %v1079
      %v1220 = vsub.f32 %v259, %v1082
      %v1221 = vsub.f32 %v260, %v1085
      %v1222 = vsub.f32 %v261, %v1088
      %v1223 = vsub.f32 %v262, %v1091
      %v1224 = vsub.f32 %v263, %v1094
      %v1225 = vsub.f32 %v264, %v1097
      %v1226 = vsub.f32 %v265, %v1100
      %v1227 = vsub.f32 %v266, %v1103
      %v1228 = vsub.f32 %v267, %v1106
      %v1229 = vsub.f32 %v268, %v1109
      %v1230 = vsub.f32 %v269, %v1112
      %v1231 = vsub.f32 %v270, %v1115
      %v1232 = vsub.f32 %v271, %v1118
      %v1233 = vsub.f32 %v272, %v1121
      %v1234 = vsub.f32 %v273, %v1124
      %v1235 = vsub.f32 %v274, %v1127
      %v1236 = vsub.f32 %v275, %v1130
      %v1237 = vsub.f32 %v276, %v1133
      %v1238 = vsub.f32 %v277, %v1136
      %v1239 = vsub.f32 %v278, %v1139
      %v1240 = vsub.f32 %v279, %v1142
      %v1241 = vsub.f32 %v280, %v1145
      %v1242 = vsub.f32 %v281, %v1148
      %v1243 = vsub.f32 %v282, %v1151
      %v1244 = vsub.f32 %v283, %v1154
      %v1245 = vsub.f32 %v284, %v1157
      %v1246 = vsub.f32 %v285, %v1160
      %v1247 = vsub.f32 %v286, %v1163
      %v1248 = vsub.f32 %v287, %v1166
      %v1249 = vsub.f32 %v288, %v1169
      %v1250 = vsub.f32 %v289, %v1172
      %v1251 = vsub.f32 %v290, %v1175
      %v1252 = vsub.f32 %v291, %v1178
      %v1253 = vsub.f32 %v292, %v1181
      %v1254 = vsub.f32 %v293, %v1184
      %v1255 = vsub.f32 %v294, %v1187
      %v1256 = vsub.f32 %v295, %v1190
      %v1257 = vsub.f32 %v296, %v1193
      %v1258 = vmul.f32 %v1194, 1.442695
      %v1259 = vpow.pop %v1258
      %v1260 = vmul.f32 %v1195, 1.442695
      %v1261 = vpow.pop %v1260
      %v1262 = vmul.f32 %v1196, 1.442695
      %v1263 = vpow.pop %v1262
      %v1264 = vmul.f32 %v1197, 1.442695
      %v1265 = vpow.pop %v1264
      %v1266 = vmul.f32 %v1198, 1.442695
      %v1267 = vpow.pop %v1266
      %v1268 = vmul.f32 %v1199, 1.442695
      %v1269 = vpow.pop %v1268
      %v1270 = vmul.f32 %v1200, 1.442695
      %v1271 = vpow.pop %v1270
      %v1272 = vmul.f32 %v1201, 1.442695
      %v1273 = vpow.pop %v1272
      %v1274 = vmul.f32 %v1202, 1.442695
      %v1275 = vpow.pop %v1274
      %v1276 = vmul.f32 %v1203, 1.442695
      %v1277 = vpow.pop %v1276
      %v1278 = vmul.f32 %v1204, 1.442695
      %v1279 = vpow.pop %v1278
      %v1280 = vmul.f32 %v1205, 1.442695
      %v1281 = vpow.pop %v1280
      %v1282 = vmul.f32 %v1206, 1.442695
      %v1283 = vpow.pop %v1282
      %v1284 = vmul.f32 %v1207, 1.442695
      %v1285 = vpow.pop %v1284
      %v1286 = vmul.f32 %v1208, 1.442695
      %v1287 = vpow.pop %v1286
      %v1288 = vmul.f32 %v1209, 1.442695
      %v1289 = vpow.pop %v1288
      %v1290 = vmul.f32 %v1210, 1.442695
      %v1291 = vpow.pop %v1290
      %v1292 = vmul.f32 %v1211, 1.442695
      %v1293 = vpow.pop %v1292
      %v1294 = vmul.f32 %v1212, 1.442695
      %v1295 = vpow.pop %v1294
      %v1296 = vmul.f32 %v1213, 1.442695
      %v1297 = vpow.pop %v1296
      %v1298 = vmul.f32 %v1214, 1.442695
      %v1299 = vpow.pop %v1298
      %v1300 = vmul.f32 %v1215, 1.442695
      %v1301 = vpow.pop %v1300
      %v1302 = vmul.f32 %v1216, 1.442695
      %v1303 = vpow.pop %v1302
      %v1304 = vmul.f32 %v1217, 1.442695
      %v1305 = vpow.pop %v1304
      %v1306 = vmul.f32 %v1218, 1.442695
      %v1307 = vpow.pop %v1306
      %v1308 = vmul.f32 %v1219, 1.442695
      %v1309 = vpow.pop %v1308
      %v1310 = vmul.f32 %v1220, 1.442695
      %v1311 = vpow.pop %v1310
      %v1312 = vmul.f32 %v1221, 1.442695
      %v1313 = vpow.pop %v1312
      %v1314 = vmul.f32 %v1222, 1.442695
      %v1315 = vpow.pop %v1314
      %v1316 = vmul.f32 %v1223, 1.442695
      %v1317 = vpow.pop %v1316
      %v1318 = vmul.f32 %v1224, 1.442695
      %v1319 = vpow.pop %v1318
      %v1320 = vmul.f32 %v1225, 1.442695
      %v1321 = vpow.pop %v1320
      %v1322 = vmul.f32 %v1226, 1.442695
      %v1323 = vpow.pop %v1322
      %v1324 = vmul.f32 %v1227, 1.442695
      %v1325 = vpow.pop %v1324
      %v1326 = vmul.f32 %v1228, 1.442695
      %v1327 = vpow.pop %v1326
      %v1328 = vmul.f32 %v1229, 1.442695
      %v1329 = vpow.pop %v1328
      %v1330 = vmul.f32 %v1230, 1.442695
      %v1331 = vpow.pop %v1330
      %v1332 = vmul.f32 %v1231, 1.442695
      %v1333 = vpow.pop %v1332
      %v1334 = vmul.f32 %v1232, 1.442695
      %v1335 = vpow.pop %v1334
      %v1336 = vmul.f32 %v1233, 1.442695
      %v1337 = vpow.pop %v1336
      %v1338 = vmul.f32 %v1234, 1.442695
      %v1339 = vpow.pop %v1338
      %v1340 = vmul.f32 %v1235, 1.442695
      %v1341 = vpow.pop %v1340
      %v1342 = vmul.f32 %v1236, 1.442695
      %v1343 = vpow.pop %v1342
      %v1344 = vmul.f32 %v1237, 1.442695
      %v1345 = vpow.pop %v1344
      %v1346 = vmul.f32 %v1238, 1.442695
      %v1347 = vpow.pop %v1346
      %v1348 = vmul.f32 %v1239, 1.442695
      %v1349 = vpow.pop %v1348
      %v1350 = vmul.f32 %v1240, 1.442695
      %v1351 = vpow.pop %v1350
      %v1352 = vmul.f32 %v1241, 1.442695
      %v1353 = vpow.pop %v1352
      %v1354 = vmul.f32 %v1242, 1.442695
      %v1355 = vpow.pop %v1354
      %v1356 = vmul.f32 %v1243, 1.442695
      %v1357 = vpow.pop %v1356
      %v1358 = vmul.f32 %v1244, 1.442695
      %v1359 = vpow.pop %v1358
      %v1360 = vmul.f32 %v1245, 1.442695
      %v1361 = vpow.pop %v1360
      %v1362 = vmul.f32 %v1246, 1.442695
      %v1363 = vpow.pop %v1362
      %v1364 = vmul.f32 %v1247, 1.442695
      %v1365 = vpow.pop %v1364
      %v1366 = vmul.f32 %v1248, 1.442695
      %v1367 = vpow.pop %v1366
      %v1368 = vmul.f32 %v1249, 1.442695
      %v1369 = vpow.pop %v1368
      %v1370 = vmul.f32 %v1250, 1.442695
      %v1371 = vpow.pop %v1370
      %v1372 = vmul.f32 %v1251, 1.442695
      %v1373 = vpow.pop %v1372
      %v1374 = vmul.f32 %v1252, 1.442695
      %v1375 = vpow.pop %v1374
      %v1376 = vmul.f32 %v1253, 1.442695
      %v1377 = vpow.pop %v1376
      %v1378 = vmul.f32 %v1254, 1.442695
      %v1379 = vpow.pop %v1378
      %v1380 = vmul.f32 %v1255, 1.442695
      %v1381 = vpow.pop %v1380
      %v1382 = vmul.f32 %v1256, 1.442695
      %v1383 = vpow.pop %v1382
      %v1384 = vmul.f32 %v1257, 1.442695
      %v1385 = vpow.pop %v1384
      %1450 = vrot.lane.b32.xlu0 %v1259, 112
      %v1451 = vpop.permute.xlu0 %1450
      %1452 = vrot.lane.b32.xlu0 %v1261, 112
      %v1453 = vpop.permute.xlu0 %1452
      %1454 = vrot.lane.b32.xlu0 %v1263, 112
      %v1455 = vpop.permute.xlu0 %1454
      %1456 = vrot.lane.b32.xlu0 %v1265, 112
      %v1457 = vpop.permute.xlu0 %1456
      %1458 = vrot.lane.b32.xlu0 %v1267, 112
      %v1459 = vpop.permute.xlu0 %1458
      %1460 = vrot.lane.b32.xlu0 %v1269, 112
      %v1461 = vpop.permute.xlu0 %1460
      %1462 = vrot.lane.b32.xlu0 %v1271, 112
      %v1463 = vpop.permute.xlu0 %1462
      %1464 = vrot.lane.b32.xlu0 %v1273, 112
      %v1465 = vpop.permute.xlu0 %1464
      %1466 = vrot.lane.b32.xlu0 %v1275, 112
      %v1467 = vpop.permute.xlu0 %1466
      %1468 = vrot.lane.b32.xlu0 %v1277, 112
      %v1469 = vpop.permute.xlu0 %1468
      %1470 = vrot.lane.b32.xlu0 %v1279, 112
      %v1471 = vpop.permute.xlu0 %1470
      %1472 = vrot.lane.b32.xlu0 %v1281, 112
      %v1473 = vpop.permute.xlu0 %1472
      %1474 = vrot.lane.b32.xlu0 %v1283, 112
      %v1475 = vpop.permute.xlu0 %1474
      %1476 = vrot.lane.b32.xlu0 %v1285, 112
      %v1477 = vpop.permute.xlu0 %1476
      %1478 = vrot.lane.b32.xlu0 %v1287, 112
      %v1479 = vpop.permute.xlu0 %1478
      %1480 = vrot.lane.b32.xlu0 %v1289, 112
      %v1481 = vpop.permute.xlu0 %1480
      %1482 = vrot.lane.b32.xlu0 %v1291, 112
      %v1483 = vpop.permute.xlu0 %1482
      %1484 = vrot.lane.b32.xlu0 %v1293, 112
      %v1485 = vpop.permute.xlu0 %1484
      %1486 = vrot.lane.b32.xlu0 %v1295, 112
      %v1487 = vpop.permute.xlu0 %1486
      %1488 = vrot.lane.b32.xlu0 %v1297, 112
      %v1489 = vpop.permute.xlu0 %1488
      %1490 = vrot.lane.b32.xlu0 %v1299, 112
      %v1491 = vpop.permute.xlu0 %1490
      %1492 = vrot.lane.b32.xlu0 %v1301, 112
      %v1493 = vpop.permute.xlu0 %1492
      %1494 = vrot.lane.b32.xlu0 %v1303, 112
      %v1495 = vpop.permute.xlu0 %1494
      %1496 = vrot.lane.b32.xlu0 %v1305, 112
      %v1497 = vpop.permute.xlu0 %1496
      %1498 = vrot.lane.b32.xlu0 %v1307, 112
      %v1499 = vpop.permute.xlu0 %1498
      %1500 = vrot.lane.b32.xlu0 %v1309, 112
      %v1501 = vpop.permute.xlu0 %1500
      %1502 = vrot.lane.b32.xlu0 %v1311, 112
      %v1503 = vpop.permute.xlu0 %1502
      %1504 = vrot.lane.b32.xlu0 %v1313, 112
      %v1505 = vpop.permute.xlu0 %1504
      %1506 = vrot.lane.b32.xlu0 %v1315, 112
      %v1507 = vpop.permute.xlu0 %1506
      %1508 = vrot.lane.b32.xlu0 %v1317, 112
      %v1509 = vpop.permute.xlu0 %1508
      %1510 = vrot.lane.b32.xlu0 %v1319, 112
      %v1511 = vpop.permute.xlu0 %1510
      %1512 = vrot.lane.b32.xlu0 %v1321, 112
      %v1513 = vpop.permute.xlu0 %1512
      %1514 = vrot.lane.b32.xlu0 %v1323, 112
      %v1515 = vpop.permute.xlu0 %1514
      %1516 = vrot.lane.b32.xlu0 %v1325, 112
      %v1517 = vpop.permute.xlu0 %1516
      %1518 = vrot.lane.b32.xlu0 %v1327, 112
      %v1519 = vpop.permute.xlu0 %1518
      %1520 = vrot.lane.b32.xlu0 %v1329, 112
      %v1521 = vpop.permute.xlu0 %1520
      %1522 = vrot.lane.b32.xlu0 %v1331, 112
      %v1523 = vpop.permute.xlu0 %1522
      %1524 = vrot.lane.b32.xlu0 %v1333, 112
      %v1525 = vpop.permute.xlu0 %1524
      %1526 = vrot.lane.b32.xlu0 %v1335, 112
      %v1527 = vpop.permute.xlu0 %1526
      %1528 = vrot.lane.b32.xlu0 %v1337, 112
      %v1529 = vpop.permute.xlu0 %1528
      %1530 = vrot.lane.b32.xlu0 %v1339, 112
      %v1531 = vpop.permute.xlu0 %1530
      %1532 = vrot.lane.b32.xlu0 %v1341, 112
      %v1533 = vpop.permute.xlu0 %1532
      %1534 = vrot.lane.b32.xlu0 %v1343, 112
      %v1535 = vpop.permute.xlu0 %1534
      %1536 = vrot.lane.b32.xlu0 %v1345, 112
      %v1537 = vpop.permute.xlu0 %1536
      %1538 = vrot.lane.b32.xlu0 %v1347, 112
      %v1539 = vpop.permute.xlu0 %1538
      %1540 = vrot.lane.b32.xlu0 %v1349, 112
      %v1541 = vpop.permute.xlu0 %1540
      %1542 = vrot.lane.b32.xlu0 %v1351, 112
      %v1543 = vpop.permute.xlu0 %1542
      %1544 = vrot.lane.b32.xlu0 %v1353, 112
      %v1545 = vpop.permute.xlu0 %1544
      %1546 = vrot.lane.b32.xlu0 %v1355, 112
      %v1547 = vpop.permute.xlu0 %1546
      %1548 = vrot.lane.b32.xlu0 %v1357, 112
      %v1549 = vpop.permute.xlu0 %1548
      %1550 = vrot.lane.b32.xlu0 %v1359, 112
      %v1551 = vpop.permute.xlu0 %1550
      %1552 = vrot.lane.b32.xlu0 %v1361, 112
      %v1553 = vpop.permute.xlu0 %1552
      %1554 = vrot.lane.b32.xlu0 %v1363, 112
      %v1555 = vpop.permute.xlu0 %1554
      %1556 = vrot.lane.b32.xlu0 %v1365, 112
      %v1557 = vpop.permute.xlu0 %1556
      %1558 = vrot.lane.b32.xlu0 %v1367, 112
      %v1559 = vpop.permute.xlu0 %1558
      %1560 = vrot.lane.b32.xlu0 %v1369, 112
      %v1561 = vpop.permute.xlu0 %1560
      %1562 = vrot.lane.b32.xlu0 %v1371, 112
      %v1563 = vpop.permute.xlu0 %1562
      %1564 = vrot.lane.b32.xlu0 %v1373, 112
      %v1565 = vpop.permute.xlu0 %1564
      %1566 = vrot.lane.b32.xlu0 %v1375, 112
      %v1567 = vpop.permute.xlu0 %1566
      %1568 = vrot.lane.b32.xlu0 %v1377, 112
      %v1569 = vpop.permute.xlu0 %1568
      %1570 = vrot.lane.b32.xlu0 %v1379, 112
      %v1571 = vpop.permute.xlu0 %1570
      %1572 = vrot.lane.b32.xlu0 %v1381, 112
      %v1573 = vpop.permute.xlu0 %1572
      %1574 = vrot.lane.b32.xlu0 %v1383, 112
      %v1575 = vpop.permute.xlu0 %1574
      %1576 = vrot.lane.b32.xlu0 %v1385, 112
      %v1577 = vpop.permute.xlu0 %1576
      %vm1642 = vcmask 64512
      %v1643 = vsel %vm1642, %v1451, 0.0
      %1644 = vadd.xlane.f32.xlu0 %v1643
      %v1645 = vpop.xlane.xlu0 %1644
      %v1646 = vsel %vm1642, %v1453, 0.0
      %1647 = vadd.xlane.f32.xlu0 %v1646
      %v1648 = vpop.xlane.xlu0 %1647
      %v1649 = vsel %vm1642, %v1455, 0.0
      %1650 = vadd.xlane.f32.xlu0 %v1649
      %v1651 = vpop.xlane.xlu0 %1650
      %v1652 = vsel %vm1642, %v1457, 0.0
      %1653 = vadd.xlane.f32.xlu0 %v1652
      %v1654 = vpop.xlane.xlu0 %1653
      %v1655 = vsel %vm1642, %v1459, 0.0
      %1656 = vadd.xlane.f32.xlu0 %v1655
      %v1657 = vpop.xlane.xlu0 %1656
      %v1658 = vsel %vm1642, %v1461, 0.0
      %1659 = vadd.xlane.f32.xlu0 %v1658
      %v1660 = vpop.xlane.xlu0 %1659
      %v1661 = vsel %vm1642, %v1463, 0.0
      %1662 = vadd.xlane.f32.xlu0 %v1661
      %v1663 = vpop.xlane.xlu0 %1662
      %v1664 = vsel %vm1642, %v1465, 0.0
      %1665 = vadd.xlane.f32.xlu0 %v1664
      %v1666 = vpop.xlane.xlu0 %1665
      %v1667 = vsel %vm1642, %v1467, 0.0
      %1668 = vadd.xlane.f32.xlu0 %v1667
      %v1669 = vpop.xlane.xlu0 %1668
      %v1670 = vsel %vm1642, %v1469, 0.0
      %1671 = vadd.xlane.f32.xlu0 %v1670
      %v1672 = vpop.xlane.xlu0 %1671
      %v1673 = vsel %vm1642, %v1471, 0.0
      %1674 = vadd.xlane.f32.xlu0 %v1673
      %v1675 = vpop.xlane.xlu0 %1674
      %v1676 = vsel %vm1642, %v1473, 0.0
      %1677 = vadd.xlane.f32.xlu0 %v1676
      %v1678 = vpop.xlane.xlu0 %1677
      %v1679 = vsel %vm1642, %v1475, 0.0
      %1680 = vadd.xlane.f32.xlu0 %v1679
      %v1681 = vpop.xlane.xlu0 %1680
      %v1682 = vsel %vm1642, %v1477, 0.0
      %1683 = vadd.xlane.f32.xlu0 %v1682
      %v1684 = vpop.xlane.xlu0 %1683
      %v1685 = vsel %vm1642, %v1479, 0.0
      %1686 = vadd.xlane.f32.xlu0 %v1685
      %v1687 = vpop.xlane.xlu0 %1686
      %v1688 = vsel %vm1642, %v1481, 0.0
      %1689 = vadd.xlane.f32.xlu0 %v1688
      %v1690 = vpop.xlane.xlu0 %1689
      %v1691 = vsel %vm1642, %v1483, 0.0
      %1692 = vadd.xlane.f32.xlu0 %v1691
      %v1693 = vpop.xlane.xlu0 %1692
      %v1694 = vsel %vm1642, %v1485, 0.0
      %1695 = vadd.xlane.f32.xlu0 %v1694
      %v1696 = vpop.xlane.xlu0 %1695
      %v1697 = vsel %vm1642, %v1487, 0.0
      %1698 = vadd.xlane.f32.xlu0 %v1697
      %v1699 = vpop.xlane.xlu0 %1698
      %v1700 = vsel %vm1642, %v1489, 0.0
      %1701 = vadd.xlane.f32.xlu0 %v1700
      %v1702 = vpop.xlane.xlu0 %1701
      %v1703 = vsel %vm1642, %v1491, 0.0
      %1704 = vadd.xlane.f32.xlu0 %v1703
      %v1705 = vpop.xlane.xlu0 %1704
      %v1706 = vsel %vm1642, %v1493, 0.0
      %1707 = vadd.xlane.f32.xlu0 %v1706
      %v1708 = vpop.xlane.xlu0 %1707
      %v1709 = vsel %vm1642, %v1495, 0.0
      %1710 = vadd.xlane.f32.xlu0 %v1709
      %v1711 = vpop.xlane.xlu0 %1710
      %v1712 = vsel %vm1642, %v1497, 0.0
      %1713 = vadd.xlane.f32.xlu0 %v1712
      %v1714 = vpop.xlane.xlu0 %1713
      %v1715 = vsel %vm1642, %v1499, 0.0
      %1716 = vadd.xlane.f32.xlu0 %v1715
      %v1717 = vpop.xlane.xlu0 %1716
      %v1718 = vsel %vm1642, %v1501, 0.0
      %1719 = vadd.xlane.f32.xlu0 %v1718
      %v1720 = vpop.xlane.xlu0 %1719
      %v1721 = vsel %vm1642, %v1503, 0.0
      %1722 = vadd.xlane.f32.xlu0 %v1721
      %v1723 = vpop.xlane.xlu0 %1722
      %v1724 = vsel %vm1642, %v1505, 0.0
      %1725 = vadd.xlane.f32.xlu0 %v1724
      %v1726 = vpop.xlane.xlu0 %1725
      %v1727 = vsel %vm1642, %v1507, 0.0
      %1728 = vadd.xlane.f32.xlu0 %v1727
      %v1729 = vpop.xlane.xlu0 %1728
      %v1730 = vsel %vm1642, %v1509, 0.0
      %1731 = vadd.xlane.f32.xlu0 %v1730
      %v1732 = vpop.xlane.xlu0 %1731
      %v1733 = vsel %vm1642, %v1511, 0.0
      %1734 = vadd.xlane.f32.xlu0 %v1733
      %v1735 = vpop.xlane.xlu0 %1734
      %v1736 = vsel %vm1642, %v1513, 0.0
      %1737 = vadd.xlane.f32.xlu0 %v1736
      %v1738 = vpop.xlane.xlu0 %1737
      %v1739 = vsel %vm1642, %v1515, 0.0
      %1740 = vadd.xlane.f32.xlu0 %v1739
      %v1741 = vpop.xlane.xlu0 %1740
      %v1742 = vsel %vm1642, %v1517, 0.0
      %1743 = vadd.xlane.f32.xlu0 %v1742
      %v1744 = vpop.xlane.xlu0 %1743
      %v1745 = vsel %vm1642, %v1519, 0.0
      %1746 = vadd.xlane.f32.xlu0 %v1745
      %v1747 = vpop.xlane.xlu0 %1746
      %v1748 = vsel %vm1642, %v1521, 0.0
      %1749 = vadd.xlane.f32.xlu0 %v1748
      %v1750 = vpop.xlane.xlu0 %1749
      %v1751 = vsel %vm1642, %v1523, 0.0
      %1752 = vadd.xlane.f32.xlu0 %v1751
      %v1753 = vpop.xlane.xlu0 %1752
      %v1754 = vsel %vm1642, %v1525, 0.0
      %1755 = vadd.xlane.f32.xlu0 %v1754
      %v1756 = vpop.xlane.xlu0 %1755
      %v1757 = vsel %vm1642, %v1527, 0.0
      %1758 = vadd.xlane.f32.xlu0 %v1757
      %v1759 = vpop.xlane.xlu0 %1758
      %v1760 = vsel %vm1642, %v1529, 0.0
      %1761 = vadd.xlane.f32.xlu0 %v1760
      %v1762 = vpop.xlane.xlu0 %1761
      %v1763 = vsel %vm1642, %v1531, 0.0
      %1764 = vadd.xlane.f32.xlu0 %v1763
      %v1765 = vpop.xlane.xlu0 %1764
      %v1766 = vsel %vm1642, %v1533, 0.0
      %1767 = vadd.xlane.f32.xlu0 %v1766
      %v1768 = vpop.xlane.xlu0 %1767
      %v1769 = vsel %vm1642, %v1535, 0.0
      %1770 = vadd.xlane.f32.xlu0 %v1769
      %v1771 = vpop.xlane.xlu0 %1770
      %v1772 = vsel %vm1642, %v1537, 0.0
      %1773 = vadd.xlane.f32.xlu0 %v1772
      %v1774 = vpop.xlane.xlu0 %1773
      %v1775 = vsel %vm1642, %v1539, 0.0
      %1776 = vadd.xlane.f32.xlu0 %v1775
      %v1777 = vpop.xlane.xlu0 %1776
      %v1778 = vsel %vm1642, %v1541, 0.0
      %1779 = vadd.xlane.f32.xlu0 %v1778
      %v1780 = vpop.xlane.xlu0 %1779
      %v1781 = vsel %vm1642, %v1543, 0.0
      %1782 = vadd.xlane.f32.xlu0 %v1781
      %v1783 = vpop.xlane.xlu0 %1782
      %v1784 = vsel %vm1642, %v1545, 0.0
      %1785 = vadd.xlane.f32.xlu0 %v1784
      %v1786 = vpop.xlane.xlu0 %1785
      %v1787 = vsel %vm1642, %v1547, 0.0
      %1788 = vadd.xlane.f32.xlu0 %v1787
      %v1789 = vpop.xlane.xlu0 %1788
      %v1790 = vsel %vm1642, %v1549, 0.0
      %1791 = vadd.xlane.f32.xlu0 %v1790
      %v1792 = vpop.xlane.xlu0 %1791
      %v1793 = vsel %vm1642, %v1551, 0.0
      %1794 = vadd.xlane.f32.xlu0 %v1793
      %v1795 = vpop.xlane.xlu0 %1794
      %v1796 = vsel %vm1642, %v1553, 0.0
      %1797 = vadd.xlane.f32.xlu0 %v1796
      %v1798 = vpop.xlane.xlu0 %1797
      %v1799 = vsel %vm1642, %v1555, 0.0
      %1800 = vadd.xlane.f32.xlu0 %v1799
      %v1801 = vpop.xlane.xlu0 %1800
      %v1802 = vsel %vm1642, %v1557, 0.0
      %1803 = vadd.xlane.f32.xlu0 %v1802
      %v1804 = vpop.xlane.xlu0 %1803
      %v1805 = vsel %vm1642, %v1559, 0.0
      %1806 = vadd.xlane.f32.xlu0 %v1805
      %v1807 = vpop.xlane.xlu0 %1806
      %v1808 = vsel %vm1642, %v1561, 0.0
      %1809 = vadd.xlane.f32.xlu0 %v1808
      %v1810 = vpop.xlane.xlu0 %1809
      %v1811 = vsel %vm1642, %v1563, 0.0
      %1812 = vadd.xlane.f32.xlu0 %v1811
      %v1813 = vpop.xlane.xlu0 %1812
      %v1814 = vsel %vm1642, %v1565, 0.0
      %1815 = vadd.xlane.f32.xlu0 %v1814
      %v1816 = vpop.xlane.xlu0 %1815
      %v1817 = vsel %vm1642, %v1567, 0.0
      %1818 = vadd.xlane.f32.xlu0 %v1817
      %v1819 = vpop.xlane.xlu0 %1818
      %v1820 = vsel %vm1642, %v1569, 0.0
      %1821 = vadd.xlane.f32.xlu0 %v1820
      %v1822 = vpop.xlane.xlu0 %1821
      %v1823 = vsel %vm1642, %v1571, 0.0
      %1824 = vadd.xlane.f32.xlu0 %v1823
      %v1825 = vpop.xlane.xlu0 %1824
      %v1826 = vsel %vm1642, %v1573, 0.0
      %1827 = vadd.xlane.f32.xlu0 %v1826
      %v1828 = vpop.xlane.xlu0 %1827
      %v1829 = vsel %vm1642, %v1575, 0.0
      %1830 = vadd.xlane.f32.xlu0 %v1829
      %v1831 = vpop.xlane.xlu0 %1830
      %v1832 = vsel %vm1642, %v1577, 0.0
      %1833 = vadd.xlane.f32.xlu0 %v1832
      %v1834 = vpop.xlane.xlu0 %1833
      %v1835 = vrcp.pop %v1645
      %v1836 = vrcp.pop %v1648
      %v1837 = vrcp.pop %v1651
      %v1838 = vrcp.pop %v1654
      %v1839 = vrcp.pop %v1657
      %v1840 = vrcp.pop %v1660
      %v1841 = vrcp.pop %v1663
      %v1842 = vrcp.pop %v1666
      %v1843 = vrcp.pop %v1669
      %v1844 = vrcp.pop %v1672
      %v1845 = vrcp.pop %v1675
      %v1846 = vrcp.pop %v1678
      %v1847 = vrcp.pop %v1681
      %v1848 = vrcp.pop %v1684
      %v1849 = vrcp.pop %v1687
      %v1850 = vrcp.pop %v1690
      %v1851 = vrcp.pop %v1693
      %v1852 = vrcp.pop %v1696
      %v1853 = vrcp.pop %v1699
      %v1854 = vrcp.pop %v1702
      %v1855 = vrcp.pop %v1705
      %v1856 = vrcp.pop %v1708
      %v1857 = vrcp.pop %v1711
      %v1858 = vrcp.pop %v1714
      %v1859 = vrcp.pop %v1717
      %v1860 = vrcp.pop %v1720
      %v1861 = vrcp.pop %v1723
      %v1862 = vrcp.pop %v1726
      %v1863 = vrcp.pop %v1729
      %v1864 = vrcp.pop %v1732
      %v1865 = vrcp.pop %v1735
      %v1866 = vrcp.pop %v1738
      %v1867 = vrcp.pop %v1741
      %v1868 = vrcp.pop %v1744
      %v1869 = vrcp.pop %v1747
      %v1870 = vrcp.pop %v1750
      %v1871 = vrcp.pop %v1753
      %v1872 = vrcp.pop %v1756
      %v1873 = vrcp.pop %v1759
      %v1874 = vrcp.pop %v1762
      %v1875 = vrcp.pop %v1765
      %v1876 = vrcp.pop %v1768
      %v1877 = vrcp.pop %v1771
      %v1878 = vrcp.pop %v1774
      %v1879 = vrcp.pop %v1777
      %v1880 = vrcp.pop %v1780
      %v1881 = vrcp.pop %v1783
      %v1882 = vrcp.pop %v1786
      %v1883 = vrcp.pop %v1789
      %v1884 = vrcp.pop %v1792
      %v1885 = vrcp.pop %v1795
      %v1886 = vrcp.pop %v1798
      %v1887 = vrcp.pop %v1801
      %v1888 = vrcp.pop %v1804
      %v1889 = vrcp.pop %v1807
      %v1890 = vrcp.pop %v1810
      %v1891 = vrcp.pop %v1813
      %v1892 = vrcp.pop %v1816
      %v1893 = vrcp.pop %v1819
      %v1894 = vrcp.pop %v1822
      %v1895 = vrcp.pop %v1825
      %v1896 = vrcp.pop %v1828
      %v1897 = vrcp.pop %v1831
      %v1898 = vrcp.pop %v1834
      %v1899 = vmul.f32 %v1259, %v1835
      %v1900 = vmul.f32 %v1261, %v1836
      %v1901 = vmul.f32 %v1263, %v1837
      %v1902 = vmul.f32 %v1265, %v1838
      %v1903 = vmul.f32 %v1267, %v1839
      %v1904 = vmul.f32 %v1269, %v1840
      %v1905 = vmul.f32 %v1271, %v1841
      %v1906 = vmul.f32 %v1273, %v1842
      %v1907 = vmul.f32 %v1275, %v1843
      %v1908 = vmul.f32 %v1277, %v1844
      %v1909 = vmul.f32 %v1279, %v1845
      %v1910 = vmul.f32 %v1281, %v1846
      %v1911 = vmul.f32 %v1283, %v1847
      %v1912 = vmul.f32 %v1285, %v1848
      %v1913 = vmul.f32 %v1287, %v1849
      %v1914 = vmul.f32 %v1289, %v1850
      %v1915 = vmul.f32 %v1291, %v1851
      %v1916 = vmul.f32 %v1293, %v1852
      %v1917 = vmul.f32 %v1295, %v1853
      %v1918 = vmul.f32 %v1297, %v1854
      %v1919 = vmul.f32 %v1299, %v1855
      %v1920 = vmul.f32 %v1301, %v1856
      %v1921 = vmul.f32 %v1303, %v1857
      %v1922 = vmul.f32 %v1305, %v1858
      %v1923 = vmul.f32 %v1307, %v1859
      %v1924 = vmul.f32 %v1309, %v1860
      %v1925 = vmul.f32 %v1311, %v1861
      %v1926 = vmul.f32 %v1313, %v1862
      %v1927 = vmul.f32 %v1315, %v1863
      %v1928 = vmul.f32 %v1317, %v1864
      %v1929 = vmul.f32 %v1319, %v1865
      %v1930 = vmul.f32 %v1321, %v1866
      %v1931 = vmul.f32 %v1323, %v1867
      %v1932 = vmul.f32 %v1325, %v1868
      %v1933 = vmul.f32 %v1327, %v1869
      %v1934 = vmul.f32 %v1329, %v1870
      %v1935 = vmul.f32 %v1331, %v1871
      %v1936 = vmul.f32 %v1333, %v1872
      %v1937 = vmul.f32 %v1335, %v1873
      %v1938 = vmul.f32 %v1337, %v1874
      %v1939 = vmul.f32 %v1339, %v1875
      %v1940 = vmul.f32 %v1341, %v1876
      %v1941 = vmul.f32 %v1343, %v1877
      %v1942 = vmul.f32 %v1345, %v1878
      %v1943 = vmul.f32 %v1347, %v1879
      %v1944 = vmul.f32 %v1349, %v1880
      %v1945 = vmul.f32 %v1351, %v1881
      %v1946 = vmul.f32 %v1353, %v1882
      %v1947 = vmul.f32 %v1355, %v1883
      %v1948 = vmul.f32 %v1357, %v1884
      %v1949 = vmul.f32 %v1359, %v1885
      %v1950 = vmul.f32 %v1361, %v1886
      %v1951 = vmul.f32 %v1363, %v1887
      %v1952 = vmul.f32 %v1365, %v1888
      %v1953 = vmul.f32 %v1367, %v1889
      %v1954 = vmul.f32 %v1369, %v1890
      %v1955 = vmul.f32 %v1371, %v1891
      %v1956 = vmul.f32 %v1373, %v1892
      %v1957 = vmul.f32 %v1375, %v1893
      %v1958 = vmul.f32 %v1377, %v1894
      %v1959 = vmul.f32 %v1379, %v1895
      %v1960 = vmul.f32 %v1381, %v1896
      %v1961 = vmul.f32 %v1383, %v1897
      %v1962 = vmul.f32 %v1385, %v1898
      %2027 = vrot.lane.b32.xlu0 %v169, 24
      %v2028 = vpop.permute.xlu0 %2027
      %2029 = vrot.lane.b32.xlu0 %v170, 24
      %v2030 = vpop.permute.xlu0 %2029
      %2031 = vrot.lane.b32.xlu0 %v171, 24
      %v2032 = vpop.permute.xlu0 %2031
      %2033 = vrot.lane.b32.xlu0 %v172, 24
      %v2034 = vpop.permute.xlu0 %2033
      %2035 = vrot.lane.b32.xlu0 %v173, 24
      %v2036 = vpop.permute.xlu0 %2035
      %2037 = vrot.lane.b32.xlu0 %v174, 24
      %v2038 = vpop.permute.xlu0 %2037
      %2039 = vrot.lane.b32.xlu0 %v175, 24
      %v2040 = vpop.permute.xlu0 %2039
      %2041 = vrot.lane.b32.xlu0 %v176, 24
      %v2042 = vpop.permute.xlu0 %2041
      %2043 = vrot.lane.b32.xlu0 %v177, 24
      %v2044 = vpop.permute.xlu0 %2043
      %2045 = vrot.lane.b32.xlu0 %v178, 24
      %v2046 = vpop.permute.xlu0 %2045
      %2047 = vrot.lane.b32.xlu0 %v179, 24
      %v2048 = vpop.permute.xlu0 %2047
      %2049 = vrot.lane.b32.xlu0 %v180, 24
      %v2050 = vpop.permute.xlu0 %2049
      %2051 = vrot.lane.b32.xlu0 %v181, 24
      %v2052 = vpop.permute.xlu0 %2051
      %2053 = vrot.lane.b32.xlu0 %v182, 24
      %v2054 = vpop.permute.xlu0 %2053
      %2055 = vrot.lane.b32.xlu0 %v183, 24
      %v2056 = vpop.permute.xlu0 %2055
      %2057 = vrot.lane.b32.xlu0 %v184, 24
      %v2058 = vpop.permute.xlu0 %2057
      %2059 = vrot.lane.b32.xlu0 %v185, 24
      %v2060 = vpop.permute.xlu0 %2059
      %2061 = vrot.lane.b32.xlu0 %v186, 24
      %v2062 = vpop.permute.xlu0 %2061
      %2063 = vrot.lane.b32.xlu0 %v187, 24
      %v2064 = vpop.permute.xlu0 %2063
      %2065 = vrot.lane.b32.xlu0 %v188, 24
      %v2066 = vpop.permute.xlu0 %2065
      %2067 = vrot.lane.b32.xlu0 %v189, 24
      %v2068 = vpop.permute.xlu0 %2067
      %2069 = vrot.lane.b32.xlu0 %v190, 24
      %v2070 = vpop.permute.xlu0 %2069
      %2071 = vrot.lane.b32.xlu0 %v191, 24
      %v2072 = vpop.permute.xlu0 %2071
      %2073 = vrot.lane.b32.xlu0 %v192, 24
      %v2074 = vpop.permute.xlu0 %2073
      %2075 = vrot.lane.b32.xlu0 %v193, 24
      %v2076 = vpop.permute.xlu0 %2075
      %2077 = vrot.lane.b32.xlu0 %v194, 24
      %v2078 = vpop.permute.xlu0 %2077
      %2079 = vrot.lane.b32.xlu0 %v195, 24
      %v2080 = vpop.permute.xlu0 %2079
      %2081 = vrot.lane.b32.xlu0 %v196, 24
      %v2082 = vpop.permute.xlu0 %2081
      %2083 = vrot.lane.b32.xlu0 %v197, 24
      %v2084 = vpop.permute.xlu0 %2083
      %2085 = vrot.lane.b32.xlu0 %v198, 24
      %v2086 = vpop.permute.xlu0 %2085
      %2087 = vrot.lane.b32.xlu0 %v199, 24
      %v2088 = vpop.permute.xlu0 %2087
      %2089 = vrot.lane.b32.xlu0 %v200, 24
      %v2090 = vpop.permute.xlu0 %2089
      %2091 = vrot.lane.b32.xlu0 %v201, 24
      %v2092 = vpop.permute.xlu0 %2091
      %2093 = vrot.lane.b32.xlu0 %v202, 24
      %v2094 = vpop.permute.xlu0 %2093
      %2095 = vrot.lane.b32.xlu0 %v203, 24
      %v2096 = vpop.permute.xlu0 %2095
      %2097 = vrot.lane.b32.xlu0 %v204, 24
      %v2098 = vpop.permute.xlu0 %2097
      %2099 = vrot.lane.b32.xlu0 %v205, 24
      %v2100 = vpop.permute.xlu0 %2099
      %2101 = vrot.lane.b32.xlu0 %v206, 24
      %v2102 = vpop.permute.xlu0 %2101
      %2103 = vrot.lane.b32.xlu0 %v207, 24
      %v2104 = vpop.permute.xlu0 %2103
      %2105 = vrot.lane.b32.xlu0 %v208, 24
      %v2106 = vpop.permute.xlu0 %2105
      %2107 = vrot.lane.b32.xlu0 %v209, 24
      %v2108 = vpop.permute.xlu0 %2107
      %2109 = vrot.lane.b32.xlu0 %v210, 24
      %v2110 = vpop.permute.xlu0 %2109
      %2111 = vrot.lane.b32.xlu0 %v211, 24
      %v2112 = vpop.permute.xlu0 %2111
      %2113 = vrot.lane.b32.xlu0 %v212, 24
      %v2114 = vpop.permute.xlu0 %2113
      %2115 = vrot.lane.b32.xlu0 %v213, 24
      %v2116 = vpop.permute.xlu0 %2115
      %2117 = vrot.lane.b32.xlu0 %v214, 24
      %v2118 = vpop.permute.xlu0 %2117
      %2119 = vrot.lane.b32.xlu0 %v215, 24
      %v2120 = vpop.permute.xlu0 %2119
      %2121 = vrot.lane.b32.xlu0 %v216, 24
      %v2122 = vpop.permute.xlu0 %2121
      %2123 = vrot.lane.b32.xlu0 %v217, 24
      %v2124 = vpop.permute.xlu0 %2123
      %2125 = vrot.lane.b32.xlu0 %v218, 24
      %v2126 = vpop.permute.xlu0 %2125
      %2127 = vrot.lane.b32.xlu0 %v219, 24
      %v2128 = vpop.permute.xlu0 %2127
      %2129 = vrot.lane.b32.xlu0 %v220, 24
      %v2130 = vpop.permute.xlu0 %2129
      %2131 = vrot.lane.b32.xlu0 %v221, 24
      %v2132 = vpop.permute.xlu0 %2131
      %2133 = vrot.lane.b32.xlu0 %v222, 24
      %v2134 = vpop.permute.xlu0 %2133
      %2135 = vrot.lane.b32.xlu0 %v223, 24
      %v2136 = vpop.permute.xlu0 %2135
      %2137 = vrot.lane.b32.xlu0 %v224, 24
      %v2138 = vpop.permute.xlu0 %2137
      %2139 = vrot.lane.b32.xlu0 %v225, 24
      %v2140 = vpop.permute.xlu0 %2139
      %2141 = vrot.lane.b32.xlu0 %v226, 24
      %v2142 = vpop.permute.xlu0 %2141
      %2143 = vrot.lane.b32.xlu0 %v227, 24
      %v2144 = vpop.permute.xlu0 %2143
      %2145 = vrot.lane.b32.xlu0 %v228, 24
      %v2146 = vpop.permute.xlu0 %2145
      %2147 = vrot.lane.b32.xlu0 %v229, 24
      %v2148 = vpop.permute.xlu0 %2147
      %2149 = vrot.lane.b32.xlu0 %v230, 24
      %v2150 = vpop.permute.xlu0 %2149
      %2151 = vrot.lane.b32.xlu0 %v231, 24
      %v2152 = vpop.permute.xlu0 %2151
      %2153 = vrot.lane.b32.xlu0 %v232, 24
      %v2154 = vpop.permute.xlu0 %2153
      %v2219 = vadd.f32 %v233, %v2028
      %v2220 = vadd.f32 %v234, %v2030
      %v2221 = vadd.f32 %v235, %v2032
      %v2222 = vadd.f32 %v236, %v2034
      %v2223 = vadd.f32 %v237, %v2036
      %v2224 = vadd.f32 %v238, %v2038
      %v2225 = vadd.f32 %v239, %v2040
      %v2226 = vadd.f32 %v240, %v2042
      %v2227 = vadd.f32 %v241, %v2044
      %v2228 = vadd.f32 %v242, %v2046
      %v2229 = vadd.f32 %v243, %v2048
      %v2230 = vadd.f32 %v244, %v2050
      %v2231 = vadd.f32 %v245, %v2052
      %v2232 = vadd.f32 %v246, %v2054
      %v2233 = vadd.f32 %v247, %v2056
      %v2234 = vadd.f32 %v248, %v2058
      %v2235 = vadd.f32 %v249, %v2060
      %v2236 = vadd.f32 %v250, %v2062
      %v2237 = vadd.f32 %v251, %v2064
      %v2238 = vadd.f32 %v252, %v2066
      %v2239 = vadd.f32 %v253, %v2068
      %v2240 = vadd.f32 %v254, %v2070
      %v2241 = vadd.f32 %v255, %v2072
      %v2242 = vadd.f32 %v256, %v2074
      %v2243 = vadd.f32 %v257, %v2076
      %v2244 = vadd.f32 %v258, %v2078
      %v2245 = vadd.f32 %v259, %v2080
      %v2246 = vadd.f32 %v260, %v2082
      %v2247 = vadd.f32 %v261, %v2084
      %v2248 = vadd.f32 %v262, %v2086
      %v2249 = vadd.f32 %v263, %v2088
      %v2250 = vadd.f32 %v264, %v2090
      %v2251 = vadd.f32 %v265, %v2092
      %v2252 = vadd.f32 %v266, %v2094
      %v2253 = vadd.f32 %v267, %v2096
      %v2254 = vadd.f32 %v268, %v2098
      %v2255 = vadd.f32 %v269, %v2100
      %v2256 = vadd.f32 %v270, %v2102
      %v2257 = vadd.f32 %v271, %v2104
      %v2258 = vadd.f32 %v272, %v2106
      %v2259 = vadd.f32 %v273, %v2108
      %v2260 = vadd.f32 %v274, %v2110
      %v2261 = vadd.f32 %v275, %v2112
      %v2262 = vadd.f32 %v276, %v2114
      %v2263 = vadd.f32 %v277, %v2116
      %v2264 = vadd.f32 %v278, %v2118
      %v2265 = vadd.f32 %v279, %v2120
      %v2266 = vadd.f32 %v280, %v2122
      %v2267 = vadd.f32 %v281, %v2124
      %v2268 = vadd.f32 %v282, %v2126
      %v2269 = vadd.f32 %v283, %v2128
      %v2270 = vadd.f32 %v284, %v2130
      %v2271 = vadd.f32 %v285, %v2132
      %v2272 = vadd.f32 %v286, %v2134
      %v2273 = vadd.f32 %v287, %v2136
      %v2274 = vadd.f32 %v288, %v2138
      %v2275 = vadd.f32 %v289, %v2140
      %v2276 = vadd.f32 %v290, %v2142
      %v2277 = vadd.f32 %v291, %v2144
      %v2278 = vadd.f32 %v292, %v2146
      %v2279 = vadd.f32 %v293, %v2148
      %v2280 = vadd.f32 %v294, %v2150
      %v2281 = vadd.f32 %v295, %v2152
      %v2282 = vadd.f32 %v296, %v2154
      %v2283 = vmul.f32 %v2219, 5.0
      %v2284 = vmul.f32 %v2220, 5.0
      %v2285 = vmul.f32 %v2221, 5.0
      %v2286 = vmul.f32 %v2222, 5.0
      %v2287 = vmul.f32 %v2223, 5.0
      %v2288 = vmul.f32 %v2224, 5.0
      %v2289 = vmul.f32 %v2225, 5.0
      %v2290 = vmul.f32 %v2226, 5.0
      %v2291 = vmul.f32 %v2227, 5.0
      %v2292 = vmul.f32 %v2228, 5.0
      %v2293 = vmul.f32 %v2229, 5.0
      %v2294 = vmul.f32 %v2230, 5.0
      %v2295 = vmul.f32 %v2231, 5.0
      %v2296 = vmul.f32 %v2232, 5.0
      %v2297 = vmul.f32 %v2233, 5.0
      %v2298 = vmul.f32 %v2234, 5.0
      %v2299 = vmul.f32 %v2235, 5.0
      %v2300 = vmul.f32 %v2236, 5.0
      %v2301 = vmul.f32 %v2237, 5.0
      %v2302 = vmul.f32 %v2238, 5.0
      %v2303 = vmul.f32 %v2239, 5.0
      %v2304 = vmul.f32 %v2240, 5.0
      %v2305 = vmul.f32 %v2241, 5.0
      %v2306 = vmul.f32 %v2242, 5.0
      %v2307 = vmul.f32 %v2243, 5.0
      %v2308 = vmul.f32 %v2244, 5.0
      %v2309 = vmul.f32 %v2245, 5.0
      %v2310 = vmul.f32 %v2246, 5.0
      %v2311 = vmul.f32 %v2247, 5.0
      %v2312 = vmul.f32 %v2248, 5.0
      %v2313 = vmul.f32 %v2249, 5.0
      %v2314 = vmul.f32 %v2250, 5.0
      %v2315 = vmul.f32 %v2251, 5.0
      %v2316 = vmul.f32 %v2252, 5.0
      %v2317 = vmul.f32 %v2253, 5.0
      %v2318 = vmul.f32 %v2254, 5.0
      %v2319 = vmul.f32 %v2255, 5.0
      %v2320 = vmul.f32 %v2256, 5.0
      %v2321 = vmul.f32 %v2257, 5.0
      %v2322 = vmul.f32 %v2258, 5.0
      %v2323 = vmul.f32 %v2259, 5.0
      %v2324 = vmul.f32 %v2260, 5.0
      %v2325 = vmul.f32 %v2261, 5.0
      %v2326 = vmul.f32 %v2262, 5.0
      %v2327 = vmul.f32 %v2263, 5.0
      %v2328 = vmul.f32 %v2264, 5.0
      %v2329 = vmul.f32 %v2265, 5.0
      %v2330 = vmul.f32 %v2266, 5.0
      %v2331 = vmul.f32 %v2267, 5.0
      %v2332 = vmul.f32 %v2268, 5.0
      %v2333 = vmul.f32 %v2269, 5.0
      %v2334 = vmul.f32 %v2270, 5.0
      %v2335 = vmul.f32 %v2271, 5.0
      %v2336 = vmul.f32 %v2272, 5.0
      %v2337 = vmul.f32 %v2273, 5.0
      %v2338 = vmul.f32 %v2274, 5.0
      %v2339 = vmul.f32 %v2275, 5.0
      %v2340 = vmul.f32 %v2276, 5.0
      %v2341 = vmul.f32 %v2277, 5.0
      %v2342 = vmul.f32 %v2278, 5.0
      %v2343 = vmul.f32 %v2279, 5.0
      %v2344 = vmul.f32 %v2280, 5.0
      %v2345 = vmul.f32 %v2281, 5.0
      %v2346 = vmul.f32 %v2282, 5.0
      %vm2347 = vcmask 261312
      %v2348 = vsel %vm2347, %v2283, -inf
      %2349 = vmax.xlane.f32.xlu0 %v2348
      %v2350 = vpop.xlane.xlu0 %2349
      %v2351 = vsel %vm2347, %v2284, -inf
      %2352 = vmax.xlane.f32.xlu0 %v2351
      %v2353 = vpop.xlane.xlu0 %2352
      %v2354 = vsel %vm2347, %v2285, -inf
      %2355 = vmax.xlane.f32.xlu0 %v2354
      %v2356 = vpop.xlane.xlu0 %2355
      %v2357 = vsel %vm2347, %v2286, -inf
      %2358 = vmax.xlane.f32.xlu0 %v2357
      %v2359 = vpop.xlane.xlu0 %2358
      %v2360 = vsel %vm2347, %v2287, -inf
      %2361 = vmax.xlane.f32.xlu0 %v2360
      %v2362 = vpop.xlane.xlu0 %2361
      %v2363 = vsel %vm2347, %v2288, -inf
      %2364 = vmax.xlane.f32.xlu0 %v2363
      %v2365 = vpop.xlane.xlu0 %2364
      %v2366 = vsel %vm2347, %v2289, -inf
      %2367 = vmax.xlane.f32.xlu0 %v2366
      %v2368 = vpop.xlane.xlu0 %2367
      %v2369 = vsel %vm2347, %v2290, -inf
      %2370 = vmax.xlane.f32.xlu0 %v2369
      %v2371 = vpop.xlane.xlu0 %2370
      %v2372 = vsel %vm2347, %v2291, -inf
      %2373 = vmax.xlane.f32.xlu0 %v2372
      %v2374 = vpop.xlane.xlu0 %2373
      %v2375 = vsel %vm2347, %v2292, -inf
      %2376 = vmax.xlane.f32.xlu0 %v2375
      %v2377 = vpop.xlane.xlu0 %2376
      %v2378 = vsel %vm2347, %v2293, -inf
      %2379 = vmax.xlane.f32.xlu0 %v2378
      %v2380 = vpop.xlane.xlu0 %2379
      %v2381 = vsel %vm2347, %v2294, -inf
      %2382 = vmax.xlane.f32.xlu0 %v2381
      %v2383 = vpop.xlane.xlu0 %2382
      %v2384 = vsel %vm2347, %v2295, -inf
      %2385 = vmax.xlane.f32.xlu0 %v2384
      %v2386 = vpop.xlane.xlu0 %2385
      %v2387 = vsel %vm2347, %v2296, -inf
      %2388 = vmax.xlane.f32.xlu0 %v2387
      %v2389 = vpop.xlane.xlu0 %2388
      %v2390 = vsel %vm2347, %v2297, -inf
      %2391 = vmax.xlane.f32.xlu0 %v2390
      %v2392 = vpop.xlane.xlu0 %2391
      %v2393 = vsel %vm2347, %v2298, -inf
      %2394 = vmax.xlane.f32.xlu0 %v2393
      %v2395 = vpop.xlane.xlu0 %2394
      %v2396 = vsel %vm2347, %v2299, -inf
      %2397 = vmax.xlane.f32.xlu0 %v2396
      %v2398 = vpop.xlane.xlu0 %2397
      %v2399 = vsel %vm2347, %v2300, -inf
      %2400 = vmax.xlane.f32.xlu0 %v2399
      %v2401 = vpop.xlane.xlu0 %2400
      %v2402 = vsel %vm2347, %v2301, -inf
      %2403 = vmax.xlane.f32.xlu0 %v2402
      %v2404 = vpop.xlane.xlu0 %2403
      %v2405 = vsel %vm2347, %v2302, -inf
      %2406 = vmax.xlane.f32.xlu0 %v2405
      %v2407 = vpop.xlane.xlu0 %2406
      %v2408 = vsel %vm2347, %v2303, -inf
      %2409 = vmax.xlane.f32.xlu0 %v2408
      %v2410 = vpop.xlane.xlu0 %2409
      %v2411 = vsel %vm2347, %v2304, -inf
      %2412 = vmax.xlane.f32.xlu0 %v2411
      %v2413 = vpop.xlane.xlu0 %2412
      %v2414 = vsel %vm2347, %v2305, -inf
      %2415 = vmax.xlane.f32.xlu0 %v2414
      %v2416 = vpop.xlane.xlu0 %2415
      %v2417 = vsel %vm2347, %v2306, -inf
      %2418 = vmax.xlane.f32.xlu0 %v2417
      %v2419 = vpop.xlane.xlu0 %2418
      %v2420 = vsel %vm2347, %v2307, -inf
      %2421 = vmax.xlane.f32.xlu0 %v2420
      %v2422 = vpop.xlane.xlu0 %2421
      %v2423 = vsel %vm2347, %v2308, -inf
      %2424 = vmax.xlane.f32.xlu0 %v2423
      %v2425 = vpop.xlane.xlu0 %2424
      %v2426 = vsel %vm2347, %v2309, -inf
      %2427 = vmax.xlane.f32.xlu0 %v2426
      %v2428 = vpop.xlane.xlu0 %2427
      %v2429 = vsel %vm2347, %v2310, -inf
      %2430 = vmax.xlane.f32.xlu0 %v2429
      %v2431 = vpop.xlane.xlu0 %2430
      %v2432 = vsel %vm2347, %v2311, -inf
      %2433 = vmax.xlane.f32.xlu0 %v2432
      %v2434 = vpop.xlane.xlu0 %2433
      %v2435 = vsel %vm2347, %v2312, -inf
      %2436 = vmax.xlane.f32.xlu0 %v2435
      %v2437 = vpop.xlane.xlu0 %2436
      %v2438 = vsel %vm2347, %v2313, -inf
      %2439 = vmax.xlane.f32.xlu0 %v2438
      %v2440 = vpop.xlane.xlu0 %2439
      %v2441 = vsel %vm2347, %v2314, -inf
      %2442 = vmax.xlane.f32.xlu0 %v2441
      %v2443 = vpop.xlane.xlu0 %2442
      %v2444 = vsel %vm2347, %v2315, -inf
      %2445 = vmax.xlane.f32.xlu0 %v2444
      %v2446 = vpop.xlane.xlu0 %2445
      %v2447 = vsel %vm2347, %v2316, -inf
      %2448 = vmax.xlane.f32.xlu0 %v2447
      %v2449 = vpop.xlane.xlu0 %2448
      %v2450 = vsel %vm2347, %v2317, -inf
      %2451 = vmax.xlane.f32.xlu0 %v2450
      %v2452 = vpop.xlane.xlu0 %2451
      %v2453 = vsel %vm2347, %v2318, -inf
      %2454 = vmax.xlane.f32.xlu0 %v2453
      %v2455 = vpop.xlane.xlu0 %2454
      %v2456 = vsel %vm2347, %v2319, -inf
      %2457 = vmax.xlane.f32.xlu0 %v2456
      %v2458 = vpop.xlane.xlu0 %2457
      %v2459 = vsel %vm2347, %v2320, -inf
      %2460 = vmax.xlane.f32.xlu0 %v2459
      %v2461 = vpop.xlane.xlu0 %2460
      %v2462 = vsel %vm2347, %v2321, -inf
      %2463 = vmax.xlane.f32.xlu0 %v2462
      %v2464 = vpop.xlane.xlu0 %2463
      %v2465 = vsel %vm2347, %v2322, -inf
      %2466 = vmax.xlane.f32.xlu0 %v2465
      %v2467 = vpop.xlane.xlu0 %2466
      %v2468 = vsel %vm2347, %v2323, -inf
      %2469 = vmax.xlane.f32.xlu0 %v2468
      %v2470 = vpop.xlane.xlu0 %2469
      %v2471 = vsel %vm2347, %v2324, -inf
      %2472 = vmax.xlane.f32.xlu0 %v2471
      %v2473 = vpop.xlane.xlu0 %2472
      %v2474 = vsel %vm2347, %v2325, -inf
      %2475 = vmax.xlane.f32.xlu0 %v2474
      %v2476 = vpop.xlane.xlu0 %2475
      %v2477 = vsel %vm2347, %v2326, -inf
      %2478 = vmax.xlane.f32.xlu0 %v2477
      %v2479 = vpop.xlane.xlu0 %2478
      %v2480 = vsel %vm2347, %v2327, -inf
      %2481 = vmax.xlane.f32.xlu0 %v2480
      %v2482 = vpop.xlane.xlu0 %2481
      %v2483 = vsel %vm2347, %v2328, -inf
      %2484 = vmax.xlane.f32.xlu0 %v2483
      %v2485 = vpop.xlane.xlu0 %2484
      %v2486 = vsel %vm2347, %v2329, -inf
      %2487 = vmax.xlane.f32.xlu0 %v2486
      %v2488 = vpop.xlane.xlu0 %2487
      %v2489 = vsel %vm2347, %v2330, -inf
      %2490 = vmax.xlane.f32.xlu0 %v2489
      %v2491 = vpop.xlane.xlu0 %2490
      %v2492 = vsel %vm2347, %v2331, -inf
      %2493 = vmax.xlane.f32.xlu0 %v2492
      %v2494 = vpop.xlane.xlu0 %2493
      %v2495 = vsel %vm2347, %v2332, -inf
      %2496 = vmax.xlane.f32.xlu0 %v2495
      %v2497 = vpop.xlane.xlu0 %2496
      %v2498 = vsel %vm2347, %v2333, -inf
      %2499 = vmax.xlane.f32.xlu0 %v2498
      %v2500 = vpop.xlane.xlu0 %2499
      %v2501 = vsel %vm2347, %v2334, -inf
      %2502 = vmax.xlane.f32.xlu0 %v2501
      %v2503 = vpop.xlane.xlu0 %2502
      %v2504 = vsel %vm2347, %v2335, -inf
      %2505 = vmax.xlane.f32.xlu0 %v2504
      %v2506 = vpop.xlane.xlu0 %2505
      %v2507 = vsel %vm2347, %v2336, -inf
      %2508 = vmax.xlane.f32.xlu0 %v2507
      %v2509 = vpop.xlane.xlu0 %2508
      %v2510 = vsel %vm2347, %v2337, -inf
      %2511 = vmax.xlane.f32.xlu0 %v2510
      %v2512 = vpop.xlane.xlu0 %2511
      %v2513 = vsel %vm2347, %v2338, -inf
      %2514 = vmax.xlane.f32.xlu0 %v2513
      %v2515 = vpop.xlane.xlu0 %2514
      %v2516 = vsel %vm2347, %v2339, -inf
      %2517 = vmax.xlane.f32.xlu0 %v2516
      %v2518 = vpop.xlane.xlu0 %2517
      %v2519 = vsel %vm2347, %v2340, -inf
      %2520 = vmax.xlane.f32.xlu0 %v2519
      %v2521 = vpop.xlane.xlu0 %2520
      %v2522 = vsel %vm2347, %v2341, -inf
      %2523 = vmax.xlane.f32.xlu0 %v2522
      %v2524 = vpop.xlane.xlu0 %2523
      %v2525 = vsel %vm2347, %v2342, -inf
      %2526 = vmax.xlane.f32.xlu0 %v2525
      %v2527 = vpop.xlane.xlu0 %2526
      %v2528 = vsel %vm2347, %v2343, -inf
      %2529 = vmax.xlane.f32.xlu0 %v2528
      %v2530 = vpop.xlane.xlu0 %2529
      %v2531 = vsel %vm2347, %v2344, -inf
      %2532 = vmax.xlane.f32.xlu0 %v2531
      %v2533 = vpop.xlane.xlu0 %2532
      %v2534 = vsel %vm2347, %v2345, -inf
      %2535 = vmax.xlane.f32.xlu0 %v2534
      %v2536 = vpop.xlane.xlu0 %2535
      %v2537 = vsel %vm2347, %v2346, -inf
      %2538 = vmax.xlane.f32.xlu0 %v2537
      %v2539 = vpop.xlane.xlu0 %2538
      %v2540 = vsub.f32 %v2283, %v2350
      %v2541 = vsub.f32 %v2284, %v2353
      %v2542 = vsub.f32 %v2285, %v2356
      %v2543 = vsub.f32 %v2286, %v2359
      %v2544 = vsub.f32 %v2287, %v2362
      %v2545 = vsub.f32 %v2288, %v2365
      %v2546 = vsub.f32 %v2289, %v2368
      %v2547 = vsub.f32 %v2290, %v2371
      %v2548 = vsub.f32 %v2291, %v2374
      %v2549 = vsub.f32 %v2292, %v2377
      %v2550 = vsub.f32 %v2293, %v2380
      %v2551 = vsub.f32 %v2294, %v2383
      %v2552 = vsub.f32 %v2295, %v2386
      %v2553 = vsub.f32 %v2296, %v2389
      %v2554 = vsub.f32 %v2297, %v2392
      %v2555 = vsub.f32 %v2298, %v2395
      %v2556 = vsub.f32 %v2299, %v2398
      %v2557 = vsub.f32 %v2300, %v2401
      %v2558 = vsub.f32 %v2301, %v2404
      %v2559 = vsub.f32 %v2302, %v2407
      %v2560 = vsub.f32 %v2303, %v2410
      %v2561 = vsub.f32 %v2304, %v2413
      %v2562 = vsub.f32 %v2305, %v2416
      %v2563 = vsub.f32 %v2306, %v2419
      %v2564 = vsub.f32 %v2307, %v2422
      %v2565 = vsub.f32 %v2308, %v2425
      %v2566 = vsub.f32 %v2309, %v2428
      %v2567 = vsub.f32 %v2310, %v2431
      %v2568 = vsub.f32 %v2311, %v2434
      %v2569 = vsub.f32 %v2312, %v2437
      %v2570 = vsub.f32 %v2313, %v2440
      %v2571 = vsub.f32 %v2314, %v2443
      %v2572 = vsub.f32 %v2315, %v2446
      %v2573 = vsub.f32 %v2316, %v2449
      %v2574 = vsub.f32 %v2317, %v2452
      %v2575 = vsub.f32 %v2318, %v2455
      %v2576 = vsub.f32 %v2319, %v2458
      %v2577 = vsub.f32 %v2320, %v2461
      %v2578 = vsub.f32 %v2321, %v2464
      %v2579 = vsub.f32 %v2322, %v2467
      %v2580 = vsub.f32 %v2323, %v2470
      %v2581 = vsub.f32 %v2324, %v2473
      %v2582 = vsub.f32 %v2325, %v2476
      %v2583 = vsub.f32 %v2326, %v2479
      %v2584 = vsub.f32 %v2327, %v2482
      %v2585 = vsub.f32 %v2328, %v2485
      %v2586 = vsub.f32 %v2329, %v2488
      %v2587 = vsub.f32 %v2330, %v2491
      %v2588 = vsub.f32 %v2331, %v2494
      %v2589 = vsub.f32 %v2332, %v2497
      %v2590 = vsub.f32 %v2333, %v2500
      %v2591 = vsub.f32 %v2334, %v2503
      %v2592 = vsub.f32 %v2335, %v2506
      %v2593 = vsub.f32 %v2336, %v2509
      %v2594 = vsub.f32 %v2337, %v2512
      %v2595 = vsub.f32 %v2338, %v2515
      %v2596 = vsub.f32 %v2339, %v2518
      %v2597 = vsub.f32 %v2340, %v2521
      %v2598 = vsub.f32 %v2341, %v2524
      %v2599 = vsub.f32 %v2342, %v2527
      %v2600 = vsub.f32 %v2343, %v2530
      %v2601 = vsub.f32 %v2344, %v2533
      %v2602 = vsub.f32 %v2345, %v2536
      %v2603 = vsub.f32 %v2346, %v2539
      %v2604 = vmul.f32 %v2540, 1.442695
      %v2605 = vpow.pop %v2604
      %v2606 = vmul.f32 %v2541, 1.442695
      %v2607 = vpow.pop %v2606
      %v2608 = vmul.f32 %v2542, 1.442695
      %v2609 = vpow.pop %v2608
      %v2610 = vmul.f32 %v2543, 1.442695
      %v2611 = vpow.pop %v2610
      %v2612 = vmul.f32 %v2544, 1.442695
      %v2613 = vpow.pop %v2612
      %v2614 = vmul.f32 %v2545, 1.442695
      %v2615 = vpow.pop %v2614
      %v2616 = vmul.f32 %v2546, 1.442695
      %v2617 = vpow.pop %v2616
      %v2618 = vmul.f32 %v2547, 1.442695
      %v2619 = vpow.pop %v2618
      %v2620 = vmul.f32 %v2548, 1.442695
      %v2621 = vpow.pop %v2620
      %v2622 = vmul.f32 %v2549, 1.442695
      %v2623 = vpow.pop %v2622
      %v2624 = vmul.f32 %v2550, 1.442695
      %v2625 = vpow.pop %v2624
      %v2626 = vmul.f32 %v2551, 1.442695
      %v2627 = vpow.pop %v2626
      %v2628 = vmul.f32 %v2552, 1.442695
      %v2629 = vpow.pop %v2628
      %v2630 = vmul.f32 %v2553, 1.442695
      %v2631 = vpow.pop %v2630
      %v2632 = vmul.f32 %v2554, 1.442695
      %v2633 = vpow.pop %v2632
      %v2634 = vmul.f32 %v2555, 1.442695
      %v2635 = vpow.pop %v2634
      %v2636 = vmul.f32 %v2556, 1.442695
      %v2637 = vpow.pop %v2636
      %v2638 = vmul.f32 %v2557, 1.442695
      %v2639 = vpow.pop %v2638
      %v2640 = vmul.f32 %v2558, 1.442695
      %v2641 = vpow.pop %v2640
      %v2642 = vmul.f32 %v2559, 1.442695
      %v2643 = vpow.pop %v2642
      %v2644 = vmul.f32 %v2560, 1.442695
      %v2645 = vpow.pop %v2644
      %v2646 = vmul.f32 %v2561, 1.442695
      %v2647 = vpow.pop %v2646
      %v2648 = vmul.f32 %v2562, 1.442695
      %v2649 = vpow.pop %v2648
      %v2650 = vmul.f32 %v2563, 1.442695
      %v2651 = vpow.pop %v2650
      %v2652 = vmul.f32 %v2564, 1.442695
      %v2653 = vpow.pop %v2652
      %v2654 = vmul.f32 %v2565, 1.442695
      %v2655 = vpow.pop %v2654
      %v2656 = vmul.f32 %v2566, 1.442695
      %v2657 = vpow.pop %v2656
      %v2658 = vmul.f32 %v2567, 1.442695
      %v2659 = vpow.pop %v2658
      %v2660 = vmul.f32 %v2568, 1.442695
      %v2661 = vpow.pop %v2660
      %v2662 = vmul.f32 %v2569, 1.442695
      %v2663 = vpow.pop %v2662
      %v2664 = vmul.f32 %v2570, 1.442695
      %v2665 = vpow.pop %v2664
      %v2666 = vmul.f32 %v2571, 1.442695
      %v2667 = vpow.pop %v2666
      %v2668 = vmul.f32 %v2572, 1.442695
      %v2669 = vpow.pop %v2668
      %v2670 = vmul.f32 %v2573, 1.442695
      %v2671 = vpow.pop %v2670
      %v2672 = vmul.f32 %v2574, 1.442695
      %v2673 = vpow.pop %v2672
      %v2674 = vmul.f32 %v2575, 1.442695
      %v2675 = vpow.pop %v2674
      %v2676 = vmul.f32 %v2576, 1.442695
      %v2677 = vpow.pop %v2676
      %v2678 = vmul.f32 %v2577, 1.442695
      %v2679 = vpow.pop %v2678
      %v2680 = vmul.f32 %v2578, 1.442695
      %v2681 = vpow.pop %v2680
      %v2682 = vmul.f32 %v2579, 1.442695
      %v2683 = vpow.pop %v2682
      %v2684 = vmul.f32 %v2580, 1.442695
      %v2685 = vpow.pop %v2684
      %v2686 = vmul.f32 %v2581, 1.442695
      %v2687 = vpow.pop %v2686
      %v2688 = vmul.f32 %v2582, 1.442695
      %v2689 = vpow.pop %v2688
      %v2690 = vmul.f32 %v2583, 1.442695
      %v2691 = vpow.pop %v2690
      %v2692 = vmul.f32 %v2584, 1.442695
      %v2693 = vpow.pop %v2692
      %v2694 = vmul.f32 %v2585, 1.442695
      %v2695 = vpow.pop %v2694
      %v2696 = vmul.f32 %v2586, 1.442695
      %v2697 = vpow.pop %v2696
      %v2698 = vmul.f32 %v2587, 1.442695
      %v2699 = vpow.pop %v2698
      %v2700 = vmul.f32 %v2588, 1.442695
      %v2701 = vpow.pop %v2700
      %v2702 = vmul.f32 %v2589, 1.442695
      %v2703 = vpow.pop %v2702
      %v2704 = vmul.f32 %v2590, 1.442695
      %v2705 = vpow.pop %v2704
      %v2706 = vmul.f32 %v2591, 1.442695
      %v2707 = vpow.pop %v2706
      %v2708 = vmul.f32 %v2592, 1.442695
      %v2709 = vpow.pop %v2708
      %v2710 = vmul.f32 %v2593, 1.442695
      %v2711 = vpow.pop %v2710
      %v2712 = vmul.f32 %v2594, 1.442695
      %v2713 = vpow.pop %v2712
      %v2714 = vmul.f32 %v2595, 1.442695
      %v2715 = vpow.pop %v2714
      %v2716 = vmul.f32 %v2596, 1.442695
      %v2717 = vpow.pop %v2716
      %v2718 = vmul.f32 %v2597, 1.442695
      %v2719 = vpow.pop %v2718
      %v2720 = vmul.f32 %v2598, 1.442695
      %v2721 = vpow.pop %v2720
      %v2722 = vmul.f32 %v2599, 1.442695
      %v2723 = vpow.pop %v2722
      %v2724 = vmul.f32 %v2600, 1.442695
      %v2725 = vpow.pop %v2724
      %v2726 = vmul.f32 %v2601, 1.442695
      %v2727 = vpow.pop %v2726
      %v2728 = vmul.f32 %v2602, 1.442695
      %v2729 = vpow.pop %v2728
      %v2730 = vmul.f32 %v2603, 1.442695
      %v2731 = vpow.pop %v2730
      %2796 = vrot.lane.b32.xlu0 %v2605, 104
      %v2797 = vpop.permute.xlu0 %2796
      %2798 = vrot.lane.b32.xlu0 %v2607, 104
      %v2799 = vpop.permute.xlu0 %2798
      %2800 = vrot.lane.b32.xlu0 %v2609, 104
      %v2801 = vpop.permute.xlu0 %2800
      %2802 = vrot.lane.b32.xlu0 %v2611, 104
      %v2803 = vpop.permute.xlu0 %2802
      %2804 = vrot.lane.b32.xlu0 %v2613, 104
      %v2805 = vpop.permute.xlu0 %2804
      %2806 = vrot.lane.b32.xlu0 %v2615, 104
      %v2807 = vpop.permute.xlu0 %2806
      %2808 = vrot.lane.b32.xlu0 %v2617, 104
      %v2809 = vpop.permute.xlu0 %2808
      %2810 = vrot.lane.b32.xlu0 %v2619, 104
      %v2811 = vpop.permute.xlu0 %2810
      %2812 = vrot.lane.b32.xlu0 %v2621, 104
      %v2813 = vpop.permute.xlu0 %2812
      %2814 = vrot.lane.b32.xlu0 %v2623, 104
      %v2815 = vpop.permute.xlu0 %2814
      %2816 = vrot.lane.b32.xlu0 %v2625, 104
      %v2817 = vpop.permute.xlu0 %2816
      %2818 = vrot.lane.b32.xlu0 %v2627, 104
      %v2819 = vpop.permute.xlu0 %2818
      %2820 = vrot.lane.b32.xlu0 %v2629, 104
      %v2821 = vpop.permute.xlu0 %2820
      %2822 = vrot.lane.b32.xlu0 %v2631, 104
      %v2823 = vpop.permute.xlu0 %2822
      %2824 = vrot.lane.b32.xlu0 %v2633, 104
      %v2825 = vpop.permute.xlu0 %2824
      %2826 = vrot.lane.b32.xlu0 %v2635, 104
      %v2827 = vpop.permute.xlu0 %2826
      %2828 = vrot.lane.b32.xlu0 %v2637, 104
      %v2829 = vpop.permute.xlu0 %2828
      %2830 = vrot.lane.b32.xlu0 %v2639, 104
      %v2831 = vpop.permute.xlu0 %2830
      %2832 = vrot.lane.b32.xlu0 %v2641, 104
      %v2833 = vpop.permute.xlu0 %2832
      %2834 = vrot.lane.b32.xlu0 %v2643, 104
      %v2835 = vpop.permute.xlu0 %2834
      %2836 = vrot.lane.b32.xlu0 %v2645, 104
      %v2837 = vpop.permute.xlu0 %2836
      %2838 = vrot.lane.b32.xlu0 %v2647, 104
      %v2839 = vpop.permute.xlu0 %2838
      %2840 = vrot.lane.b32.xlu0 %v2649, 104
      %v2841 = vpop.permute.xlu0 %2840
      %2842 = vrot.lane.b32.xlu0 %v2651, 104
      %v2843 = vpop.permute.xlu0 %2842
      %2844 = vrot.lane.b32.xlu0 %v2653, 104
      %v2845 = vpop.permute.xlu0 %2844
      %2846 = vrot.lane.b32.xlu0 %v2655, 104
      %v2847 = vpop.permute.xlu0 %2846
      %2848 = vrot.lane.b32.xlu0 %v2657, 104
      %v2849 = vpop.permute.xlu0 %2848
      %2850 = vrot.lane.b32.xlu0 %v2659, 104
      %v2851 = vpop.permute.xlu0 %2850
      %2852 = vrot.lane.b32.xlu0 %v2661, 104
      %v2853 = vpop.permute.xlu0 %2852
      %2854 = vrot.lane.b32.xlu0 %v2663, 104
      %v2855 = vpop.permute.xlu0 %2854
      %2856 = vrot.lane.b32.xlu0 %v2665, 104
      %v2857 = vpop.permute.xlu0 %2856
      %2858 = vrot.lane.b32.xlu0 %v2667, 104
      %v2859 = vpop.permute.xlu0 %2858
      %2860 = vrot.lane.b32.xlu0 %v2669, 104
      %v2861 = vpop.permute.xlu0 %2860
      %2862 = vrot.lane.b32.xlu0 %v2671, 104
      %v2863 = vpop.permute.xlu0 %2862
      %2864 = vrot.lane.b32.xlu0 %v2673, 104
      %v2865 = vpop.permute.xlu0 %2864
      %2866 = vrot.lane.b32.xlu0 %v2675, 104
      %v2867 = vpop.permute.xlu0 %2866
      %2868 = vrot.lane.b32.xlu0 %v2677, 104
      %v2869 = vpop.permute.xlu0 %2868
      %2870 = vrot.lane.b32.xlu0 %v2679, 104
      %v2871 = vpop.permute.xlu0 %2870
      %2872 = vrot.lane.b32.xlu0 %v2681, 104
      %v2873 = vpop.permute.xlu0 %2872
      %2874 = vrot.lane.b32.xlu0 %v2683, 104
      %v2875 = vpop.permute.xlu0 %2874
      %2876 = vrot.lane.b32.xlu0 %v2685, 104
      %v2877 = vpop.permute.xlu0 %2876
      %2878 = vrot.lane.b32.xlu0 %v2687, 104
      %v2879 = vpop.permute.xlu0 %2878
      %2880 = vrot.lane.b32.xlu0 %v2689, 104
      %v2881 = vpop.permute.xlu0 %2880
      %2882 = vrot.lane.b32.xlu0 %v2691, 104
      %v2883 = vpop.permute.xlu0 %2882
      %2884 = vrot.lane.b32.xlu0 %v2693, 104
      %v2885 = vpop.permute.xlu0 %2884
      %2886 = vrot.lane.b32.xlu0 %v2695, 104
      %v2887 = vpop.permute.xlu0 %2886
      %2888 = vrot.lane.b32.xlu0 %v2697, 104
      %v2889 = vpop.permute.xlu0 %2888
      %2890 = vrot.lane.b32.xlu0 %v2699, 104
      %v2891 = vpop.permute.xlu0 %2890
      %2892 = vrot.lane.b32.xlu0 %v2701, 104
      %v2893 = vpop.permute.xlu0 %2892
      %2894 = vrot.lane.b32.xlu0 %v2703, 104
      %v2895 = vpop.permute.xlu0 %2894
      %2896 = vrot.lane.b32.xlu0 %v2705, 104
      %v2897 = vpop.permute.xlu0 %2896
      %2898 = vrot.lane.b32.xlu0 %v2707, 104
      %v2899 = vpop.permute.xlu0 %2898
      %2900 = vrot.lane.b32.xlu0 %v2709, 104
      %v2901 = vpop.permute.xlu0 %2900
      %2902 = vrot.lane.b32.xlu0 %v2711, 104
      %v2903 = vpop.permute.xlu0 %2902
      %2904 = vrot.lane.b32.xlu0 %v2713, 104
      %v2905 = vpop.permute.xlu0 %2904
      %2906 = vrot.lane.b32.xlu0 %v2715, 104
      %v2907 = vpop.permute.xlu0 %2906
      %2908 = vrot.lane.b32.xlu0 %v2717, 104
      %v2909 = vpop.permute.xlu0 %2908
      %2910 = vrot.lane.b32.xlu0 %v2719, 104
      %v2911 = vpop.permute.xlu0 %2910
      %2912 = vrot.lane.b32.xlu0 %v2721, 104
      %v2913 = vpop.permute.xlu0 %2912
      %2914 = vrot.lane.b32.xlu0 %v2723, 104
      %v2915 = vpop.permute.xlu0 %2914
      %2916 = vrot.lane.b32.xlu0 %v2725, 104
      %v2917 = vpop.permute.xlu0 %2916
      %2918 = vrot.lane.b32.xlu0 %v2727, 104
      %v2919 = vpop.permute.xlu0 %2918
      %2920 = vrot.lane.b32.xlu0 %v2729, 104
      %v2921 = vpop.permute.xlu0 %2920
      %2922 = vrot.lane.b32.xlu0 %v2731, 104
      %v2923 = vpop.permute.xlu0 %2922
      %v2988 = vsel %vm1642, %v2797, 0.0
      %2989 = vadd.xlane.f32.xlu0 %v2988
      %v2990 = vpop.xlane.xlu0 %2989
      %v2991 = vsel %vm1642, %v2799, 0.0
      %2992 = vadd.xlane.f32.xlu0 %v2991
      %v2993 = vpop.xlane.xlu0 %2992
      %v2994 = vsel %vm1642, %v2801, 0.0
      %2995 = vadd.xlane.f32.xlu0 %v2994
      %v2996 = vpop.xlane.xlu0 %2995
      %v2997 = vsel %vm1642, %v2803, 0.0
      %2998 = vadd.xlane.f32.xlu0 %v2997
      %v2999 = vpop.xlane.xlu0 %2998
      %v3000 = vsel %vm1642, %v2805, 0.0
      %3001 = vadd.xlane.f32.xlu0 %v3000
      %v3002 = vpop.xlane.xlu0 %3001
      %v3003 = vsel %vm1642, %v2807, 0.0
      %3004 = vadd.xlane.f32.xlu0 %v3003
      %v3005 = vpop.xlane.xlu0 %3004
      %v3006 = vsel %vm1642, %v2809, 0.0
      %3007 = vadd.xlane.f32.xlu0 %v3006
      %v3008 = vpop.xlane.xlu0 %3007
      %v3009 = vsel %vm1642, %v2811, 0.0
      %3010 = vadd.xlane.f32.xlu0 %v3009
      %v3011 = vpop.xlane.xlu0 %3010
      %v3012 = vsel %vm1642, %v2813, 0.0
      %3013 = vadd.xlane.f32.xlu0 %v3012
      %v3014 = vpop.xlane.xlu0 %3013
      %v3015 = vsel %vm1642, %v2815, 0.0
      %3016 = vadd.xlane.f32.xlu0 %v3015
      %v3017 = vpop.xlane.xlu0 %3016
      %v3018 = vsel %vm1642, %v2817, 0.0
      %3019 = vadd.xlane.f32.xlu0 %v3018
      %v3020 = vpop.xlane.xlu0 %3019
      %v3021 = vsel %vm1642, %v2819, 0.0
      %3022 = vadd.xlane.f32.xlu0 %v3021
      %v3023 = vpop.xlane.xlu0 %3022
      %v3024 = vsel %vm1642, %v2821, 0.0
      %3025 = vadd.xlane.f32.xlu0 %v3024
      %v3026 = vpop.xlane.xlu0 %3025
      %v3027 = vsel %vm1642, %v2823, 0.0
      %3028 = vadd.xlane.f32.xlu0 %v3027
      %v3029 = vpop.xlane.xlu0 %3028
      %v3030 = vsel %vm1642, %v2825, 0.0
      %3031 = vadd.xlane.f32.xlu0 %v3030
      %v3032 = vpop.xlane.xlu0 %3031
      %v3033 = vsel %vm1642, %v2827, 0.0
      %3034 = vadd.xlane.f32.xlu0 %v3033
      %v3035 = vpop.xlane.xlu0 %3034
      %v3036 = vsel %vm1642, %v2829, 0.0
      %3037 = vadd.xlane.f32.xlu0 %v3036
      %v3038 = vpop.xlane.xlu0 %3037
      %v3039 = vsel %vm1642, %v2831, 0.0
      %3040 = vadd.xlane.f32.xlu0 %v3039
      %v3041 = vpop.xlane.xlu0 %3040
      %v3042 = vsel %vm1642, %v2833, 0.0
      %3043 = vadd.xlane.f32.xlu0 %v3042
      %v3044 = vpop.xlane.xlu0 %3043
      %v3045 = vsel %vm1642, %v2835, 0.0
      %3046 = vadd.xlane.f32.xlu0 %v3045
      %v3047 = vpop.xlane.xlu0 %3046
      %v3048 = vsel %vm1642, %v2837, 0.0
      %3049 = vadd.xlane.f32.xlu0 %v3048
      %v3050 = vpop.xlane.xlu0 %3049
      %v3051 = vsel %vm1642, %v2839, 0.0
      %3052 = vadd.xlane.f32.xlu0 %v3051
      %v3053 = vpop.xlane.xlu0 %3052
      %v3054 = vsel %vm1642, %v2841, 0.0
      %3055 = vadd.xlane.f32.xlu0 %v3054
      %v3056 = vpop.xlane.xlu0 %3055
      %v3057 = vsel %vm1642, %v2843, 0.0
      %3058 = vadd.xlane.f32.xlu0 %v3057
      %v3059 = vpop.xlane.xlu0 %3058
      %v3060 = vsel %vm1642, %v2845, 0.0
      %3061 = vadd.xlane.f32.xlu0 %v3060
      %v3062 = vpop.xlane.xlu0 %3061
      %v3063 = vsel %vm1642, %v2847, 0.0
      %3064 = vadd.xlane.f32.xlu0 %v3063
      %v3065 = vpop.xlane.xlu0 %3064
      %v3066 = vsel %vm1642, %v2849, 0.0
      %3067 = vadd.xlane.f32.xlu0 %v3066
      %v3068 = vpop.xlane.xlu0 %3067
      %v3069 = vsel %vm1642, %v2851, 0.0
      %3070 = vadd.xlane.f32.xlu0 %v3069
      %v3071 = vpop.xlane.xlu0 %3070
      %v3072 = vsel %vm1642, %v2853, 0.0
      %3073 = vadd.xlane.f32.xlu0 %v3072
      %v3074 = vpop.xlane.xlu0 %3073
      %v3075 = vsel %vm1642, %v2855, 0.0
      %3076 = vadd.xlane.f32.xlu0 %v3075
      %v3077 = vpop.xlane.xlu0 %3076
      %v3078 = vsel %vm1642, %v2857, 0.0
      %3079 = vadd.xlane.f32.xlu0 %v3078
      %v3080 = vpop.xlane.xlu0 %3079
      %v3081 = vsel %vm1642, %v2859, 0.0
      %3082 = vadd.xlane.f32.xlu0 %v3081
      %v3083 = vpop.xlane.xlu0 %3082
      %v3084 = vsel %vm1642, %v2861, 0.0
      %3085 = vadd.xlane.f32.xlu0 %v3084
      %v3086 = vpop.xlane.xlu0 %3085
      %v3087 = vsel %vm1642, %v2863, 0.0
      %3088 = vadd.xlane.f32.xlu0 %v3087
      %v3089 = vpop.xlane.xlu0 %3088
      %v3090 = vsel %vm1642, %v2865, 0.0
      %3091 = vadd.xlane.f32.xlu0 %v3090
      %v3092 = vpop.xlane.xlu0 %3091
      %v3093 = vsel %vm1642, %v2867, 0.0
      %3094 = vadd.xlane.f32.xlu0 %v3093
      %v3095 = vpop.xlane.xlu0 %3094
      %v3096 = vsel %vm1642, %v2869, 0.0
      %3097 = vadd.xlane.f32.xlu0 %v3096
      %v3098 = vpop.xlane.xlu0 %3097
      %v3099 = vsel %vm1642, %v2871, 0.0
      %3100 = vadd.xlane.f32.xlu0 %v3099
      %v3101 = vpop.xlane.xlu0 %3100
      %v3102 = vsel %vm1642, %v2873, 0.0
      %3103 = vadd.xlane.f32.xlu0 %v3102
      %v3104 = vpop.xlane.xlu0 %3103
      %v3105 = vsel %vm1642, %v2875, 0.0
      %3106 = vadd.xlane.f32.xlu0 %v3105
      %v3107 = vpop.xlane.xlu0 %3106
      %v3108 = vsel %vm1642, %v2877, 0.0
      %3109 = vadd.xlane.f32.xlu0 %v3108
      %v3110 = vpop.xlane.xlu0 %3109
      %v3111 = vsel %vm1642, %v2879, 0.0
      %3112 = vadd.xlane.f32.xlu0 %v3111
      %v3113 = vpop.xlane.xlu0 %3112
      %v3114 = vsel %vm1642, %v2881, 0.0
      %3115 = vadd.xlane.f32.xlu0 %v3114
      %v3116 = vpop.xlane.xlu0 %3115
      %v3117 = vsel %vm1642, %v2883, 0.0
      %3118 = vadd.xlane.f32.xlu0 %v3117
      %v3119 = vpop.xlane.xlu0 %3118
      %v3120 = vsel %vm1642, %v2885, 0.0
      %3121 = vadd.xlane.f32.xlu0 %v3120
      %v3122 = vpop.xlane.xlu0 %3121
      %v3123 = vsel %vm1642, %v2887, 0.0
      %3124 = vadd.xlane.f32.xlu0 %v3123
      %v3125 = vpop.xlane.xlu0 %3124
      %v3126 = vsel %vm1642, %v2889, 0.0
      %3127 = vadd.xlane.f32.xlu0 %v3126
      %v3128 = vpop.xlane.xlu0 %3127
      %v3129 = vsel %vm1642, %v2891, 0.0
      %3130 = vadd.xlane.f32.xlu0 %v3129
      %v3131 = vpop.xlane.xlu0 %3130
      %v3132 = vsel %vm1642, %v2893, 0.0
      %3133 = vadd.xlane.f32.xlu0 %v3132
      %v3134 = vpop.xlane.xlu0 %3133
      %v3135 = vsel %vm1642, %v2895, 0.0
      %3136 = vadd.xlane.f32.xlu0 %v3135
      %v3137 = vpop.xlane.xlu0 %3136
      %v3138 = vsel %vm1642, %v2897, 0.0
      %3139 = vadd.xlane.f32.xlu0 %v3138
      %v3140 = vpop.xlane.xlu0 %3139
      %v3141 = vsel %vm1642, %v2899, 0.0
      %3142 = vadd.xlane.f32.xlu0 %v3141
      %v3143 = vpop.xlane.xlu0 %3142
      %v3144 = vsel %vm1642, %v2901, 0.0
      %3145 = vadd.xlane.f32.xlu0 %v3144
      %v3146 = vpop.xlane.xlu0 %3145
      %v3147 = vsel %vm1642, %v2903, 0.0
      %3148 = vadd.xlane.f32.xlu0 %v3147
      %v3149 = vpop.xlane.xlu0 %3148
      %v3150 = vsel %vm1642, %v2905, 0.0
      %3151 = vadd.xlane.f32.xlu0 %v3150
      %v3152 = vpop.xlane.xlu0 %3151
      %v3153 = vsel %vm1642, %v2907, 0.0
      %3154 = vadd.xlane.f32.xlu0 %v3153
      %v3155 = vpop.xlane.xlu0 %3154
      %v3156 = vsel %vm1642, %v2909, 0.0
      %3157 = vadd.xlane.f32.xlu0 %v3156
      %v3158 = vpop.xlane.xlu0 %3157
      %v3159 = vsel %vm1642, %v2911, 0.0
      %3160 = vadd.xlane.f32.xlu0 %v3159
      %v3161 = vpop.xlane.xlu0 %3160
      %v3162 = vsel %vm1642, %v2913, 0.0
      %3163 = vadd.xlane.f32.xlu0 %v3162
      %v3164 = vpop.xlane.xlu0 %3163
      %v3165 = vsel %vm1642, %v2915, 0.0
      %3166 = vadd.xlane.f32.xlu0 %v3165
      %v3167 = vpop.xlane.xlu0 %3166
      %v3168 = vsel %vm1642, %v2917, 0.0
      %3169 = vadd.xlane.f32.xlu0 %v3168
      %v3170 = vpop.xlane.xlu0 %3169
      %v3171 = vsel %vm1642, %v2919, 0.0
      %3172 = vadd.xlane.f32.xlu0 %v3171
      %v3173 = vpop.xlane.xlu0 %3172
      %v3174 = vsel %vm1642, %v2921, 0.0
      %3175 = vadd.xlane.f32.xlu0 %v3174
      %v3176 = vpop.xlane.xlu0 %3175
      %v3177 = vsel %vm1642, %v2923, 0.0
      %3178 = vadd.xlane.f32.xlu0 %v3177
      %v3179 = vpop.xlane.xlu0 %3178
      %v3180 = vrcp.pop %v2990
      %v3181 = vrcp.pop %v2993
      %v3182 = vrcp.pop %v2996
      %v3183 = vrcp.pop %v2999
      %v3184 = vrcp.pop %v3002
      %v3185 = vrcp.pop %v3005
      %v3186 = vrcp.pop %v3008
      %v3187 = vrcp.pop %v3011
      %v3188 = vrcp.pop %v3014
      %v3189 = vrcp.pop %v3017
      %v3190 = vrcp.pop %v3020
      %v3191 = vrcp.pop %v3023
      %v3192 = vrcp.pop %v3026
      %v3193 = vrcp.pop %v3029
      %v3194 = vrcp.pop %v3032
      %v3195 = vrcp.pop %v3035
      %v3196 = vrcp.pop %v3038
      %v3197 = vrcp.pop %v3041
      %v3198 = vrcp.pop %v3044
      %v3199 = vrcp.pop %v3047
      %v3200 = vrcp.pop %v3050
      %v3201 = vrcp.pop %v3053
      %v3202 = vrcp.pop %v3056
      %v3203 = vrcp.pop %v3059
      %v3204 = vrcp.pop %v3062
      %v3205 = vrcp.pop %v3065
      %v3206 = vrcp.pop %v3068
      %v3207 = vrcp.pop %v3071
      %v3208 = vrcp.pop %v3074
      %v3209 = vrcp.pop %v3077
      %v3210 = vrcp.pop %v3080
      %v3211 = vrcp.pop %v3083
      %v3212 = vrcp.pop %v3086
      %v3213 = vrcp.pop %v3089
      %v3214 = vrcp.pop %v3092
      %v3215 = vrcp.pop %v3095
      %v3216 = vrcp.pop %v3098
      %v3217 = vrcp.pop %v3101
      %v3218 = vrcp.pop %v3104
      %v3219 = vrcp.pop %v3107
      %v3220 = vrcp.pop %v3110
      %v3221 = vrcp.pop %v3113
      %v3222 = vrcp.pop %v3116
      %v3223 = vrcp.pop %v3119
      %v3224 = vrcp.pop %v3122
      %v3225 = vrcp.pop %v3125
      %v3226 = vrcp.pop %v3128
      %v3227 = vrcp.pop %v3131
      %v3228 = vrcp.pop %v3134
      %v3229 = vrcp.pop %v3137
      %v3230 = vrcp.pop %v3140
      %v3231 = vrcp.pop %v3143
      %v3232 = vrcp.pop %v3146
      %v3233 = vrcp.pop %v3149
      %v3234 = vrcp.pop %v3152
      %v3235 = vrcp.pop %v3155
      %v3236 = vrcp.pop %v3158
      %v3237 = vrcp.pop %v3161
      %v3238 = vrcp.pop %v3164
      %v3239 = vrcp.pop %v3167
      %v3240 = vrcp.pop %v3170
      %v3241 = vrcp.pop %v3173
      %v3242 = vrcp.pop %v3176
      %v3243 = vrcp.pop %v3179
      %v3244 = vmul.f32 %v2605, %v3180
      %v3245 = vmul.f32 %v2607, %v3181
      %v3246 = vmul.f32 %v2609, %v3182
      %v3247 = vmul.f32 %v2611, %v3183
      %v3248 = vmul.f32 %v2613, %v3184
      %v3249 = vmul.f32 %v2615, %v3185
      %v3250 = vmul.f32 %v2617, %v3186
      %v3251 = vmul.f32 %v2619, %v3187
      %v3252 = vmul.f32 %v2621, %v3188
      %v3253 = vmul.f32 %v2623, %v3189
      %v3254 = vmul.f32 %v2625, %v3190
      %v3255 = vmul.f32 %v2627, %v3191
      %v3256 = vmul.f32 %v2629, %v3192
      %v3257 = vmul.f32 %v2631, %v3193
      %v3258 = vmul.f32 %v2633, %v3194
      %v3259 = vmul.f32 %v2635, %v3195
      %v3260 = vmul.f32 %v2637, %v3196
      %v3261 = vmul.f32 %v2639, %v3197
      %v3262 = vmul.f32 %v2641, %v3198
      %v3263 = vmul.f32 %v2643, %v3199
      %v3264 = vmul.f32 %v2645, %v3200
      %v3265 = vmul.f32 %v2647, %v3201
      %v3266 = vmul.f32 %v2649, %v3202
      %v3267 = vmul.f32 %v2651, %v3203
      %v3268 = vmul.f32 %v2653, %v3204
      %v3269 = vmul.f32 %v2655, %v3205
      %v3270 = vmul.f32 %v2657, %v3206
      %v3271 = vmul.f32 %v2659, %v3207
      %v3272 = vmul.f32 %v2661, %v3208
      %v3273 = vmul.f32 %v2663, %v3209
      %v3274 = vmul.f32 %v2665, %v3210
      %v3275 = vmul.f32 %v2667, %v3211
      %v3276 = vmul.f32 %v2669, %v3212
      %v3277 = vmul.f32 %v2671, %v3213
      %v3278 = vmul.f32 %v2673, %v3214
      %v3279 = vmul.f32 %v2675, %v3215
      %v3280 = vmul.f32 %v2677, %v3216
      %v3281 = vmul.f32 %v2679, %v3217
      %v3282 = vmul.f32 %v2681, %v3218
      %v3283 = vmul.f32 %v2683, %v3219
      %v3284 = vmul.f32 %v2685, %v3220
      %v3285 = vmul.f32 %v2687, %v3221
      %v3286 = vmul.f32 %v2689, %v3222
      %v3287 = vmul.f32 %v2691, %v3223
      %v3288 = vmul.f32 %v2693, %v3224
      %v3289 = vmul.f32 %v2695, %v3225
      %v3290 = vmul.f32 %v2697, %v3226
      %v3291 = vmul.f32 %v2699, %v3227
      %v3292 = vmul.f32 %v2701, %v3228
      %v3293 = vmul.f32 %v2703, %v3229
      %v3294 = vmul.f32 %v2705, %v3230
      %v3295 = vmul.f32 %v2707, %v3231
      %v3296 = vmul.f32 %v2709, %v3232
      %v3297 = vmul.f32 %v2711, %v3233
      %v3298 = vmul.f32 %v2713, %v3234
      %v3299 = vmul.f32 %v2715, %v3235
      %v3300 = vmul.f32 %v2717, %v3236
      %v3301 = vmul.f32 %v2719, %v3237
      %v3302 = vmul.f32 %v2721, %v3238
      %v3303 = vmul.f32 %v2723, %v3239
      %v3304 = vmul.f32 %v2725, %v3240
      %v3305 = vmul.f32 %v2727, %v3241
      %v3306 = vmul.f32 %v2729, %v3242
      %v3307 = vmul.f32 %v2731, %v3243
      %vm3308 = vcmask 31744
      %v3309 = vsel %vm3308, %v297, %v618
      %v3310 = vsel %vm3308, %v298, %v620
      %v3311 = vsel %vm3308, %v299, %v622
      %v3312 = vsel %vm3308, %v300, %v624
      %v3313 = vsel %vm3308, %v301, %v626
      %v3314 = vsel %vm3308, %v302, %v628
      %v3315 = vsel %vm3308, %v303, %v630
      %v3316 = vsel %vm3308, %v304, %v632
      %v3317 = vsel %vm3308, %v305, %v634
      %v3318 = vsel %vm3308, %v306, %v636
      %v3319 = vsel %vm3308, %v307, %v638
      %v3320 = vsel %vm3308, %v308, %v640
      %v3321 = vsel %vm3308, %v309, %v642
      %v3322 = vsel %vm3308, %v310, %v644
      %v3323 = vsel %vm3308, %v311, %v646
      %v3324 = vsel %vm3308, %v312, %v648
      %v3325 = vsel %vm3308, %v313, %v650
      %v3326 = vsel %vm3308, %v314, %v652
      %v3327 = vsel %vm3308, %v315, %v654
      %v3328 = vsel %vm3308, %v316, %v656
      %v3329 = vsel %vm3308, %v317, %v658
      %v3330 = vsel %vm3308, %v318, %v660
      %v3331 = vsel %vm3308, %v319, %v662
      %v3332 = vsel %vm3308, %v320, %v664
      %v3333 = vsel %vm3308, %v321, %v666
      %v3334 = vsel %vm3308, %v322, %v668
      %v3335 = vsel %vm3308, %v323, %v670
      %v3336 = vsel %vm3308, %v324, %v672
      %v3337 = vsel %vm3308, %v325, %v674
      %v3338 = vsel %vm3308, %v326, %v676
      %v3339 = vsel %vm3308, %v327, %v678
      %v3340 = vsel %vm3308, %v328, %v680
      %v3341 = vsel %vm3308, %v329, %v682
      %v3342 = vsel %vm3308, %v330, %v684
      %v3343 = vsel %vm3308, %v331, %v686
      %v3344 = vsel %vm3308, %v332, %v688
      %v3345 = vsel %vm3308, %v333, %v690
      %v3346 = vsel %vm3308, %v334, %v692
      %v3347 = vsel %vm3308, %v335, %v694
      %v3348 = vsel %vm3308, %v336, %v696
      %v3349 = vsel %vm3308, %v337, %v698
      %v3350 = vsel %vm3308, %v338, %v700
      %v3351 = vsel %vm3308, %v339, %v702
      %v3352 = vsel %vm3308, %v340, %v704
      %v3353 = vsel %vm3308, %v341, %v706
      %v3354 = vsel %vm3308, %v342, %v708
      %v3355 = vsel %vm3308, %v343, %v710
      %v3356 = vsel %vm3308, %v344, %v712
      %v3357 = vsel %vm3308, %v345, %v714
      %v3358 = vsel %vm3308, %v346, %v716
      %v3359 = vsel %vm3308, %v347, %v718
      %v3360 = vsel %vm3308, %v348, %v720
      %v3361 = vsel %vm3308, %v349, %v722
      %v3362 = vsel %vm3308, %v350, %v724
      %v3363 = vsel %vm3308, %v351, %v726
      %v3364 = vsel %vm3308, %v352, %v728
      %v3365 = vsel %vm3308, %v353, %v730
      %v3366 = vsel %vm3308, %v354, %v732
      %v3367 = vsel %vm3308, %v355, %v734
      %v3368 = vsel %vm3308, %v356, %v736
      %v3369 = vsel %vm3308, %v357, %v738
      %v3370 = vsel %vm3308, %v358, %v740
      %v3371 = vsel %vm3308, %v359, %v742
      %v3372 = vsel %vm3308, %v360, %v744
      %v3373 = vsel %vm1642, %v3309, %v745
      %v3374 = vsel %vm1642, %v3310, %v746
      %v3375 = vsel %vm1642, %v3311, %v747
      %v3376 = vsel %vm1642, %v3312, %v748
      %v3377 = vsel %vm1642, %v3313, %v749
      %v3378 = vsel %vm1642, %v3314, %v750
      %v3379 = vsel %vm1642, %v3315, %v751
      %v3380 = vsel %vm1642, %v3316, %v752
      %v3381 = vsel %vm1642, %v3317, %v753
      %v3382 = vsel %vm1642, %v3318, %v754
      %v3383 = vsel %vm1642, %v3319, %v755
      %v3384 = vsel %vm1642, %v3320, %v756
      %v3385 = vsel %vm1642, %v3321, %v757
      %v3386 = vsel %vm1642, %v3322, %v758
      %v3387 = vsel %vm1642, %v3323, %v759
      %v3388 = vsel %vm1642, %v3324, %v760
      %v3389 = vsel %vm1642, %v3325, %v761
      %v3390 = vsel %vm1642, %v3326, %v762
      %v3391 = vsel %vm1642, %v3327, %v763
      %v3392 = vsel %vm1642, %v3328, %v764
      %v3393 = vsel %vm1642, %v3329, %v765
      %v3394 = vsel %vm1642, %v3330, %v766
      %v3395 = vsel %vm1642, %v3331, %v767
      %v3396 = vsel %vm1642, %v3332, %v768
      %v3397 = vsel %vm1642, %v3333, %v769
      %v3398 = vsel %vm1642, %v3334, %v770
      %v3399 = vsel %vm1642, %v3335, %v771
      %v3400 = vsel %vm1642, %v3336, %v772
      %v3401 = vsel %vm1642, %v3337, %v773
      %v3402 = vsel %vm1642, %v3338, %v774
      %v3403 = vsel %vm1642, %v3339, %v775
      %v3404 = vsel %vm1642, %v3340, %v776
      %v3405 = vsel %vm1642, %v3341, %v777
      %v3406 = vsel %vm1642, %v3342, %v778
      %v3407 = vsel %vm1642, %v3343, %v779
      %v3408 = vsel %vm1642, %v3344, %v780
      %v3409 = vsel %vm1642, %v3345, %v781
      %v3410 = vsel %vm1642, %v3346, %v782
      %v3411 = vsel %vm1642, %v3347, %v783
      %v3412 = vsel %vm1642, %v3348, %v784
      %v3413 = vsel %vm1642, %v3349, %v785
      %v3414 = vsel %vm1642, %v3350, %v786
      %v3415 = vsel %vm1642, %v3351, %v787
      %v3416 = vsel %vm1642, %v3352, %v788
      %v3417 = vsel %vm1642, %v3353, %v789
      %v3418 = vsel %vm1642, %v3354, %v790
      %v3419 = vsel %vm1642, %v3355, %v791
      %v3420 = vsel %vm1642, %v3356, %v792
      %v3421 = vsel %vm1642, %v3357, %v793
      %v3422 = vsel %vm1642, %v3358, %v794
      %v3423 = vsel %vm1642, %v3359, %v795
      %v3424 = vsel %vm1642, %v3360, %v796
      %v3425 = vsel %vm1642, %v3361, %v797
      %v3426 = vsel %vm1642, %v3362, %v798
      %v3427 = vsel %vm1642, %v3363, %v799
      %v3428 = vsel %vm1642, %v3364, %v800
      %v3429 = vsel %vm1642, %v3365, %v801
      %v3430 = vsel %vm1642, %v3366, %v802
      %v3431 = vsel %vm1642, %v3367, %v803
      %v3432 = vsel %vm1642, %v3368, %v804
      %v3433 = vsel %vm1642, %v3369, %v805
      %v3434 = vsel %vm1642, %v3370, %v806
      %v3435 = vsel %vm1642, %v3371, %v807
      %v3436 = vsel %vm1642, %v3372, %v808
      %vm3437 = vcmask 97280
      %v3438 = vsel %vm3437, %v3373, %v937
      %v3439 = vsel %vm3437, %v3374, %v938
      %v3440 = vsel %vm3437, %v3375, %v939
      %v3441 = vsel %vm3437, %v3376, %v940
      %v3442 = vsel %vm3437, %v3377, %v941
      %v3443 = vsel %vm3437, %v3378, %v942
      %v3444 = vsel %vm3437, %v3379, %v943
      %v3445 = vsel %vm3437, %v3380, %v944
      %v3446 = vsel %vm3437, %v3381, %v945
      %v3447 = vsel %vm3437, %v3382, %v946
      %v3448 = vsel %vm3437, %v3383, %v947
      %v3449 = vsel %vm3437, %v3384, %v948
      %v3450 = vsel %vm3437, %v3385, %v949
      %v3451 = vsel %vm3437, %v3386, %v950
      %v3452 = vsel %vm3437, %v3387, %v951
      %v3453 = vsel %vm3437, %v3388, %v952
      %v3454 = vsel %vm3437, %v3389, %v953
      %v3455 = vsel %vm3437, %v3390, %v954
      %v3456 = vsel %vm3437, %v3391, %v955
      %v3457 = vsel %vm3437, %v3392, %v956
      %v3458 = vsel %vm3437, %v3393, %v957
      %v3459 = vsel %vm3437, %v3394, %v958
      %v3460 = vsel %vm3437, %v3395, %v959
      %v3461 = vsel %vm3437, %v3396, %v960
      %v3462 = vsel %vm3437, %v3397, %v961
      %v3463 = vsel %vm3437, %v3398, %v962
      %v3464 = vsel %vm3437, %v3399, %v963
      %v3465 = vsel %vm3437, %v3400, %v964
      %v3466 = vsel %vm3437, %v3401, %v965
      %v3467 = vsel %vm3437, %v3402, %v966
      %v3468 = vsel %vm3437, %v3403, %v967
      %v3469 = vsel %vm3437, %v3404, %v968
      %v3470 = vsel %vm3437, %v3405, %v969
      %v3471 = vsel %vm3437, %v3406, %v970
      %v3472 = vsel %vm3437, %v3407, %v971
      %v3473 = vsel %vm3437, %v3408, %v972
      %v3474 = vsel %vm3437, %v3409, %v973
      %v3475 = vsel %vm3437, %v3410, %v974
      %v3476 = vsel %vm3437, %v3411, %v975
      %v3477 = vsel %vm3437, %v3412, %v976
      %v3478 = vsel %vm3437, %v3413, %v977
      %v3479 = vsel %vm3437, %v3414, %v978
      %v3480 = vsel %vm3437, %v3415, %v979
      %v3481 = vsel %vm3437, %v3416, %v980
      %v3482 = vsel %vm3437, %v3417, %v981
      %v3483 = vsel %vm3437, %v3418, %v982
      %v3484 = vsel %vm3437, %v3419, %v983
      %v3485 = vsel %vm3437, %v3420, %v984
      %v3486 = vsel %vm3437, %v3421, %v985
      %v3487 = vsel %vm3437, %v3422, %v986
      %v3488 = vsel %vm3437, %v3423, %v987
      %v3489 = vsel %vm3437, %v3424, %v988
      %v3490 = vsel %vm3437, %v3425, %v989
      %v3491 = vsel %vm3437, %v3426, %v990
      %v3492 = vsel %vm3437, %v3427, %v991
      %v3493 = vsel %vm3437, %v3428, %v992
      %v3494 = vsel %vm3437, %v3429, %v993
      %v3495 = vsel %vm3437, %v3430, %v994
      %v3496 = vsel %vm3437, %v3431, %v995
      %v3497 = vsel %vm3437, %v3432, %v996
      %v3498 = vsel %vm3437, %v3433, %v997
      %v3499 = vsel %vm3437, %v3434, %v998
      %v3500 = vsel %vm3437, %v3435, %v999
      %v3501 = vsel %vm3437, %v3436, %v1000
      %vm3502 = vcmask 130048
      %v3503 = vsel %vm3502, %v3438, %v1899
      %v3504 = vsel %vm3502, %v3439, %v1900
      %v3505 = vsel %vm3502, %v3440, %v1901
      %v3506 = vsel %vm3502, %v3441, %v1902
      %v3507 = vsel %vm3502, %v3442, %v1903
      %v3508 = vsel %vm3502, %v3443, %v1904
      %v3509 = vsel %vm3502, %v3444, %v1905
      %v3510 = vsel %vm3502, %v3445, %v1906
      %v3511 = vsel %vm3502, %v3446, %v1907
      %v3512 = vsel %vm3502, %v3447, %v1908
      %v3513 = vsel %vm3502, %v3448, %v1909
      %v3514 = vsel %vm3502, %v3449, %v1910
      %v3515 = vsel %vm3502, %v3450, %v1911
      %v3516 = vsel %vm3502, %v3451, %v1912
      %v3517 = vsel %vm3502, %v3452, %v1913
      %v3518 = vsel %vm3502, %v3453, %v1914
      %v3519 = vsel %vm3502, %v3454, %v1915
      %v3520 = vsel %vm3502, %v3455, %v1916
      %v3521 = vsel %vm3502, %v3456, %v1917
      %v3522 = vsel %vm3502, %v3457, %v1918
      %v3523 = vsel %vm3502, %v3458, %v1919
      %v3524 = vsel %vm3502, %v3459, %v1920
      %v3525 = vsel %vm3502, %v3460, %v1921
      %v3526 = vsel %vm3502, %v3461, %v1922
      %v3527 = vsel %vm3502, %v3462, %v1923
      %v3528 = vsel %vm3502, %v3463, %v1924
      %v3529 = vsel %vm3502, %v3464, %v1925
      %v3530 = vsel %vm3502, %v3465, %v1926
      %v3531 = vsel %vm3502, %v3466, %v1927
      %v3532 = vsel %vm3502, %v3467, %v1928
      %v3533 = vsel %vm3502, %v3468, %v1929
      %v3534 = vsel %vm3502, %v3469, %v1930
      %v3535 = vsel %vm3502, %v3470, %v1931
      %v3536 = vsel %vm3502, %v3471, %v1932
      %v3537 = vsel %vm3502, %v3472, %v1933
      %v3538 = vsel %vm3502, %v3473, %v1934
      %v3539 = vsel %vm3502, %v3474, %v1935
      %v3540 = vsel %vm3502, %v3475, %v1936
      %v3541 = vsel %vm3502, %v3476, %v1937
      %v3542 = vsel %vm3502, %v3477, %v1938
      %v3543 = vsel %vm3502, %v3478, %v1939
      %v3544 = vsel %vm3502, %v3479, %v1940
      %v3545 = vsel %vm3502, %v3480, %v1941
      %v3546 = vsel %vm3502, %v3481, %v1942
      %v3547 = vsel %vm3502, %v3482, %v1943
      %v3548 = vsel %vm3502, %v3483, %v1944
      %v3549 = vsel %vm3502, %v3484, %v1945
      %v3550 = vsel %vm3502, %v3485, %v1946
      %v3551 = vsel %vm3502, %v3486, %v1947
      %v3552 = vsel %vm3502, %v3487, %v1948
      %v3553 = vsel %vm3502, %v3488, %v1949
      %v3554 = vsel %vm3502, %v3489, %v1950
      %v3555 = vsel %vm3502, %v3490, %v1951
      %v3556 = vsel %vm3502, %v3491, %v1952
      %v3557 = vsel %vm3502, %v3492, %v1953
      %v3558 = vsel %vm3502, %v3493, %v1954
      %v3559 = vsel %vm3502, %v3494, %v1955
      %v3560 = vsel %vm3502, %v3495, %v1956
      %v3561 = vsel %vm3502, %v3496, %v1957
      %v3562 = vsel %vm3502, %v3497, %v1958
      %v3563 = vsel %vm3502, %v3498, %v1959
      %v3564 = vsel %vm3502, %v3499, %v1960
      %v3565 = vsel %vm3502, %v3500, %v1961
      %v3566 = vsel %vm3502, %v3501, %v1962
      %vm3567 = vcmask 195584
      %v3568 = vsel %vm3567, %v3503, %v3244
      %v3569 = vsel %vm3567, %v3504, %v3245
      %v3570 = vsel %vm3567, %v3505, %v3246
      %v3571 = vsel %vm3567, %v3506, %v3247
      %v3572 = vsel %vm3567, %v3507, %v3248
      %v3573 = vsel %vm3567, %v3508, %v3249
      %v3574 = vsel %vm3567, %v3509, %v3250
      %v3575 = vsel %vm3567, %v3510, %v3251
      %v3576 = vsel %vm3567, %v3511, %v3252
      %v3577 = vsel %vm3567, %v3512, %v3253
      %v3578 = vsel %vm3567, %v3513, %v3254
      %v3579 = vsel %vm3567, %v3514, %v3255
      %v3580 = vsel %vm3567, %v3515, %v3256
      %v3581 = vsel %vm3567, %v3516, %v3257
      %v3582 = vsel %vm3567, %v3517, %v3258
      %v3583 = vsel %vm3567, %v3518, %v3259
      %v3584 = vsel %vm3567, %v3519, %v3260
      %v3585 = vsel %vm3567, %v3520, %v3261
      %v3586 = vsel %vm3567, %v3521, %v3262
      %v3587 = vsel %vm3567, %v3522, %v3263
      %v3588 = vsel %vm3567, %v3523, %v3264
      %v3589 = vsel %vm3567, %v3524, %v3265
      %v3590 = vsel %vm3567, %v3525, %v3266
      %v3591 = vsel %vm3567, %v3526, %v3267
      %v3592 = vsel %vm3567, %v3527, %v3268
      %v3593 = vsel %vm3567, %v3528, %v3269
      %v3594 = vsel %vm3567, %v3529, %v3270
      %v3595 = vsel %vm3567, %v3530, %v3271
      %v3596 = vsel %vm3567, %v3531, %v3272
      %v3597 = vsel %vm3567, %v3532, %v3273
      %v3598 = vsel %vm3567, %v3533, %v3274
      %v3599 = vsel %vm3567, %v3534, %v3275
      %v3600 = vsel %vm3567, %v3535, %v3276
      %v3601 = vsel %vm3567, %v3536, %v3277
      %v3602 = vsel %vm3567, %v3537, %v3278
      %v3603 = vsel %vm3567, %v3538, %v3279
      %v3604 = vsel %vm3567, %v3539, %v3280
      %v3605 = vsel %vm3567, %v3540, %v3281
      %v3606 = vsel %vm3567, %v3541, %v3282
      %v3607 = vsel %vm3567, %v3542, %v3283
      %v3608 = vsel %vm3567, %v3543, %v3284
      %v3609 = vsel %vm3567, %v3544, %v3285
      %v3610 = vsel %vm3567, %v3545, %v3286
      %v3611 = vsel %vm3567, %v3546, %v3287
      %v3612 = vsel %vm3567, %v3547, %v3288
      %v3613 = vsel %vm3567, %v3548, %v3289
      %v3614 = vsel %vm3567, %v3549, %v3290
      %v3615 = vsel %vm3567, %v3550, %v3291
      %v3616 = vsel %vm3567, %v3551, %v3292
      %v3617 = vsel %vm3567, %v3552, %v3293
      %v3618 = vsel %vm3567, %v3553, %v3294
      %v3619 = vsel %vm3567, %v3554, %v3295
      %v3620 = vsel %vm3567, %v3555, %v3296
      %v3621 = vsel %vm3567, %v3556, %v3297
      %v3622 = vsel %vm3567, %v3557, %v3298
      %v3623 = vsel %vm3567, %v3558, %v3299
      %v3624 = vsel %vm3567, %v3559, %v3300
      %v3625 = vsel %vm3567, %v3560, %v3301
      %v3626 = vsel %vm3567, %v3561, %v3302
      %v3627 = vsel %vm3567, %v3562, %v3303
      %v3628 = vsel %vm3567, %v3563, %v3304
      %v3629 = vsel %vm3567, %v3564, %v3305
      %v3630 = vsel %vm3567, %v3565, %v3306
      %v3631 = vsel %vm3567, %v3566, %v3307
      %vm3632 = vcmask 261120
      %v3633 = vsel %vm3632, %v3568, %v233
      %v3634 = vsel %vm3632, %v3569, %v234
      %v3635 = vsel %vm3632, %v3570, %v235
      %v3636 = vsel %vm3632, %v3571, %v236
      %v3637 = vsel %vm3632, %v3572, %v237
      %v3638 = vsel %vm3632, %v3573, %v238
      %v3639 = vsel %vm3632, %v3574, %v239
      %v3640 = vsel %vm3632, %v3575, %v240
      %v3641 = vsel %vm3632, %v3576, %v241
      %v3642 = vsel %vm3632, %v3577, %v242
      %v3643 = vsel %vm3632, %v3578, %v243
      %v3644 = vsel %vm3632, %v3579, %v244
      %v3645 = vsel %vm3632, %v3580, %v245
      %v3646 = vsel %vm3632, %v3581, %v246
      %v3647 = vsel %vm3632, %v3582, %v247
      %v3648 = vsel %vm3632, %v3583, %v248
      %v3649 = vsel %vm3632, %v3584, %v249
      %v3650 = vsel %vm3632, %v3585, %v250
      %v3651 = vsel %vm3632, %v3586, %v251
      %v3652 = vsel %vm3632, %v3587, %v252
      %v3653 = vsel %vm3632, %v3588, %v253
      %v3654 = vsel %vm3632, %v3589, %v254
      %v3655 = vsel %vm3632, %v3590, %v255
      %v3656 = vsel %vm3632, %v3591, %v256
      %v3657 = vsel %vm3632, %v3592, %v257
      %v3658 = vsel %vm3632, %v3593, %v258
      %v3659 = vsel %vm3632, %v3594, %v259
      %v3660 = vsel %vm3632, %v3595, %v260
      %v3661 = vsel %vm3632, %v3596, %v261
      %v3662 = vsel %vm3632, %v3597, %v262
      %v3663 = vsel %vm3632, %v3598, %v263
      %v3664 = vsel %vm3632, %v3599, %v264
      %v3665 = vsel %vm3632, %v3600, %v265
      %v3666 = vsel %vm3632, %v3601, %v266
      %v3667 = vsel %vm3632, %v3602, %v267
      %v3668 = vsel %vm3632, %v3603, %v268
      %v3669 = vsel %vm3632, %v3604, %v269
      %v3670 = vsel %vm3632, %v3605, %v270
      %v3671 = vsel %vm3632, %v3606, %v271
      %v3672 = vsel %vm3632, %v3607, %v272
      %v3673 = vsel %vm3632, %v3608, %v273
      %v3674 = vsel %vm3632, %v3609, %v274
      %v3675 = vsel %vm3632, %v3610, %v275
      %v3676 = vsel %vm3632, %v3611, %v276
      %v3677 = vsel %vm3632, %v3612, %v277
      %v3678 = vsel %vm3632, %v3613, %v278
      %v3679 = vsel %vm3632, %v3614, %v279
      %v3680 = vsel %vm3632, %v3615, %v280
      %v3681 = vsel %vm3632, %v3616, %v281
      %v3682 = vsel %vm3632, %v3617, %v282
      %v3683 = vsel %vm3632, %v3618, %v283
      %v3684 = vsel %vm3632, %v3619, %v284
      %v3685 = vsel %vm3632, %v3620, %v285
      %v3686 = vsel %vm3632, %v3621, %v286
      %v3687 = vsel %vm3632, %v3622, %v287
      %v3688 = vsel %vm3632, %v3623, %v288
      %v3689 = vsel %vm3632, %v3624, %v289
      %v3690 = vsel %vm3632, %v3625, %v290
      %v3691 = vsel %vm3632, %v3626, %v291
      %v3692 = vsel %vm3632, %v3627, %v292
      %v3693 = vsel %vm3632, %v3628, %v293
      %v3694 = vsel %vm3632, %v3629, %v294
      %v3695 = vsel %vm3632, %v3630, %v295
      %v3696 = vsel %vm3632, %v3631, %v296
      %vm3697 = vcmask 293888
      %3698 = vst.msk [vmem:[%s167] sm:$0xff] %vm3697, %v3633
      %3699 = vst.msk [vmem:[%s167 + $0x8] sm:$0xff] %vm3697, %v3634
      %3700 = vst.msk [vmem:[%s167 + $0x10] sm:$0xff] %vm3697, %v3635
      %3701 = vst.msk [vmem:[%s167 + $0x18] sm:$0xff] %vm3697, %v3636
      %3702 = vst.msk [vmem:[%s167 + $0x20] sm:$0xff] %vm3697, %v3637
      %3703 = vst.msk [vmem:[%s167 + $0x28] sm:$0xff] %vm3697, %v3638
      %3704 = vst.msk [vmem:[%s167 + $0x30] sm:$0xff] %vm3697, %v3639
      %3705 = vst.msk [vmem:[%s167 + $0x38] sm:$0xff] %vm3697, %v3640
      %3706 = vst.msk [vmem:[%s167 + $0x40] sm:$0xff] %vm3697, %v3641
      %3707 = vst.msk [vmem:[%s167 + $0x48] sm:$0xff] %vm3697, %v3642
      %3708 = vst.msk [vmem:[%s167 + $0x50] sm:$0xff] %vm3697, %v3643
      %3709 = vst.msk [vmem:[%s167 + $0x58] sm:$0xff] %vm3697, %v3644
      %3710 = vst.msk [vmem:[%s167 + $0x60] sm:$0xff] %vm3697, %v3645
      %3711 = vst.msk [vmem:[%s167 + $0x68] sm:$0xff] %vm3697, %v3646
      %3712 = vst.msk [vmem:[%s167 + $0x70] sm:$0xff] %vm3697, %v3647
      %3713 = vst.msk [vmem:[%s167 + $0x78] sm:$0xff] %vm3697, %v3648
      %3714 = vst.msk [vmem:[%s167 + $0x80] sm:$0xff] %vm3697, %v3649
      %3715 = vst.msk [vmem:[%s167 + $0x88] sm:$0xff] %vm3697, %v3650
      %3716 = vst.msk [vmem:[%s167 + $0x90] sm:$0xff] %vm3697, %v3651
      %3717 = vst.msk [vmem:[%s167 + $0x98] sm:$0xff] %vm3697, %v3652
      %3718 = vst.msk [vmem:[%s167 + $0xa0] sm:$0xff] %vm3697, %v3653
      %3719 = vst.msk [vmem:[%s167 + $0xa8] sm:$0xff] %vm3697, %v3654
      %3720 = vst.msk [vmem:[%s167 + $0xb0] sm:$0xff] %vm3697, %v3655
      %3721 = vst.msk [vmem:[%s167 + $0xb8] sm:$0xff] %vm3697, %v3656
      %3722 = vst.msk [vmem:[%s167 + $0xc0] sm:$0xff] %vm3697, %v3657
      %3723 = vst.msk [vmem:[%s167 + $0xc8] sm:$0xff] %vm3697, %v3658
      %3724 = vst.msk [vmem:[%s167 + $0xd0] sm:$0xff] %vm3697, %v3659
      %3725 = vst.msk [vmem:[%s167 + $0xd8] sm:$0xff] %vm3697, %v3660
      %3726 = vst.msk [vmem:[%s167 + $0xe0] sm:$0xff] %vm3697, %v3661
      %3727 = vst.msk [vmem:[%s167 + $0xe8] sm:$0xff] %vm3697, %v3662
      %3728 = vst.msk [vmem:[%s167 + $0xf0] sm:$0xff] %vm3697, %v3663
      %3729 = vst.msk [vmem:[%s167 + $0xf8] sm:$0xff] %vm3697, %v3664
      %3730 = vst.msk [vmem:[%s167 + $0x100] sm:$0xff] %vm3697, %v3665
      %3731 = vst.msk [vmem:[%s167 + $0x108] sm:$0xff] %vm3697, %v3666
      %3732 = vst.msk [vmem:[%s167 + $0x110] sm:$0xff] %vm3697, %v3667
      %3733 = vst.msk [vmem:[%s167 + $0x118] sm:$0xff] %vm3697, %v3668
      %3734 = vst.msk [vmem:[%s167 + $0x120] sm:$0xff] %vm3697, %v3669
      %3735 = vst.msk [vmem:[%s167 + $0x128] sm:$0xff] %vm3697, %v3670
      %3736 = vst.msk [vmem:[%s167 + $0x130] sm:$0xff] %vm3697, %v3671
      %3737 = vst.msk [vmem:[%s167 + $0x138] sm:$0xff] %vm3697, %v3672
      %3738 = vst.msk [vmem:[%s167 + $0x140] sm:$0xff] %vm3697, %v3673
      %3739 = vst.msk [vmem:[%s167 + $0x148] sm:$0xff] %vm3697, %v3674
      %3740 = vst.msk [vmem:[%s167 + $0x150] sm:$0xff] %vm3697, %v3675
      %3741 = vst.msk [vmem:[%s167 + $0x158] sm:$0xff] %vm3697, %v3676
      %3742 = vst.msk [vmem:[%s167 + $0x160] sm:$0xff] %vm3697, %v3677
      %3743 = vst.msk [vmem:[%s167 + $0x168] sm:$0xff] %vm3697, %v3678
      %3744 = vst.msk [vmem:[%s167 + $0x170] sm:$0xff] %vm3697, %v3679
      %3745 = vst.msk [vmem:[%s167 + $0x178] sm:$0xff] %vm3697, %v3680
      %3746 = vst.msk [vmem:[%s167 + $0x180] sm:$0xff] %vm3697, %v3681
      %3747 = vst.msk [vmem:[%s167 + $0x188] sm:$0xff] %vm3697, %v3682
      %3748 = vst.msk [vmem:[%s167 + $0x190] sm:$0xff] %vm3697, %v3683
      %3749 = vst.msk [vmem:[%s167 + $0x198] sm:$0xff] %vm3697, %v3684
      %3750 = vst.msk [vmem:[%s167 + $0x1a0] sm:$0xff] %vm3697, %v3685
      %3751 = vst.msk [vmem:[%s167 + $0x1a8] sm:$0xff] %vm3697, %v3686
      %3752 = vst.msk [vmem:[%s167 + $0x1b0] sm:$0xff] %vm3697, %v3687
      %3753 = vst.msk [vmem:[%s167 + $0x1b8] sm:$0xff] %vm3697, %v3688
      %3754 = vst.msk [vmem:[%s167 + $0x1c0] sm:$0xff] %vm3697, %v3689
      %3755 = vst.msk [vmem:[%s167 + $0x1c8] sm:$0xff] %vm3697, %v3690
      %3756 = vst.msk [vmem:[%s167 + $0x1d0] sm:$0xff] %vm3697, %v3691
      %3757 = vst.msk [vmem:[%s167 + $0x1d8] sm:$0xff] %vm3697, %v3692
      %3758 = vst.msk [vmem:[%s167 + $0x1e0] sm:$0xff] %vm3697, %v3693
      %3759 = vst.msk [vmem:[%s167 + $0x1e8] sm:$0xff] %vm3697, %v3694
      %3760 = vst.msk [vmem:[%s167 + $0x1f0] sm:$0xff] %vm3697, %v3695
      %3761 = vst.msk [vmem:[%s167 + $0x1f8] sm:$0xff] %vm3697, %v3696
      %s3762 = smul.u32 64, %s13
      %p3763 = scmp.lt.s32.totalorder %s3762, 127
      %s3764 = scalar_select %p3763, %s3762, 127
      %s3765 = smul.addr %s3764, 8
      %s3766 = scalar_lea.vmem %s2, %s3765
      // Predicated region
      $region29: #{tpu_custom_call.1} parent=27 // pred_check
        %p3767 = pneg %p83
      $region30: #{tpu_custom_call.1} parent=27 // pred_check_branch
        %3769 = sbr.rel (%p3767) target = $region32
      $region31: #{tpu_custom_call.1} parent=27 // pred_region
        %s3770 = smul.u32 64, %s13
      $region32: #{tpu_custom_call.1} parent=27 // pred_fallthru
        _
    $region28: #{tpu_custom_call.1} parent=5 // pred_fallthru
      _
    %p3771 = scmp.le.s32.totalorder 2, %s8
    // Predicated region
    $region33: #{tpu_custom_call.1} parent=5 // pred_check
      %p3772 = pneg %p3771
    $region34: #{tpu_custom_call.1} parent=5 // pred_check_branch
      %3774 = sbr.rel (%p3772) target = $region36
    $region35: #{tpu_custom_call.1} parent=5 // pred_region
      %s3775 = ssub.s32 %s8, 2
      // Predicated region
      $region37: #{tpu_custom_call.1} parent=35 // pred_check
        %p3776 = pneg %p89
      $region38: #{tpu_custom_call.1} parent=35 // pred_check_branch
        %3778 = sbr.rel (%p3776) target = $region40
      $region39: #{tpu_custom_call.1} parent=35 // pred_region
        %s3779 = smul.u32 64, %s14
        %p3780 = scmp.lt.s32.totalorder %s3779, 127
        %s3781 = scalar_select %p3780, %s3779, 127
        %s3782 = smul.addr %s3781, 8
        %s3783 = scalar_lea.vmem %s2, %s3782
      $region40: #{tpu_custom_call.1} parent=35 // pred_fallthru
        _
    $region36: #{tpu_custom_call.1} parent=5 // pred_fallthru
      _
  $region6: #{tpu_custom_call.1} parent=0 // loop_footer
    %s12 = sadd.s32 1, %s8
  $region7: #{tpu_custom_call.1} parent=0 // loop_footer_branch
    %7 = sbr.rel target = $region3
  $region8: #{tpu_custom_call.1} parent=0 // loop_exit
    _

</llo_original>
